<compile_context>
chip_gen: v5e
topology: v5e:2x2
jax: 0.10.0
libtpu: 0.0.40
codegen_flags: <defaults>
</compile_context>

<pallas_src>
import functools

import jax
import jax.numpy as jnp
from jax.experimental import pallas as pl
from jax.experimental.pallas import tpu as pltpu


LANE = 128          # Cout tile width (lane-dense output / MXU columns)
ROW_TARGET = 1024   # target matmul rows (output pixels) per block


def _round_up(x, m):
    return (x + m - 1) // m * m


def _pick_toh(OH, OW, target=ROW_TARGET):
    """Largest divisor d of OH with d*OW <= target and (d*OW) % 8 == 0; else OH."""
    best = None
    for d in range(1, OH + 1):
        if OH % d == 0 and d * OW <= target and (d * OW) % 8 == 0:
            best = d
    return best if best is not None else OH


def _vmem_limit_bytes():
    # Leave headroom below physical VMEM (64 MiB on v7x, 128 MiB on v5e/v6e).
    try:
        cap = pltpu.get_tpu_info().vmem_capacity_bytes
        return int(min(0.75 * cap, 96 * 1024 * 1024))
    except Exception:
        return 64 * 1024 * 1024


_VMEM_LIMIT = _vmem_limit_bytes()


# ----------------------------------------------------------------------------
# Pallas kernel: fused im2col + matmul for one (n, output-row tile, Cout tile)
# ----------------------------------------------------------------------------
def _conv_kernel(x_ref, w_ref, b_ref, o_ref, *, KH, KW, stride, toh, OW):
    """
    x_ref: (1, Hp, Wp, C)   bf16  padded NHWC image (resident across t/co steps)
    w_ref: (KH, KW, C, tn)  bf16  weight tile (Cout tile on lanes)
    b_ref: (1, tn)          f32   bias tile
    o_ref: (1, toh*OW, tn)  f32   output tile; rows = flattened (oh, ow)
    """
    t = pl.program_id(1)
    row0 = t * (toh * stride)          # first padded-input row for this tile
    C = x_ref.shape[-1]
    tn = o_ref.shape[-1]

    acc = jnp.zeros((toh * OW, tn), jnp.float32)
    for i in range(KH):
        for j in range(KW):
            if stride == 1:
                slab = x_ref[0, pl.ds(row0 + i, toh), pl.ds(j, OW), :]
            else:
                # TODO(synk): strided in-kernel gather (stride > 1) is best-effort;
                # the demo / common case uses stride == 1.
                slab = x_ref[0,
                             pl.ds(row0 + i, toh, stride=stride),
                             pl.ds(j, OW, stride=stride), :]
            lhs = slab.reshape(toh * OW, C)                    # (rows, C) bf16
            acc += jnp.dot(lhs, w_ref[i, j],                   # (C, tn)  bf16
                           preferred_element_type=jnp.float32)

    acc = acc + b_ref[...]             # bias added exactly once, in the epilogue
    o_ref[0] = acc.astype(o_ref.dtype)


# ----------------------------------------------------------------------------
# Wrapper: PyTorch Conv2d forward (NCHW / OIHW), no im2col materialization
# ----------------------------------------------------------------------------
@functools.partial(jax.jit, static_argnames=("stride", "padding"))
def conv2d_pallas(x, weight, bias=None, *, stride=1, padding=0):
    """
    x:      (N, C, H, W)       float32 (NCHW)
    weight: (Cout, C, KH, KW)  float32 (OIHW)
    bias:   (Cout,) or None    float32
    returns (N, Cout, OH, OW)  float32 (NCHW)
    """
    N, C, H, W = x.shape
    Cout, _, KH, KW = weight.shape
    OH = (H + 2 * padding - KH) // stride + 1
    OW = (W + 2 * padding - KW) // stride + 1
    Hp, Wp = H + 2 * padding, W + 2 * padding

    # One pass over the input: spatial pad, NCHW -> NHWC, cast to bf16.
    xp = jnp.pad(x, ((0, 0), (0, 0), (padding, padding), (padding, padding)))
    xp = xp.transpose(0, 2, 3, 1).astype(jnp.bfloat16)        # (N, Hp, Wp, C)

    # Weight -> (KH, KW, C, Cout_pad) bf16, Cout padded to a lane multiple.
    Cout_pad = _round_up(Cout, LANE)
    w_t = weight.transpose(2, 3, 1, 0)                        # (KH, KW, C, Cout)
    w_t = jnp.pad(w_t, ((0, 0), (0, 0), (0, 0), (0, Cout_pad - Cout)))
    w_t = w_t.astype(jnp.bfloat16)

    if bias is None:
        b2 = jnp.zeros((1, Cout_pad), jnp.float32)
    else:
        b2 = jnp.pad(bias.astype(jnp.float32),
                     ((0, Cout_pad - Cout),)).reshape(1, Cout_pad)

    # Tiling: toh output rows per block (toh*OW matmul rows), Cout tiled by 128.
    # TODO(synk): for very large images, tile H with an explicit halo instead of
    # keeping the whole padded image resident in VMEM.
    toh = _pick_toh(OH, OW)
    n_t = OH // toh
    tn = LANE
    n_co = Cout_pad // tn

    kernel = functools.partial(_conv_kernel, KH=KH, KW=KW, stride=stride,
                               toh=toh, OW=OW)

    out = pl.pallas_call(
        kernel,
        out_shape=jax.ShapeDtypeStruct((N, OH * OW, Cout_pad), jnp.float32),
        grid=(N, n_t, n_co),
        in_specs=[
            # Full padded image per n; block index only depends on n, so it is
            # NOT re-DMA'd across the (t, co) grid steps.
            pl.BlockSpec((1, Hp, Wp, C), lambda n, t, co: (n, 0, 0, 0)),
            pl.BlockSpec((KH, KW, C, tn), lambda n, t, co: (0, 0, 0, co)),
            pl.BlockSpec((1, tn), lambda n, t, co: (0, co)),
        ],
        out_specs=pl.BlockSpec((1, toh * OW, tn), lambda n, t, co: (n, t, co)),
        compiler_params=pltpu.CompilerParams(
            dimension_semantics=("parallel", "parallel", "parallel"),
            vmem_limit_bytes=_VMEM_LIMIT,
        ),
    )(xp, w_t, b2)

    out = out[:, :, :Cout]                                     # drop Cout padding
    out = out.reshape(N, OH, OW, Cout).transpose(0, 3, 1, 2)   # back to NCHW
    return out


# ----------------------------------------------------------------------------
# Demo / self-check
# ----------------------------------------------------------------------------
if __name__ == "__main__":
    # Module config (mirrors Conv2d(in_channels, out_channels, kernel_size, ...))
    in_channels, out_channels = 4, 8
    kernel_size, stride, padding = 3, 1, 1
    std = 0.1  # the module's `std` option: weights/bias ~ N(0, std)

    key = jax.random.PRNGKey(0)
    kx, kw, kb = jax.random.split(key, 3)

    x = jax.random.normal(kx, (2, in_channels, 16, 16), dtype=jnp.float32)
    weight = std * jax.random.normal(
        kw, (out_channels, in_channels, kernel_size, kernel_size),
        dtype=jnp.float32)
    bias = std * jax.random.normal(kb, (out_channels,), dtype=jnp.float32)

    y = conv2d_pallas(x, weight, bias, stride=stride, padding=padding)
    y = jax.block_until_ready(y)

    # Reference: XLA conv on the same bf16-rounded inputs (the kernel feeds the
    # MXU bf16 operands with f32 accumulation), f32 precision.
    x_q = x.astype(jnp.bfloat16).astype(jnp.float32)
    w_q = weight.astype(jnp.bfloat16).astype(jnp.float32)
    y_ref = jax.lax.conv_general_dilated(
        x_q, w_q,
        window_strides=(stride, stride),
        padding=[(padding, padding), (padding, padding)],
        dimension_numbers=("NCHW", "OIHW", "NCHW"),
        precision=jax.lax.Precision.HIGHEST,
    ) + bias[None, :, None, None]

    assert y.shape == (2, out_channels, 16, 16), y.shape
    err = float(jnp.max(jnp.abs(y - y_ref)))
    assert jnp.allclose(y, y_ref, atol=1e-4, rtol=1e-4), err

    print("KERNEL_OK")
</pallas_src>

<mosaic_0001>
module attributes {stable_mosaic.version = 11 : i64} {
  func.func @_conv_kernel(%arg0: i32, %arg1: i32, %arg2: i32, %arg3: memref<1x18x18x4xbf16, #tpu.memory_space<vmem>>, %arg4: memref<3x3x4x128xbf16, #tpu.memory_space<vmem>>, %arg5: memref<1x128xf32, #tpu.memory_space<vmem>>, %arg6: memref<1x256x128xf32, #tpu.memory_space<vmem>>) attributes {dimension_semantics = [#tpu.dimension_semantics<parallel>, #tpu.dimension_semantics<parallel>, #tpu.dimension_semantics<parallel>], iteration_bounds = array<i64: 2, 1, 1>, scalar_prefetch = 0 : i64, scratch_operands = 0 : i64, tpu.core_type = #tpu.core_type<tc>, window_params = [{transform_indices = @transform_0, window_bounds = array<i64: 1, 18, 18, 4>}, {transform_indices = @transform_1, window_bounds = array<i64: 3, 3, 4, 128>}, {transform_indices = @transform_2, window_bounds = array<i64: 1, 128>}, {transform_indices = @transform_3, window_bounds = array<i64: 1, 256, 128>}]} {
    %c16_i32 = arith.constant 16 : i32
    %0 = arith.muli %arg1, %c16_i32 : i32
    %cst = arith.constant 0.000000e+00 : f32
    %1 = vector.broadcast %cst : f32 to vector<256x128xf32>
    %c0_i32 = arith.constant 0 : i32
    %2 = arith.addi %0, %c0_i32 : i32
    %c0 = arith.constant 0 : index
    %3 = arith.index_cast %2 : i32 to index
    %c0_0 = arith.constant 0 : index
    %c0_1 = arith.constant 0 : index
    %4 = vector.load %arg3[%c0, %3, %c0_0, %c0_1] : memref<1x18x18x4xbf16, #tpu.memory_space<vmem>>, vector<1x16x16x4xbf16>
    %5 = vector.shape_cast %4 : vector<1x16x16x4xbf16> to vector<16x16x4xbf16>
    %6 = vector.shape_cast %5 : vector<16x16x4xbf16> to vector<256x4xbf16>
    %c0_2 = arith.constant 0 : index
    %c0_3 = arith.constant 0 : index
    %c0_4 = arith.constant 0 : index
    %c0_5 = arith.constant 0 : index
    %7 = vector.load %arg4[%c0_2, %c0_3, %c0_4, %c0_5] : memref<3x3x4x128xbf16, #tpu.memory_space<vmem>>, vector<1x1x4x128xbf16>
    %8 = vector.shape_cast %7 : vector<1x1x4x128xbf16> to vector<4x128xbf16>
    %cst_6 = arith.constant dense<0.000000e+00> : vector<256x128xf32>
    %9 = tpu.matmul %6, %8, %cst_6 {dimension_numbers = #tpu.dot_dimension_numbers<[1], [0], [0], [1], [0, 0, 1, 1], [], []>} : vector<256x4xbf16>, vector<4x128xbf16>, vector<256x128xf32> -> vector<256x128xf32>
    %10 = arith.addf %1, %9 : vector<256x128xf32>
    %c0_i32_7 = arith.constant 0 : i32
    %11 = arith.addi %0, %c0_i32_7 : i32
    %c0_8 = arith.constant 0 : index
    %12 = arith.index_cast %11 : i32 to index
    %c1 = arith.constant 1 : index
    %c0_9 = arith.constant 0 : index
    %13 = vector.load %arg3[%c0_8, %12, %c1, %c0_9] : memref<1x18x18x4xbf16, #tpu.memory_space<vmem>>, vector<1x16x16x4xbf16>
    %14 = vector.shape_cast %13 : vector<1x16x16x4xbf16> to vector<16x16x4xbf16>
    %15 = vector.shape_cast %14 : vector<16x16x4xbf16> to vector<256x4xbf16>
    %c0_10 = arith.constant 0 : index
    %c1_11 = arith.constant 1 : index
    %c0_12 = arith.constant 0 : index
    %c0_13 = arith.constant 0 : index
    %16 = vector.load %arg4[%c0_10, %c1_11, %c0_12, %c0_13] : memref<3x3x4x128xbf16, #tpu.memory_space<vmem>>, vector<1x1x4x128xbf16>
    %17 = vector.shape_cast %16 : vector<1x1x4x128xbf16> to vector<4x128xbf16>
    %cst_14 = arith.constant dense<0.000000e+00> : vector<256x128xf32>
    %18 = tpu.matmul %15, %17, %cst_14 {dimension_numbers = #tpu.dot_dimension_numbers<[1], [0], [0], [1], [0, 0, 1, 1], [], []>} : vector<256x4xbf16>, vector<4x128xbf16>, vector<256x128xf32> -> vector<256x128xf32>
    %19 = arith.addf %10, %18 : vector<256x128xf32>
    %c0_i32_15 = arith.constant 0 : i32
    %20 = arith.addi %0, %c0_i32_15 : i32
    %c0_16 = arith.constant 0 : index
    %21 = arith.index_cast %20 : i32 to index
    %c2 = arith.constant 2 : index
    %c0_17 = arith.constant 0 : index
    %22 = vector.load %arg3[%c0_16, %21, %c2, %c0_17] : memref<1x18x18x4xbf16, #tpu.memory_space<vmem>>, vector<1x16x16x4xbf16>
    %23 = vector.shape_cast %22 : vector<1x16x16x4xbf16> to vector<16x16x4xbf16>
    %24 = vector.shape_cast %23 : vector<16x16x4xbf16> to vector<256x4xbf16>
    %c0_18 = arith.constant 0 : index
    %c2_19 = arith.constant 2 : index
    %c0_20 = arith.constant 0 : index
    %c0_21 = arith.constant 0 : index
    %25 = vector.load %arg4[%c0_18, %c2_19, %c0_20, %c0_21] : memref<3x3x4x128xbf16, #tpu.memory_space<vmem>>, vector<1x1x4x128xbf16>
    %26 = vector.shape_cast %25 : vector<1x1x4x128xbf16> to vector<4x128xbf16>
    %cst_22 = arith.constant dense<0.000000e+00> : vector<256x128xf32>
    %27 = tpu.matmul %24, %26, %cst_22 {dimension_numbers = #tpu.dot_dimension_numbers<[1], [0], [0], [1], [0, 0, 1, 1], [], []>} : vector<256x4xbf16>, vector<4x128xbf16>, vector<256x128xf32> -> vector<256x128xf32>
    %28 = arith.addf %19, %27 : vector<256x128xf32>
    %c1_i32 = arith.constant 1 : i32
    %29 = arith.addi %0, %c1_i32 : i32
    %c0_23 = arith.constant 0 : index
    %30 = arith.index_cast %29 : i32 to index
    %c0_24 = arith.constant 0 : index
    %c0_25 = arith.constant 0 : index
    %31 = vector.load %arg3[%c0_23, %30, %c0_24, %c0_25] : memref<1x18x18x4xbf16, #tpu.memory_space<vmem>>, vector<1x16x16x4xbf16>
    %32 = vector.shape_cast %31 : vector<1x16x16x4xbf16> to vector<16x16x4xbf16>
    %33 = vector.shape_cast %32 : vector<16x16x4xbf16> to vector<256x4xbf16>
    %c1_26 = arith.constant 1 : index
    %c0_27 = arith.constant 0 : index
    %c0_28 = arith.constant 0 : index
    %c0_29 = arith.constant 0 : index
    %34 = vector.load %arg4[%c1_26, %c0_27, %c0_28, %c0_29] : memref<3x3x4x128xbf16, #tpu.memory_space<vmem>>, vector<1x1x4x128xbf16>
    %35 = vector.shape_cast %34 : vector<1x1x4x128xbf16> to vector<4x128xbf16>
    %cst_30 = arith.constant dense<0.000000e+00> : vector<256x128xf32>
    %36 = tpu.matmul %33, %35, %cst_30 {dimension_numbers = #tpu.dot_dimension_numbers<[1], [0], [0], [1], [0, 0, 1, 1], [], []>} : vector<256x4xbf16>, vector<4x128xbf16>, vector<256x128xf32> -> vector<256x128xf32>
    %37 = arith.addf %28, %36 : vector<256x128xf32>
    %c1_i32_31 = arith.constant 1 : i32
    %38 = arith.addi %0, %c1_i32_31 : i32
    %c0_32 = arith.constant 0 : index
    %39 = arith.index_cast %38 : i32 to index
    %c1_33 = arith.constant 1 : index
    %c0_34 = arith.constant 0 : index
    %40 = vector.load %arg3[%c0_32, %39, %c1_33, %c0_34] : memref<1x18x18x4xbf16, #tpu.memory_space<vmem>>, vector<1x16x16x4xbf16>
    %41 = vector.shape_cast %40 : vector<1x16x16x4xbf16> to vector<16x16x4xbf16>
    %42 = vector.shape_cast %41 : vector<16x16x4xbf16> to vector<256x4xbf16>
    %c1_35 = arith.constant 1 : index
    %c1_36 = arith.constant 1 : index
    %c0_37 = arith.constant 0 : index
    %c0_38 = arith.constant 0 : index
    %43 = vector.load %arg4[%c1_35, %c1_36, %c0_37, %c0_38] : memref<3x3x4x128xbf16, #tpu.memory_space<vmem>>, vector<1x1x4x128xbf16>
    %44 = vector.shape_cast %43 : vector<1x1x4x128xbf16> to vector<4x128xbf16>
    %cst_39 = arith.constant dense<0.000000e+00> : vector<256x128xf32>
    %45 = tpu.matmul %42, %44, %cst_39 {dimension_numbers = #tpu.dot_dimension_numbers<[1], [0], [0], [1], [0, 0, 1, 1], [], []>} : vector<256x4xbf16>, vector<4x128xbf16>, vector<256x128xf32> -> vector<256x128xf32>
    %46 = arith.addf %37, %45 : vector<256x128xf32>
    %c1_i32_40 = arith.constant 1 : i32
    %47 = arith.addi %0, %c1_i32_40 : i32
    %c0_41 = arith.constant 0 : index
    %48 = arith.index_cast %47 : i32 to index
    %c2_42 = arith.constant 2 : index
    %c0_43 = arith.constant 0 : index
    %49 = vector.load %arg3[%c0_41, %48, %c2_42, %c0_43] : memref<1x18x18x4xbf16, #tpu.memory_space<vmem>>, vector<1x16x16x4xbf16>
    %50 = vector.shape_cast %49 : vector<1x16x16x4xbf16> to vector<16x16x4xbf16>
    %51 = vector.shape_cast %50 : vector<16x16x4xbf16> to vector<256x4xbf16>
    %c1_44 = arith.constant 1 : index
    %c2_45 = arith.constant 2 : index
    %c0_46 = arith.constant 0 : index
    %c0_47 = arith.constant 0 : index
    %52 = vector.load %arg4[%c1_44, %c2_45, %c0_46, %c0_47] : memref<3x3x4x128xbf16, #tpu.memory_space<vmem>>, vector<1x1x4x128xbf16>
    %53 = vector.shape_cast %52 : vector<1x1x4x128xbf16> to vector<4x128xbf16>
    %cst_48 = arith.constant dense<0.000000e+00> : vector<256x128xf32>
    %54 = tpu.matmul %51, %53, %cst_48 {dimension_numbers = #tpu.dot_dimension_numbers<[1], [0], [0], [1], [0, 0, 1, 1], [], []>} : vector<256x4xbf16>, vector<4x128xbf16>, vector<256x128xf32> -> vector<256x128xf32>
    %55 = arith.addf %46, %54 : vector<256x128xf32>
    %c2_i32 = arith.constant 2 : i32
    %56 = arith.addi %0, %c2_i32 : i32
    %c0_49 = arith.constant 0 : index
    %57 = arith.index_cast %56 : i32 to index
    %c0_50 = arith.constant 0 : index
    %c0_51 = arith.constant 0 : index
    %58 = vector.load %arg3[%c0_49, %57, %c0_50, %c0_51] : memref<1x18x18x4xbf16, #tpu.memory_space<vmem>>, vector<1x16x16x4xbf16>
    %59 = vector.shape_cast %58 : vector<1x16x16x4xbf16> to vector<16x16x4xbf16>
    %60 = vector.shape_cast %59 : vector<16x16x4xbf16> to vector<256x4xbf16>
    %c2_52 = arith.constant 2 : index
    %c0_53 = arith.constant 0 : index
    %c0_54 = arith.constant 0 : index
    %c0_55 = arith.constant 0 : index
    %61 = vector.load %arg4[%c2_52, %c0_53, %c0_54, %c0_55] : memref<3x3x4x128xbf16, #tpu.memory_space<vmem>>, vector<1x1x4x128xbf16>
    %62 = vector.shape_cast %61 : vector<1x1x4x128xbf16> to vector<4x128xbf16>
    %cst_56 = arith.constant dense<0.000000e+00> : vector<256x128xf32>
    %63 = tpu.matmul %60, %62, %cst_56 {dimension_numbers = #tpu.dot_dimension_numbers<[1], [0], [0], [1], [0, 0, 1, 1], [], []>} : vector<256x4xbf16>, vector<4x128xbf16>, vector<256x128xf32> -> vector<256x128xf32>
    %64 = arith.addf %55, %63 : vector<256x128xf32>
    %c2_i32_57 = arith.constant 2 : i32
    %65 = arith.addi %0, %c2_i32_57 : i32
    %c0_58 = arith.constant 0 : index
    %66 = arith.index_cast %65 : i32 to index
    %c1_59 = arith.constant 1 : index
    %c0_60 = arith.constant 0 : index
    %67 = vector.load %arg3[%c0_58, %66, %c1_59, %c0_60] : memref<1x18x18x4xbf16, #tpu.memory_space<vmem>>, vector<1x16x16x4xbf16>
    %68 = vector.shape_cast %67 : vector<1x16x16x4xbf16> to vector<16x16x4xbf16>
    %69 = vector.shape_cast %68 : vector<16x16x4xbf16> to vector<256x4xbf16>
    %c2_61 = arith.constant 2 : index
    %c1_62 = arith.constant 1 : index
    %c0_63 = arith.constant 0 : index
    %c0_64 = arith.constant 0 : index
    %70 = vector.load %arg4[%c2_61, %c1_62, %c0_63, %c0_64] : memref<3x3x4x128xbf16, #tpu.memory_space<vmem>>, vector<1x1x4x128xbf16>
    %71 = vector.shape_cast %70 : vector<1x1x4x128xbf16> to vector<4x128xbf16>
    %cst_65 = arith.constant dense<0.000000e+00> : vector<256x128xf32>
    %72 = tpu.matmul %69, %71, %cst_65 {dimension_numbers = #tpu.dot_dimension_numbers<[1], [0], [0], [1], [0, 0, 1, 1], [], []>} : vector<256x4xbf16>, vector<4x128xbf16>, vector<256x128xf32> -> vector<256x128xf32>
    %73 = arith.addf %64, %72 : vector<256x128xf32>
    %c2_i32_66 = arith.constant 2 : i32
    %74 = arith.addi %0, %c2_i32_66 : i32
    %c0_67 = arith.constant 0 : index
    %75 = arith.index_cast %74 : i32 to index
    %c2_68 = arith.constant 2 : index
    %c0_69 = arith.constant 0 : index
    %76 = vector.load %arg3[%c0_67, %75, %c2_68, %c0_69] : memref<1x18x18x4xbf16, #tpu.memory_space<vmem>>, vector<1x16x16x4xbf16>
    %77 = vector.shape_cast %76 : vector<1x16x16x4xbf16> to vector<16x16x4xbf16>
    %78 = vector.shape_cast %77 : vector<16x16x4xbf16> to vector<256x4xbf16>
    %c2_70 = arith.constant 2 : index
    %c2_71 = arith.constant 2 : index
    %c0_72 = arith.constant 0 : index
    %c0_73 = arith.constant 0 : index
    %79 = vector.load %arg4[%c2_70, %c2_71, %c0_72, %c0_73] : memref<3x3x4x128xbf16, #tpu.memory_space<vmem>>, vector<1x1x4x128xbf16>
    %80 = vector.shape_cast %79 : vector<1x1x4x128xbf16> to vector<4x128xbf16>
    %cst_74 = arith.constant dense<0.000000e+00> : vector<256x128xf32>
    %81 = tpu.matmul %78, %80, %cst_74 {dimension_numbers = #tpu.dot_dimension_numbers<[1], [0], [0], [1], [0, 0, 1, 1], [], []>} : vector<256x4xbf16>, vector<4x128xbf16>, vector<256x128xf32> -> vector<256x128xf32>
    %82 = arith.addf %73, %81 : vector<256x128xf32>
    %c0_75 = arith.constant 0 : index
    %c0_76 = arith.constant 0 : index
    %83 = vector.load %arg5[%c0_75, %c0_76] : memref<1x128xf32, #tpu.memory_space<vmem>>, vector<1x128xf32>
    %84 = vector.broadcast %83 : vector<1x128xf32> to vector<256x128xf32>
    %85 = arith.addf %82, %84 : vector<256x128xf32>
    %c0_77 = arith.constant 0 : index
    %c0_78 = arith.constant 0 : index
    %c0_79 = arith.constant 0 : index
    %86 = vector.load %arg6[%c0_77, %c0_78, %c0_79] : memref<1x256x128xf32, #tpu.memory_space<vmem>>, vector<1x256x128xf32>
    %87 = vector.shape_cast %86 : vector<1x256x128xf32> to vector<256x128xf32>
    %88 = vector.shape_cast %85 : vector<256x128xf32> to vector<1x256x128xf32>
    tpu.vector_store %arg6[%c0_77, %c0_78, %c0_79], %88 {strides = array<i32>} : memref<1x256x128xf32, #tpu.memory_space<vmem>>, vector<1x256x128xf32>,
    return
  }
  func.func @transform_0(%arg0: i32, %arg1: i32, %arg2: i32) -> (i32, i32, i32, i32) {
    %c0_i32 = arith.constant 0 : i32
    %c0_i32_0 = arith.constant 0 : i32
    %c0_i32_1 = arith.constant 0 : i32
    %c0_i32_2 = arith.constant 0 : i32
    return %arg0, %c0_i32, %c0_i32_0, %c0_i32_1 : i32, i32, i32, i32
  }
  func.func @transform_1(%arg0: i32, %arg1: i32, %arg2: i32) -> (i32, i32, i32, i32) {
    %c0_i32 = arith.constant 0 : i32
    %c0_i32_0 = arith.constant 0 : i32
    %c0_i32_1 = arith.constant 0 : i32
    %c0_i32_2 = arith.constant 0 : i32
    return %c0_i32, %c0_i32_0, %c0_i32_1, %arg2 : i32, i32, i32, i32
  }
  func.func @transform_2(%arg0: i32, %arg1: i32, %arg2: i32) -> (i32, i32) {
    %c0_i32 = arith.constant 0 : i32
    %c0_i32_0 = arith.constant 0 : i32
    return %c0_i32, %arg2 : i32, i32
  }
  func.func @transform_3(%arg0: i32, %arg1: i32, %arg2: i32) -> (i32, i32, i32) {
    %c0_i32 = arith.constant 0 : i32
    return %arg0, %arg1, %arg2 : i32, i32, i32
  }
}

</mosaic_0001>

<llo_original>
// kernel: conv2d_pallas.1
$region0: #{conv2d_pallas.1}
  #allocation0 [shape = 'u32[]', space=smem, size = 0x4, offset = 0x4, fixed_abs, tag = 'smem constant byte address 0x4 - core index']
  #allocation1 [shape = 'u32[72,128]{1,0:T(1,128)}', space=vmem, size = 0x9000, scoped, tag = 'internal scratch']
  %s0 = inlined_call_operand.vmem [shape: bf16[2,18,18,4], index: 0, kind: input, shape index: {}]
  %s1 = inlined_call_operand.vmem [shape: bf16[3,3,4,128], index: 1, kind: input, shape index: {}]
  %s2 = inlined_call_operand.vmem [shape: f32[1,128], index: 2, kind: input, shape index: {}]
  %s3 = inlined_call_operand.vmem [shape: f32[2,256,128], index: 3, kind: output, shape index: {}]
  %s4 = sld [smem:[#allocation0]]
  $region45: #{conv2d_pallas.1} parent=0
    _
  %s6 = ssub.s32 1, %s4
  %s7 = scalar_select 0, %s6, %s4
  loop: start=0, step=1, limit=4
  $region2: #{conv2d_pallas.1} parent=0 // loop_pre_header
    _
  $region3: #{conv2d_pallas.1} parent=0 // loop_header
    %s9 = sphi 0, %s13
    %p10 = scmp.ge.s32.totalorder %s9, 4
    %s16 = sphi 0, %s35
    %s17 = sphi 0, %s31
    %s18 = sphi 0, %s27
    %s19 = sphi 0, %s16
    %s20 = sphi 0, %s17
    %s21 = sphi 0, %s18
    %s22 = sphi 0, %s19
    %s23 = sphi 0, %s20
    %s24 = sphi 0, %s21
    %s38 = sphi 0, %s40
    %s41 = sphi 0, %s38
    %s42 = sphi 0, %s41
    %s58 = sphi 0, %s42
    %s64 = sphi 0, %s66
    %s67 = sphi 0, %s64
    %s68 = sphi 0, %s67
    %s84 = sphi 0, %s68
    %s90 = sphi 0, %s92
    %s93 = sphi 0, %s90
    %s94 = sphi 0, %s93
    %s110 = sphi 0, %s94
    %s120 = sphi 0, %s122
    %s123 = sphi 0, %s120
    %s124 = sphi 0, %s123
    %s140 = sphi 0, %s124
  $region4: #{conv2d_pallas.1} parent=0 // loop_header_branch
    %12 = sbr.rel (%p10) target = $region8
  $region5: #{conv2d_pallas.1} parent=0 // loop_body
    %s14 = ssub.s32 %s9, 1
    %s15 = ssub.s32 %s9, 2
    %s25 = sadd.s32 1, %s18
    %p26 = scmp.ge.s32.totalorder %s25, 1
    %s27 = scalar_select %p26, 0, %s25
    %s28 = sadd.s32 1, %s17
    %s29 = scalar_select %p26, %s28, %s17
    %p30 = scmp.ge.s32.totalorder %s29, 1
    %s31 = scalar_select %p30, 0, %s29
    %s32 = sadd.s32 1, %s16
    %s33 = scalar_select %p30, %s32, %s16
    %p34 = scmp.ge.s32.totalorder %s33, 2
    %s35 = scalar_select %p34, 0, %s33
    %s36 = ssub.s32 %s16, %s35
    %p37 = scmp.eq.s32.totalorder %s36, 0
    %s39 = sadd.s32 %s38, 1
    %s40 = scalar_select %p37, %s38, %s39
    %p43 = pneg %p37
    %p44 = scmp.eq.s32.totalorder %s9, 1
    %p45 = por %p43, %p44
    %p46 = scmp.ne.s32.totalorder %s38, %s41
    %p47 = scmp.eq.s32.totalorder %s9, 0
    %p48 = por %p46, %p47
    %p49 = scmp.ne.s32.totalorder %s38, %s41
    %p50 = scmp.eq.s32.totalorder %s14, 1
    %p51 = por %p49, %p50
    %p52 = scmp.ne.s32.totalorder %s41, %s42
    %p53 = scmp.eq.s32.totalorder %s14, 0
    %p54 = por %p52, %p53
    %p55 = scmp.ne.s32.totalorder %s41, %s42
    %p56 = scmp.eq.s32.totalorder %s15, 1
    %p57 = por %p55, %p56
    %p59 = scmp.ne.s32.totalorder %s42, %s58
    %p60 = scmp.eq.s32.totalorder %s15, 0
    %p61 = por %p59, %p60
    %s62 = ssub.s32 %s18, %s27
    %p63 = scmp.eq.s32.totalorder %s62, 0
    %s65 = sadd.s32 %s64, 1
    %s66 = scalar_select %p63, %s64, %s65
    %p69 = pneg %p63
    %p70 = scmp.eq.s32.totalorder %s9, 1
    %p71 = por %p69, %p70
    %p72 = scmp.ne.s32.totalorder %s64, %s67
    %p73 = scmp.eq.s32.totalorder %s9, 0
    %p74 = por %p72, %p73
    %p75 = scmp.ne.s32.totalorder %s64, %s67
    %p76 = scmp.eq.s32.totalorder %s14, 1
    %p77 = por %p75, %p76
    %p78 = scmp.ne.s32.totalorder %s67, %s68
    %p79 = scmp.eq.s32.totalorder %s14, 0
    %p80 = por %p78, %p79
    %p81 = scmp.ne.s32.totalorder %s67, %s68
    %p82 = scmp.eq.s32.totalorder %s15, 1
    %p83 = por %p81, %p82
    %p85 = scmp.ne.s32.totalorder %s68, %s84
    %p86 = scmp.eq.s32.totalorder %s15, 0
    %p87 = por %p85, %p86
    %s88 = ssub.s32 %s18, %s27
    %p89 = scmp.eq.s32.totalorder %s88, 0
    %s91 = sadd.s32 %s90, 1
    %s92 = scalar_select %p89, %s90, %s91
    %p95 = pneg %p89
    %p96 = scmp.eq.s32.totalorder %s9, 1
    %p97 = por %p95, %p96
    %p98 = scmp.ne.s32.totalorder %s90, %s93
    %p99 = scmp.eq.s32.totalorder %s9, 0
    %p100 = por %p98, %p99
    %p101 = scmp.ne.s32.totalorder %s90, %s93
    %p102 = scmp.eq.s32.totalorder %s14, 1
    %p103 = por %p101, %p102
    %p104 = scmp.ne.s32.totalorder %s93, %s94
    %p105 = scmp.eq.s32.totalorder %s14, 0
    %p106 = por %p104, %p105
    %p107 = scmp.ne.s32.totalorder %s93, %s94
    %p108 = scmp.eq.s32.totalorder %s15, 1
    %p109 = por %p107, %p108
    %p111 = scmp.ne.s32.totalorder %s94, %s110
    %p112 = scmp.eq.s32.totalorder %s15, 0
    %p113 = por %p111, %p112
    %s114 = ssub.s32 %s16, %s35
    %s115 = ssub.s32 %s17, %s31
    %s116 = sor.u32 %s114, %s115
    %s117 = ssub.s32 %s18, %s27
    %s118 = sor.u32 %s116, %s117
    %p119 = scmp.eq.s32.totalorder %s118, 0
    %s121 = sadd.s32 %s120, 1
    %s122 = scalar_select %p119, %s120, %s121
    %p125 = pneg %p119
    %p126 = scmp.eq.s32.totalorder %s9, 1
    %p127 = por %p125, %p126
    %p128 = scmp.ne.s32.totalorder %s120, %s123
    %p129 = scmp.eq.s32.totalorder %s9, 0
    %p130 = por %p128, %p129
    %p131 = scmp.ne.s32.totalorder %s120, %s123
    %p132 = scmp.eq.s32.totalorder %s14, 1
    %p133 = por %p131, %p132
    %p134 = scmp.ne.s32.totalorder %s123, %s124
    %p135 = scmp.eq.s32.totalorder %s14, 0
    %p136 = por %p134, %p135
    %p137 = scmp.ne.s32.totalorder %s123, %s124
    %p138 = scmp.eq.s32.totalorder %s15, 1
    %p139 = por %p137, %p138
    %p141 = scmp.ne.s32.totalorder %s124, %s140
    %p142 = scmp.eq.s32.totalorder %s15, 0
    %p143 = por %p141, %p142
    %p144 = scmp.le.s32.totalorder 1, %s9
    %p145 = scmp.lt.s32.totalorder %s9, 3
    %p146 = pnand %p144, %p145
    %p147 = pneg %p146
    // Predicated region
    $region9: #{conv2d_pallas.1} parent=5 // pred_check
      _
    $region10: #{conv2d_pallas.1} parent=5 // pred_check_branch
      %149 = sbr.rel (%p146) target = $region12
    $region11: #{conv2d_pallas.1} parent=5 // pred_region
      %s150 = ssub.s32 %s9, 1
      // Predicated region
      $region13: #{conv2d_pallas.1} parent=11 // pred_check
        %p151 = pneg %p80
      $region14: #{conv2d_pallas.1} parent=11 // pred_check_branch
        %153 = sbr.rel (%p151) target = $region16
      $region15: #{conv2d_pallas.1} parent=11 // pred_region
        %p154 = scmp.lt.s32.totalorder %s21, 0
        %s155 = scalar_select %p154, %s21, 0
        %s156 = smul.addr %s155, 2
        %s157 = scalar_lea.vmem %s1, %s156
      $region16: #{conv2d_pallas.1} parent=11 // pred_fallthru
        _
      // Predicated region
      $region17: #{conv2d_pallas.1} parent=11 // pred_check
        %p158 = pneg %p106
      $region18: #{conv2d_pallas.1} parent=11 // pred_check_branch
        %160 = sbr.rel (%p158) target = $region20
      $region19: #{conv2d_pallas.1} parent=11 // pred_region
        %p161 = scmp.lt.s32.totalorder %s21, 0
        %s162 = scalar_select %p161, %s21, 0
        %s163 = scalar_lea.vmem %s2, %s162
      $region20: #{conv2d_pallas.1} parent=11 // pred_fallthru
        _
    $region12: #{conv2d_pallas.1} parent=5 // pred_fallthru
      _
    %p164 = scmp.lt.s32.totalorder %s9, 2
    // Predicated region
    $region21: #{conv2d_pallas.1} parent=5 // pred_check
      %p165 = pneg %p164
    $region22: #{conv2d_pallas.1} parent=5 // pred_check_branch
      %167 = sbr.rel (%p165) target = $region24
    $region23: #{conv2d_pallas.1} parent=5 // pred_region
      // Predicated region
      $region25: #{conv2d_pallas.1} parent=23 // pred_check
        %p168 = pneg %p48
      $region26: #{conv2d_pallas.1} parent=23 // pred_check_branch
        %170 = sbr.rel (%p168) target = $region28
      $region27: #{conv2d_pallas.1} parent=23 // pred_region
        %p171 = scmp.lt.s32.totalorder %s16, 1
        %s172 = scalar_select %p171, %s16, 1
        %s173 = smul.addr %s172, 54
        %s174 = smul.addr %s173, 4
        %s175 = scalar_lea.vmem %s0, %s174
      $region28: #{conv2d_pallas.1} parent=23 // pred_fallthru
        _
    $region24: #{conv2d_pallas.1} parent=5 // pred_fallthru
      _
    %p176 = scmp.le.s32.totalorder 1, %s9
    %p177 = scmp.lt.s32.totalorder %s9, 3
    %p178 = pnand %p176, %p177
    %p179 = pneg %p178
    // Predicated region
    $region29: #{conv2d_pallas.1} parent=5 // pred_check
      _
    $region30: #{conv2d_pallas.1} parent=5 // pred_check_branch
      %181 = sbr.rel (%p178) target = $region32
    $region31: #{conv2d_pallas.1} parent=5 // pred_region
      %s182 = ssub.s32 %s9, 1
      %p183 = scmp.lt.s32.totalorder %s19, 1
      %s184 = scalar_select %p183, %s19, 1
      %s185 = smul.addr %s184, 54
      %s186 = smul.addr %s185, 4
      %s187 = scalar_lea.vmem %s0, %s186
      %p188 = pneg %p54
      %p189 = pneg %p51
      %p190 = scmp.lt.s32.totalorder %s21, 0
      %s191 = scalar_select %p190, %s21, 0
      %s192 = smul.addr %s191, 2
      %s193 = scalar_lea.vmem %s1, %s192
      %p194 = pneg %p80
      %p195 = pneg %p77
      %p196 = scmp.lt.s32.totalorder %s21, 0
      %s197 = scalar_select %p196, %s21, 0
      %s198 = scalar_lea.vmem %s2, %s197
      %p199 = pneg %p106
      %p200 = pneg %p103
      %p201 = pneg %p136
      %p202 = pneg %p133
      %s203 = smul.u32 32, %s20
      %p204 = scmp.lt.s32.totalorder %s19, 1
      %s205 = scalar_select %p204, %s19, 1
      %p206 = scmp.lt.s32.totalorder %s203, 31
      %s207 = scalar_select %p206, %s203, 31
      %p208 = scmp.lt.s32.totalorder %s21, 0
      %s209 = scalar_select %p208, %s21, 0
      %s210 = sadd.s32 %s209, %s207
      %s211 = smul.addr %s205, 32
      %s212 = sadd.s32 %s210, %s211
      %s213 = smul.addr %s212, 8
      %s214 = scalar_lea.vmem %s3, %s213
      %p215 = scmp.lt.s32.totalorder %s19, 1
      %s216 = scalar_select %p215, %s19, 1
      %s217 = smul.addr %s216, 54
      %s218 = smul.addr %s217, 4
      %s219 = scalar_lea.vmem %s0, %s218
      %p220 = scmp.lt.s32.totalorder %s21, 0
      %s221 = scalar_select %p220, %s21, 0
      %s222 = smul.addr %s221, 2
      %s223 = scalar_lea.vmem %s1, %s222
      %p224 = scmp.lt.s32.totalorder %s21, 0
      %s225 = scalar_select %p224, %s21, 0
      %s226 = scalar_lea.vmem %s2, %s225
      %s227 = smul.u32 32, %s20
      %p228 = scmp.lt.s32.totalorder %s19, 1
      %s229 = scalar_select %p228, %s19, 1
      %p230 = scmp.lt.s32.totalorder %s227, 31
      %s231 = scalar_select %p230, %s227, 31
      %p232 = scmp.lt.s32.totalorder %s21, 0
      %s233 = scalar_select %p232, %s21, 0
      %s234 = sadd.s32 %s233, %s231
      %s235 = smul.addr %s229, 32
      %s236 = sadd.s32 %s234, %s235
      %s237 = smul.addr %s236, 8
      %s238 = scalar_lea.vmem %s3, %s237
      %s239 = smul.u32 32, %s20
      %s241 = smul.u32 %s20, 16
      %s242 = smul.u32 %s241, 3
      %s243 = smul.addr %s242, 4
      %s244 = scalar_lea.vmem %s219, %s243
      %v245 = vld [vmem:[%s244] sm:$0xf]
      %v246 = vld [vmem:[%s244 + $0x4] sm:$0xf]
      %v247 = vld [vmem:[%s244 + $0xc] sm:$0xf]
      %v248 = vld [vmem:[%s244 + $0x10] sm:$0xf]
      %v249 = vld [vmem:[%s244 + $0x18] sm:$0xf]
      %v250 = vld [vmem:[%s244 + $0x1c] sm:$0xf]
      %v251 = vld [vmem:[%s244 + $0x24] sm:$0xf]
      %v252 = vld [vmem:[%s244 + $0x28] sm:$0xf]
      %v253 = vld [vmem:[%s244 + $0x30] sm:$0xf]
      %v254 = vld [vmem:[%s244 + $0x34] sm:$0xf]
      %v255 = vld [vmem:[%s244 + $0x3c] sm:$0xf]
      %v256 = vld [vmem:[%s244 + $0x40] sm:$0xf]
      %v257 = vld [vmem:[%s244 + $0x48] sm:$0xf]
      %v258 = vld [vmem:[%s244 + $0x4c] sm:$0xf]
      %v259 = vld [vmem:[%s244 + $0x54] sm:$0xf]
      %v260 = vld [vmem:[%s244 + $0x58] sm:$0xf]
      %v261 = vld [vmem:[%s244 + $0x60] sm:$0xf]
      %v262 = vld [vmem:[%s244 + $0x64] sm:$0xf]
      %v263 = vld [vmem:[%s244 + $0x6c] sm:$0xf]
      %v264 = vld [vmem:[%s244 + $0x70] sm:$0xf]
      %v265 = vld [vmem:[%s244 + $0x78] sm:$0xf]
      %v266 = vld [vmem:[%s244 + $0x7c] sm:$0xf]
      %v267 = vld [vmem:[%s244 + $0x84] sm:$0xf]
      %v268 = vld [vmem:[%s244 + $0x88] sm:$0xf]
      %v269 = vld [vmem:[%s244 + $0x90] sm:$0xf]
      %v270 = vld [vmem:[%s244 + $0x94] sm:$0xf]
      %v271 = vld [vmem:[%s244 + $0x9c] sm:$0xf]
      %v272 = vld [vmem:[%s244 + $0xa0] sm:$0xf]
      %v273 = vld [vmem:[%s244 + $0xa8] sm:$0xf]
      %v274 = vld [vmem:[%s244 + $0xac] sm:$0xf]
      %v275 = vld [vmem:[%s244 + $0xb4] sm:$0xf]
      %v276 = vld [vmem:[%s244 + $0xb8] sm:$0xf]
      %v277 = vld [vmem:[%s223] sm:$0x3]
      %v278 = vld [vmem:[%s244 + $0x8] sm:$0x1]
      %v279 = vld [vmem:[%s244 + $0x14] sm:$0x1]
      %v280 = vld [vmem:[%s244 + $0x20] sm:$0x1]
      %v281 = vld [vmem:[%s244 + $0x2c] sm:$0x1]
      %v282 = vld [vmem:[%s244 + $0x38] sm:$0x1]
      %v283 = vld [vmem:[%s244 + $0x44] sm:$0x1]
      %v284 = vld [vmem:[%s244 + $0x50] sm:$0x1]
      %v285 = vld [vmem:[%s244 + $0x5c] sm:$0x1]
      %v286 = vld [vmem:[%s244 + $0x68] sm:$0x1]
      %v287 = vld [vmem:[%s244 + $0x74] sm:$0x1]
      %v288 = vld [vmem:[%s244 + $0x80] sm:$0x1]
      %v289 = vld [vmem:[%s244 + $0x8c] sm:$0x1]
      %v290 = vld [vmem:[%s244 + $0x98] sm:$0x1]
      %v291 = vld [vmem:[%s244 + $0xa4] sm:$0x1]
      %v292 = vld [vmem:[%s244 + $0xb0] sm:$0x1]
      %v293 = vld [vmem:[%s244 + $0xbc] sm:$0x1]
      %vm294 = vsmask.f32 3328
      %vm295 = vsmask.f32 7440
      %vm296 = vmor %vm294, %vm295
      %v298 = vshrl.u32 %v245, 16
      %v300 = vrot.slane %v298, 4
      %v301 = vshll.u32 %v245, 16
      %v303 = vrot.slane %v301, 5
      %v304 = vor.u32 %v300, %v303
      %v305 = vrot.slane %v304, 4
      %v307 = vshll.u32 %v246, 16
      %v309 = vrot.slane %v307, 5
      %v310 = vsel %vm296, %v305, %v309
      %v311 = vshrl.u32 %v246, 16
      %v313 = vrot.slane %v311, 4
      %v314 = vor.u32 %v313, %v309
      %v315 = vrot.slane %v314, 4
      %v317 = vshll.u32 %v278, 16
      %v319 = vrot.slane %v317, 5
      %v320 = vsel %vm296, %v315, %v319
      %v322 = vshrl.u32 %v247, 16
      %v324 = vrot.slane %v322, 4
      %v325 = vshll.u32 %v247, 16
      %v327 = vrot.slane %v325, 5
      %v328 = vor.u32 %v324, %v327
      %v329 = vrot.slane %v328, 4
      %v331 = vshll.u32 %v248, 16
      %v333 = vrot.slane %v331, 5
      %v334 = vsel %vm296, %v329, %v333
      %v335 = vshrl.u32 %v248, 16
      %v337 = vrot.slane %v335, 4
      %v338 = vor.u32 %v337, %v333
      %v339 = vrot.slane %v338, 4
      %v341 = vshll.u32 %v279, 16
      %v343 = vrot.slane %v341, 5
      %v344 = vsel %vm296, %v339, %v343
      %v346 = vshrl.u32 %v249, 16
      %v348 = vrot.slane %v346, 4
      %v349 = vshll.u32 %v249, 16
      %v351 = vrot.slane %v349, 5
      %v352 = vor.u32 %v348, %v351
      %v353 = vrot.slane %v352, 4
      %v355 = vshll.u32 %v250, 16
      %v357 = vrot.slane %v355, 5
      %v358 = vsel %vm296, %v353, %v357
      %v359 = vshrl.u32 %v250, 16
      %v361 = vrot.slane %v359, 4
      %v362 = vor.u32 %v361, %v357
      %v363 = vrot.slane %v362, 4
      %v365 = vshll.u32 %v280, 16
      %v367 = vrot.slane %v365, 5
      %v368 = vsel %vm296, %v363, %v367
      %v370 = vshrl.u32 %v251, 16
      %v372 = vrot.slane %v370, 4
      %v373 = vshll.u32 %v251, 16
      %v375 = vrot.slane %v373, 5
      %v376 = vor.u32 %v372, %v375
      %v377 = vrot.slane %v376, 4
      %v379 = vshll.u32 %v252, 16
      %v381 = vrot.slane %v379, 5
      %v382 = vsel %vm296, %v377, %v381
      %v383 = vshrl.u32 %v252, 16
      %v385 = vrot.slane %v383, 4
      %v386 = vor.u32 %v385, %v381
      %v387 = vrot.slane %v386, 4
      %v389 = vshll.u32 %v281, 16
      %v391 = vrot.slane %v389, 5
      %v392 = vsel %vm296, %v387, %v391
      %v394 = vshrl.u32 %v253, 16
      %v396 = vrot.slane %v394, 4
      %v397 = vshll.u32 %v253, 16
      %v399 = vrot.slane %v397, 5
      %v400 = vor.u32 %v396, %v399
      %v401 = vrot.slane %v400, 4
      %v403 = vshll.u32 %v254, 16
      %v405 = vrot.slane %v403, 5
      %v406 = vsel %vm296, %v401, %v405
      %v407 = vshrl.u32 %v254, 16
      %v409 = vrot.slane %v407, 4
      %v410 = vor.u32 %v409, %v405
      %v411 = vrot.slane %v410, 4
      %v413 = vshll.u32 %v282, 16
      %v415 = vrot.slane %v413, 5
      %v416 = vsel %vm296, %v411, %v415
      %v418 = vshrl.u32 %v255, 16
      %v420 = vrot.slane %v418, 4
      %v421 = vshll.u32 %v255, 16
      %v423 = vrot.slane %v421, 5
      %v424 = vor.u32 %v420, %v423
      %v425 = vrot.slane %v424, 4
      %v427 = vshll.u32 %v256, 16
      %v429 = vrot.slane %v427, 5
      %v430 = vsel %vm296, %v425, %v429
      %v431 = vshrl.u32 %v256, 16
      %v433 = vrot.slane %v431, 4
      %v434 = vor.u32 %v433, %v429
      %v435 = vrot.slane %v434, 4
      %v437 = vshll.u32 %v283, 16
      %v439 = vrot.slane %v437, 5
      %v440 = vsel %vm296, %v435, %v439
      %v442 = vshrl.u32 %v257, 16
      %v444 = vrot.slane %v442, 4
      %v445 = vshll.u32 %v257, 16
      %v447 = vrot.slane %v445, 5
      %v448 = vor.u32 %v444, %v447
      %v449 = vrot.slane %v448, 4
      %v451 = vshll.u32 %v258, 16
      %v453 = vrot.slane %v451, 5
      %v454 = vsel %vm296, %v449, %v453
      %v455 = vshrl.u32 %v258, 16
      %v457 = vrot.slane %v455, 4
      %v458 = vor.u32 %v457, %v453
      %v459 = vrot.slane %v458, 4
      %v461 = vshll.u32 %v284, 16
      %v463 = vrot.slane %v461, 5
      %v464 = vsel %vm296, %v459, %v463
      %v466 = vshrl.u32 %v259, 16
      %v468 = vrot.slane %v466, 4
      %v469 = vshll.u32 %v259, 16
      %v471 = vrot.slane %v469, 5
      %v472 = vor.u32 %v468, %v471
      %v473 = vrot.slane %v472, 4
      %v475 = vshll.u32 %v260, 16
      %v477 = vrot.slane %v475, 5
      %v478 = vsel %vm296, %v473, %v477
      %v479 = vshrl.u32 %v260, 16
      %v481 = vrot.slane %v479, 4
      %v482 = vor.u32 %v481, %v477
      %v483 = vrot.slane %v482, 4
      %v485 = vshll.u32 %v285, 16
      %v487 = vrot.slane %v485, 5
      %v488 = vsel %vm296, %v483, %v487
      %v490 = vshrl.u32 %v261, 16
      %v492 = vrot.slane %v490, 4
      %v493 = vshll.u32 %v261, 16
      %v495 = vrot.slane %v493, 5
      %v496 = vor.u32 %v492, %v495
      %v497 = vrot.slane %v496, 4
      %v499 = vshll.u32 %v262, 16
      %v501 = vrot.slane %v499, 5
      %v502 = vsel %vm296, %v497, %v501
      %v503 = vshrl.u32 %v262, 16
      %v505 = vrot.slane %v503, 4
      %v506 = vor.u32 %v505, %v501
      %v507 = vrot.slane %v506, 4
      %v509 = vshll.u32 %v286, 16
      %v511 = vrot.slane %v509, 5
      %v512 = vsel %vm296, %v507, %v511
      %v514 = vshrl.u32 %v263, 16
      %v516 = vrot.slane %v514, 4
      %v517 = vshll.u32 %v263, 16
      %v519 = vrot.slane %v517, 5
      %v520 = vor.u32 %v516, %v519
      %v521 = vrot.slane %v520, 4
      %v523 = vshll.u32 %v264, 16
      %v525 = vrot.slane %v523, 5
      %v526 = vsel %vm296, %v521, %v525
      %v527 = vshrl.u32 %v264, 16
      %v529 = vrot.slane %v527, 4
      %v530 = vor.u32 %v529, %v525
      %v531 = vrot.slane %v530, 4
      %v533 = vshll.u32 %v287, 16
      %v535 = vrot.slane %v533, 5
      %v536 = vsel %vm296, %v531, %v535
      %v538 = vshrl.u32 %v265, 16
      %v540 = vrot.slane %v538, 4
      %v541 = vshll.u32 %v265, 16
      %v543 = vrot.slane %v541, 5
      %v544 = vor.u32 %v540, %v543
      %v545 = vrot.slane %v544, 4
      %v547 = vshll.u32 %v266, 16
      %v549 = vrot.slane %v547, 5
      %v550 = vsel %vm296, %v545, %v549
      %v551 = vshrl.u32 %v266, 16
      %v553 = vrot.slane %v551, 4
      %v554 = vor.u32 %v553, %v549
      %v555 = vrot.slane %v554, 4
      %v557 = vshll.u32 %v288, 16
      %v559 = vrot.slane %v557, 5
      %v560 = vsel %vm296, %v555, %v559
      %v562 = vshrl.u32 %v267, 16
      %v564 = vrot.slane %v562, 4
      %v565 = vshll.u32 %v267, 16
      %v567 = vrot.slane %v565, 5
      %v568 = vor.u32 %v564, %v567
      %v569 = vrot.slane %v568, 4
      %v571 = vshll.u32 %v268, 16
      %v573 = vrot.slane %v571, 5
      %v574 = vsel %vm296, %v569, %v573
      %v575 = vshrl.u32 %v268, 16
      %v577 = vrot.slane %v575, 4
      %v578 = vor.u32 %v577, %v573
      %v579 = vrot.slane %v578, 4
      %v581 = vshll.u32 %v289, 16
      %v583 = vrot.slane %v581, 5
      %v584 = vsel %vm296, %v579, %v583
      %v586 = vshrl.u32 %v269, 16
      %v588 = vrot.slane %v586, 4
      %v589 = vshll.u32 %v269, 16
      %v591 = vrot.slane %v589, 5
      %v592 = vor.u32 %v588, %v591
      %v593 = vrot.slane %v592, 4
      %v595 = vshll.u32 %v270, 16
      %v597 = vrot.slane %v595, 5
      %v598 = vsel %vm296, %v593, %v597
      %v599 = vshrl.u32 %v270, 16
      %v601 = vrot.slane %v599, 4
      %v602 = vor.u32 %v601, %v597
      %v603 = vrot.slane %v602, 4
      %v605 = vshll.u32 %v290, 16
      %v607 = vrot.slane %v605, 5
      %v608 = vsel %vm296, %v603, %v607
      %v610 = vshrl.u32 %v271, 16
      %v612 = vrot.slane %v610, 4
      %v613 = vshll.u32 %v271, 16
      %v615 = vrot.slane %v613, 5
      %v616 = vor.u32 %v612, %v615
      %v617 = vrot.slane %v616, 4
      %v619 = vshll.u32 %v272, 16
      %v621 = vrot.slane %v619, 5
      %v622 = vsel %vm296, %v617, %v621
      %v623 = vshrl.u32 %v272, 16
      %v625 = vrot.slane %v623, 4
      %v626 = vor.u32 %v625, %v621
      %v627 = vrot.slane %v626, 4
      %v629 = vshll.u32 %v291, 16
      %v631 = vrot.slane %v629, 5
      %v632 = vsel %vm296, %v627, %v631
      %v634 = vshrl.u32 %v273, 16
      %v636 = vrot.slane %v634, 4
      %v637 = vshll.u32 %v273, 16
      %v639 = vrot.slane %v637, 5
      %v640 = vor.u32 %v636, %v639
      %v641 = vrot.slane %v640, 4
      %v643 = vshll.u32 %v274, 16
      %v645 = vrot.slane %v643, 5
      %v646 = vsel %vm296, %v641, %v645
      %v647 = vshrl.u32 %v274, 16
      %v649 = vrot.slane %v647, 4
      %v650 = vor.u32 %v649, %v645
      %v651 = vrot.slane %v650, 4
      %v653 = vshll.u32 %v292, 16
      %v655 = vrot.slane %v653, 5
      %v656 = vsel %vm296, %v651, %v655
      %v658 = vshrl.u32 %v275, 16
      %v660 = vrot.slane %v658, 4
      %v661 = vshll.u32 %v275, 16
      %v663 = vrot.slane %v661, 5
      %v664 = vor.u32 %v660, %v663
      %v665 = vrot.slane %v664, 4
      %v667 = vshll.u32 %v276, 16
      %v669 = vrot.slane %v667, 5
      %v670 = vsel %vm296, %v665, %v669
      %v671 = vshrl.u32 %v276, 16
      %v673 = vrot.slane %v671, 4
      %v674 = vor.u32 %v673, %v669
      %v675 = vrot.slane %v674, 4
      %v677 = vshll.u32 %v293, 16
      %v679 = vrot.slane %v677, 5
      %v680 = vsel %vm296, %v675, %v679
      %s681 = scalar_lea.vmem %s223, 2
      %v682 = vld [vmem:[%s681] sm:$0x3]
      %v683 = vunpack.c.l.b16 %v310
      %v684 = vunpack.c.l.b16 %v320
      %v685 = vunpack.c.l.b16 %v334
      %v686 = vunpack.c.l.b16 %v344
      %v687 = vunpack.c.l.b16 %v358
      %v688 = vunpack.c.l.b16 %v368
      %v689 = vunpack.c.l.b16 %v382
      %v690 = vunpack.c.l.b16 %v392
      %v691 = vunpack.c.l.b16 %v406
      %v692 = vunpack.c.l.b16 %v416
      %v693 = vunpack.c.l.b16 %v430
      %v694 = vunpack.c.l.b16 %v440
      %v695 = vunpack.c.l.b16 %v454
      %v696 = vunpack.c.l.b16 %v464
      %v697 = vunpack.c.l.b16 %v478
      %v698 = vunpack.c.l.b16 %v488
      %v699 = vunpack.c.l.b16 %v502
      %v700 = vunpack.c.l.b16 %v512
      %v701 = vunpack.c.l.b16 %v526
      %v702 = vunpack.c.l.b16 %v536
      %v703 = vunpack.c.l.b16 %v550
      %v704 = vunpack.c.l.b16 %v560
      %v705 = vunpack.c.l.b16 %v574
      %v706 = vunpack.c.l.b16 %v584
      %v707 = vunpack.c.l.b16 %v598
      %v708 = vunpack.c.l.b16 %v608
      %v709 = vunpack.c.l.b16 %v622
      %v710 = vunpack.c.l.b16 %v632
      %v711 = vunpack.c.l.b16 %v646
      %v712 = vunpack.c.l.b16 %v656
      %v713 = vunpack.c.l.b16 %v670
      %v714 = vunpack.c.l.b16 %v680
      %v715 = vpack.c.b16 %v684, %v683
      %v716 = vpack.c.b16 %v686, %v685
      %v717 = vpack.c.b16 %v688, %v687
      %v718 = vpack.c.b16 %v690, %v689
      %v719 = vpack.c.b16 %v692, %v691
      %v720 = vpack.c.b16 %v694, %v693
      %v721 = vpack.c.b16 %v696, %v695
      %v722 = vpack.c.b16 %v698, %v697
      %v723 = vpack.c.b16 %v700, %v699
      %v724 = vpack.c.b16 %v702, %v701
      %v725 = vpack.c.b16 %v704, %v703
      %v726 = vpack.c.b16 %v706, %v705
      %v727 = vpack.c.b16 %v708, %v707
      %v728 = vpack.c.b16 %v710, %v709
      %v729 = vpack.c.b16 %v712, %v711
      %v730 = vpack.c.b16 %v714, %v713
      %vm731 = vcmask 31744
      %v733 = vsel %vm731, %v715, 0
      %v736 = vsel %vm731, %v716, 0
      %v739 = vsel %vm731, %v717, 0
      %v742 = vsel %vm731, %v718, 0
      %v745 = vsel %vm731, %v719, 0
      %v748 = vsel %vm731, %v720, 0
      %v751 = vsel %vm731, %v721, 0
      %v754 = vsel %vm731, %v722, 0
      %v757 = vsel %vm731, %v723, 0
      %v760 = vsel %vm731, %v724, 0
      %v763 = vsel %vm731, %v725, 0
      %v766 = vsel %vm731, %v726, 0
      %v769 = vsel %vm731, %v727, 0
      %v772 = vsel %vm731, %v728, 0
      %v775 = vsel %vm731, %v729, 0
      %v778 = vsel %vm731, %v730, 0
      %vm780 = vcmask 1041408
      %v782 = vsel %vm780, %v682, 0
      %784 = vmatpush.bf16.msra.mxu0 0
      %785 = vmatpush.bf16.msra.mxu0 0
      %786 = vmatpush.bf16.msra.mxu0 0
      %787 = vmatpush.bf16.msra.mxu0 0
      %788 = vmatpush.bf16.msra.mxu0 0
      %789 = vmatpush.bf16.msra.mxu0 0
      %790 = vmatpush.bf16.msra.mxu0 0
      %791 = vmatpush.bf16.msra.mxu0 %v782
      %792 = vmatmul.bf16.gmra.mxu0 %v733
      %v793 = vpop.f32.mrf.mxu0
      %v794 = vadd.f32 0.0, %v793
      %v795 = vpop.f32.mrf.mxu0
      %v796 = vadd.f32 0.0, %v795
      %797 = vmatmul.bf16.gmra.mxu0 %v736
      %v798 = vpop.f32.mrf.mxu0
      %v799 = vadd.f32 0.0, %v798
      %v800 = vpop.f32.mrf.mxu0
      %v801 = vadd.f32 0.0, %v800
      %802 = vmatmul.bf16.gmra.mxu0 %v739
      %v803 = vpop.f32.mrf.mxu0
      %v804 = vadd.f32 0.0, %v803
      %v805 = vpop.f32.mrf.mxu0
      %v806 = vadd.f32 0.0, %v805
      %807 = vmatmul.bf16.gmra.mxu0 %v742
      %v808 = vpop.f32.mrf.mxu0
      %v809 = vadd.f32 0.0, %v808
      %v810 = vpop.f32.mrf.mxu0
      %v811 = vadd.f32 0.0, %v810
      %812 = vmatmul.bf16.gmra.mxu0 %v745
      %v813 = vpop.f32.mrf.mxu0
      %v814 = vadd.f32 0.0, %v813
      %v815 = vpop.f32.mrf.mxu0
      %v816 = vadd.f32 0.0, %v815
      %817 = vmatmul.bf16.gmra.mxu0 %v748
      %v818 = vpop.f32.mrf.mxu0
      %v819 = vadd.f32 0.0, %v818
      %v820 = vpop.f32.mrf.mxu0
      %v821 = vadd.f32 0.0, %v820
      %822 = vmatmul.bf16.gmra.mxu0 %v751
      %v823 = vpop.f32.mrf.mxu0
      %v824 = vadd.f32 0.0, %v823
      %v825 = vpop.f32.mrf.mxu0
      %v826 = vadd.f32 0.0, %v825
      %827 = vmatmul.bf16.gmra.mxu0 %v754
      %v828 = vpop.f32.mrf.mxu0
      %v829 = vadd.f32 0.0, %v828
      %v830 = vpop.f32.mrf.mxu0
      %v831 = vadd.f32 0.0, %v830
      %832 = vmatmul.bf16.gmra.mxu0 %v757
      %v833 = vpop.f32.mrf.mxu0
      %v834 = vadd.f32 0.0, %v833
      %v835 = vpop.f32.mrf.mxu0
      %v836 = vadd.f32 0.0, %v835
      %837 = vmatmul.bf16.gmra.mxu0 %v760
      %v838 = vpop.f32.mrf.mxu0
      %v839 = vadd.f32 0.0, %v838
      %v840 = vpop.f32.mrf.mxu0
      %v841 = vadd.f32 0.0, %v840
      %842 = vmatmul.bf16.gmra.mxu0 %v763
      %v843 = vpop.f32.mrf.mxu0
      %v844 = vadd.f32 0.0, %v843
      %v845 = vpop.f32.mrf.mxu0
      %v846 = vadd.f32 0.0, %v845
      %847 = vmatmul.bf16.gmra.mxu0 %v766
      %v848 = vpop.f32.mrf.mxu0
      %v849 = vadd.f32 0.0, %v848
      %v850 = vpop.f32.mrf.mxu0
      %v851 = vadd.f32 0.0, %v850
      %852 = vmatmul.bf16.gmra.mxu0 %v769
      %v853 = vpop.f32.mrf.mxu0
      %v854 = vadd.f32 0.0, %v853
      %v855 = vpop.f32.mrf.mxu0
      %v856 = vadd.f32 0.0, %v855
      %857 = vmatmul.bf16.gmra.mxu0 %v772
      %v858 = vpop.f32.mrf.mxu0
      %v859 = vadd.f32 0.0, %v858
      %v860 = vpop.f32.mrf.mxu0
      %v861 = vadd.f32 0.0, %v860
      %862 = vmatmul.bf16.gmra.mxu0 %v775
      %v863 = vpop.f32.mrf.mxu0
      %v864 = vadd.f32 0.0, %v863
      %v865 = vpop.f32.mrf.mxu0
      %v866 = vadd.f32 0.0, %v865
      %867 = vmatmul.bf16.gmra.mxu0 %v778
      %v868 = vpop.f32.mrf.mxu0
      %v869 = vadd.f32 0.0, %v868
      %v870 = vpop.f32.mrf.mxu0
      %v871 = vadd.f32 0.0, %v870
      %872 = vdwg.mxu0
      %v905 = vunpack.c.l.b16 %v245
      %v906 = vunpack.c.l.b16 %v246
      %v907 = vunpack.c.l.b16 %v247
      %v908 = vunpack.c.l.b16 %v248
      %v909 = vunpack.c.l.b16 %v249
      %v910 = vunpack.c.l.b16 %v250
      %v911 = vunpack.c.l.b16 %v251
      %v912 = vunpack.c.l.b16 %v252
      %v913 = vunpack.c.l.b16 %v253
      %v914 = vunpack.c.l.b16 %v254
      %v915 = vunpack.c.l.b16 %v255
      %v916 = vunpack.c.l.b16 %v256
      %v917 = vunpack.c.l.b16 %v257
      %v918 = vunpack.c.l.b16 %v258
      %v919 = vunpack.c.l.b16 %v259
      %v920 = vunpack.c.l.b16 %v260
      %v921 = vunpack.c.l.b16 %v261
      %v922 = vunpack.c.l.b16 %v262
      %v923 = vunpack.c.l.b16 %v263
      %v924 = vunpack.c.l.b16 %v264
      %v925 = vunpack.c.l.b16 %v265
      %v926 = vunpack.c.l.b16 %v266
      %v927 = vunpack.c.l.b16 %v267
      %v928 = vunpack.c.l.b16 %v268
      %v929 = vunpack.c.l.b16 %v269
      %v930 = vunpack.c.l.b16 %v270
      %v931 = vunpack.c.l.b16 %v271
      %v932 = vunpack.c.l.b16 %v272
      %v933 = vunpack.c.l.b16 %v273
      %v934 = vunpack.c.l.b16 %v274
      %v935 = vunpack.c.l.b16 %v275
      %v936 = vunpack.c.l.b16 %v276
      %v937 = vpack.c.b16 %v906, %v905
      %v938 = vpack.c.b16 %v908, %v907
      %v939 = vpack.c.b16 %v910, %v909
      %v940 = vpack.c.b16 %v912, %v911
      %v941 = vpack.c.b16 %v914, %v913
      %v942 = vpack.c.b16 %v916, %v915
      %v943 = vpack.c.b16 %v918, %v917
      %v944 = vpack.c.b16 %v920, %v919
      %v945 = vpack.c.b16 %v922, %v921
      %v946 = vpack.c.b16 %v924, %v923
      %v947 = vpack.c.b16 %v926, %v925
      %v948 = vpack.c.b16 %v928, %v927
      %v949 = vpack.c.b16 %v930, %v929
      %v950 = vpack.c.b16 %v932, %v931
      %v951 = vpack.c.b16 %v934, %v933
      %v952 = vpack.c.b16 %v936, %v935
      %v954 = vsel %vm731, %v937, 0
      %v957 = vsel %vm731, %v938, 0
      %v960 = vsel %vm731, %v939, 0
      %v963 = vsel %vm731, %v940, 0
      %v966 = vsel %vm731, %v941, 0
      %v969 = vsel %vm731, %v942, 0
      %v972 = vsel %vm731, %v943, 0
      %v975 = vsel %vm731, %v944, 0
      %v978 = vsel %vm731, %v945, 0
      %v981 = vsel %vm731, %v946, 0
      %v984 = vsel %vm731, %v947, 0
      %v987 = vsel %vm731, %v948, 0
      %v990 = vsel %vm731, %v949, 0
      %v993 = vsel %vm731, %v950, 0
      %v996 = vsel %vm731, %v951, 0
      %v999 = vsel %vm731, %v952, 0
      %v1002 = vsel %vm780, %v277, 0
      %1004 = vmatpush.bf16.msra.mxu0 0
      %1005 = vmatpush.bf16.msra.mxu0 0
      %1006 = vmatpush.bf16.msra.mxu0 0
      %1007 = vmatpush.bf16.msra.mxu0 0
      %1008 = vmatpush.bf16.msra.mxu0 0
      %1009 = vmatpush.bf16.msra.mxu0 0
      %1010 = vmatpush.bf16.msra.mxu0 0
      %1011 = vmatpush.bf16.msra.mxu0 %v1002
      %1012 = vmatmul.bf16.gmra.mxu0 %v954
      %v1013 = vpop.f32.mrf.mxu0
      %v1014 = vadd.f32 %v794, %v1013
      %v1015 = vpop.f32.mrf.mxu0
      %v1016 = vadd.f32 %v796, %v1015
      %1017 = vmatmul.bf16.gmra.mxu0 %v957
      %v1018 = vpop.f32.mrf.mxu0
      %v1019 = vadd.f32 %v799, %v1018
      %v1020 = vpop.f32.mrf.mxu0
      %v1021 = vadd.f32 %v801, %v1020
      %1022 = vmatmul.bf16.gmra.mxu0 %v960
      %v1023 = vpop.f32.mrf.mxu0
      %v1024 = vadd.f32 %v804, %v1023
      %v1025 = vpop.f32.mrf.mxu0
      %v1026 = vadd.f32 %v806, %v1025
      %1027 = vmatmul.bf16.gmra.mxu0 %v963
      %v1028 = vpop.f32.mrf.mxu0
      %v1029 = vadd.f32 %v809, %v1028
      %v1030 = vpop.f32.mrf.mxu0
      %v1031 = vadd.f32 %v811, %v1030
      %1032 = vmatmul.bf16.gmra.mxu0 %v966
      %v1033 = vpop.f32.mrf.mxu0
      %v1034 = vadd.f32 %v814, %v1033
      %v1035 = vpop.f32.mrf.mxu0
      %v1036 = vadd.f32 %v816, %v1035
      %1037 = vmatmul.bf16.gmra.mxu0 %v969
      %v1038 = vpop.f32.mrf.mxu0
      %v1039 = vadd.f32 %v819, %v1038
      %v1040 = vpop.f32.mrf.mxu0
      %v1041 = vadd.f32 %v821, %v1040
      %1042 = vmatmul.bf16.gmra.mxu0 %v972
      %v1043 = vpop.f32.mrf.mxu0
      %v1044 = vadd.f32 %v824, %v1043
      %v1045 = vpop.f32.mrf.mxu0
      %v1046 = vadd.f32 %v826, %v1045
      %1047 = vmatmul.bf16.gmra.mxu0 %v975
      %v1048 = vpop.f32.mrf.mxu0
      %v1049 = vadd.f32 %v829, %v1048
      %v1050 = vpop.f32.mrf.mxu0
      %v1051 = vadd.f32 %v831, %v1050
      %1052 = vmatmul.bf16.gmra.mxu0 %v978
      %v1053 = vpop.f32.mrf.mxu0
      %v1054 = vadd.f32 %v834, %v1053
      %v1055 = vpop.f32.mrf.mxu0
      %v1056 = vadd.f32 %v836, %v1055
      %1057 = vmatmul.bf16.gmra.mxu0 %v981
      %v1058 = vpop.f32.mrf.mxu0
      %v1059 = vadd.f32 %v839, %v1058
      %v1060 = vpop.f32.mrf.mxu0
      %v1061 = vadd.f32 %v841, %v1060
      %1062 = vmatmul.bf16.gmra.mxu0 %v984
      %v1063 = vpop.f32.mrf.mxu0
      %v1064 = vadd.f32 %v844, %v1063
      %v1065 = vpop.f32.mrf.mxu0
      %v1066 = vadd.f32 %v846, %v1065
      %1067 = vmatmul.bf16.gmra.mxu0 %v987
      %v1068 = vpop.f32.mrf.mxu0
      %v1069 = vadd.f32 %v849, %v1068
      %v1070 = vpop.f32.mrf.mxu0
      %v1071 = vadd.f32 %v851, %v1070
      %1072 = vmatmul.bf16.gmra.mxu0 %v990
      %v1073 = vpop.f32.mrf.mxu0
      %v1074 = vadd.f32 %v854, %v1073
      %v1075 = vpop.f32.mrf.mxu0
      %v1076 = vadd.f32 %v856, %v1075
      %1077 = vmatmul.bf16.gmra.mxu0 %v993
      %v1078 = vpop.f32.mrf.mxu0
      %v1079 = vadd.f32 %v859, %v1078
      %v1080 = vpop.f32.mrf.mxu0
      %v1081 = vadd.f32 %v861, %v1080
      %1082 = vmatmul.bf16.gmra.mxu0 %v996
      %v1083 = vpop.f32.mrf.mxu0
      %v1084 = vadd.f32 %v864, %v1083
      %v1085 = vpop.f32.mrf.mxu0
      %v1086 = vadd.f32 %v866, %v1085
      %1087 = vmatmul.bf16.gmra.mxu0 %v999
      %v1088 = vpop.f32.mrf.mxu0
      %v1089 = vadd.f32 %v869, %v1088
      %v1090 = vpop.f32.mrf.mxu0
      %v1091 = vadd.f32 %v871, %v1090
      %1092 = vdwg.mxu0
      %v1093 = vld [vmem:[%s244] sm:$0xe]
      %v1094 = vld [vmem:[%s244 + $0xc] sm:$0xe]
      %v1095 = vld [vmem:[%s244 + $0x18] sm:$0xe]
      %v1096 = vld [vmem:[%s244 + $0x24] sm:$0xe]
      %v1097 = vld [vmem:[%s244 + $0x30] sm:$0xe]
      %v1098 = vld [vmem:[%s244 + $0x3c] sm:$0xe]
      %v1099 = vld [vmem:[%s244 + $0x48] sm:$0xe]
      %v1100 = vld [vmem:[%s244 + $0x54] sm:$0xe]
      %v1101 = vld [vmem:[%s244 + $0x60] sm:$0xe]
      %v1102 = vld [vmem:[%s244 + $0x6c] sm:$0xe]
      %v1103 = vld [vmem:[%s244 + $0x78] sm:$0xe]
      %v1104 = vld [vmem:[%s244 + $0x84] sm:$0xe]
      %v1105 = vld [vmem:[%s244 + $0x90] sm:$0xe]
      %v1106 = vld [vmem:[%s244 + $0x9c] sm:$0xe]
      %v1107 = vld [vmem:[%s244 + $0xa8] sm:$0xe]
      %v1108 = vld [vmem:[%s244 + $0xb4] sm:$0xe]
      %vm1141 = vcmask 1042432
      %vm1142 = vcmask 1046532
      %vm1143 = vmor %vm1141, %vm1142
      %v1144 = vrot.slane %v1093, 5
      %v1145 = vrot.slane %v1144, 4
      %v1146 = vrot.slane %v246, 5
      %v1147 = vsel %vm1143, %v1145, %v1146
      %v1148 = vrot.slane %v1146, 4
      %v1149 = vrot.slane %v278, 5
      %v1150 = vsel %vm1143, %v1148, %v1149
      %v1151 = vrot.slane %v1094, 5
      %v1152 = vrot.slane %v1151, 4
      %v1153 = vrot.slane %v248, 5
      %v1154 = vsel %vm1143, %v1152, %v1153
      %v1155 = vrot.slane %v1153, 4
      %v1156 = vrot.slane %v279, 5
      %v1157 = vsel %vm1143, %v1155, %v1156
      %v1158 = vrot.slane %v1095, 5
      %v1159 = vrot.slane %v1158, 4
      %v1160 = vrot.slane %v250, 5
      %v1161 = vsel %vm1143, %v1159, %v1160
      %v1162 = vrot.slane %v1160, 4
      %v1163 = vrot.slane %v280, 5
      %v1164 = vsel %vm1143, %v1162, %v1163
      %v1165 = vrot.slane %v1096, 5
      %v1166 = vrot.slane %v1165, 4
      %v1167 = vrot.slane %v252, 5
      %v1168 = vsel %vm1143, %v1166, %v1167
      %v1169 = vrot.slane %v1167, 4
      %v1170 = vrot.slane %v281, 5
      %v1171 = vsel %vm1143, %v1169, %v1170
      %v1172 = vrot.slane %v1097, 5
      %v1173 = vrot.slane %v1172, 4
      %v1174 = vrot.slane %v254, 5
      %v1175 = vsel %vm1143, %v1173, %v1174
      %v1176 = vrot.slane %v1174, 4
      %v1177 = vrot.slane %v282, 5
      %v1178 = vsel %vm1143, %v1176, %v1177
      %v1179 = vrot.slane %v1098, 5
      %v1180 = vrot.slane %v1179, 4
      %v1181 = vrot.slane %v256, 5
      %v1182 = vsel %vm1143, %v1180, %v1181
      %v1183 = vrot.slane %v1181, 4
      %v1184 = vrot.slane %v283, 5
      %v1185 = vsel %vm1143, %v1183, %v1184
      %v1186 = vrot.slane %v1099, 5
      %v1187 = vrot.slane %v1186, 4
      %v1188 = vrot.slane %v258, 5
      %v1189 = vsel %vm1143, %v1187, %v1188
      %v1190 = vrot.slane %v1188, 4
      %v1191 = vrot.slane %v284, 5
      %v1192 = vsel %vm1143, %v1190, %v1191
      %v1193 = vrot.slane %v1100, 5
      %v1194 = vrot.slane %v1193, 4
      %v1195 = vrot.slane %v260, 5
      %v1196 = vsel %vm1143, %v1194, %v1195
      %v1197 = vrot.slane %v1195, 4
      %v1198 = vrot.slane %v285, 5
      %v1199 = vsel %vm1143, %v1197, %v1198
      %v1200 = vrot.slane %v1101, 5
      %v1201 = vrot.slane %v1200, 4
      %v1202 = vrot.slane %v262, 5
      %v1203 = vsel %vm1143, %v1201, %v1202
      %v1204 = vrot.slane %v1202, 4
      %v1205 = vrot.slane %v286, 5
      %v1206 = vsel %vm1143, %v1204, %v1205
      %v1207 = vrot.slane %v1102, 5
      %v1208 = vrot.slane %v1207, 4
      %v1209 = vrot.slane %v264, 5
      %v1210 = vsel %vm1143, %v1208, %v1209
      %v1211 = vrot.slane %v1209, 4
      %v1212 = vrot.slane %v287, 5
      %v1213 = vsel %vm1143, %v1211, %v1212
      %v1214 = vrot.slane %v1103, 5
      %v1215 = vrot.slane %v1214, 4
      %v1216 = vrot.slane %v266, 5
      %v1217 = vsel %vm1143, %v1215, %v1216
      %v1218 = vrot.slane %v1216, 4
      %v1219 = vrot.slane %v288, 5
      %v1220 = vsel %vm1143, %v1218, %v1219
      %v1221 = vrot.slane %v1104, 5
      %v1222 = vrot.slane %v1221, 4
      %v1223 = vrot.slane %v268, 5
      %v1224 = vsel %vm1143, %v1222, %v1223
      %v1225 = vrot.slane %v1223, 4
      %v1226 = vrot.slane %v289, 5
      %v1227 = vsel %vm1143, %v1225, %v1226
      %v1228 = vrot.slane %v1105, 5
      %v1229 = vrot.slane %v1228, 4
      %v1230 = vrot.slane %v270, 5
      %v1231 = vsel %vm1143, %v1229, %v1230
      %v1232 = vrot.slane %v1230, 4
      %v1233 = vrot.slane %v290, 5
      %v1234 = vsel %vm1143, %v1232, %v1233
      %v1235 = vrot.slane %v1106, 5
      %v1236 = vrot.slane %v1235, 4
      %v1237 = vrot.slane %v272, 5
      %v1238 = vsel %vm1143, %v1236, %v1237
      %v1239 = vrot.slane %v1237, 4
      %v1240 = vrot.slane %v291, 5
      %v1241 = vsel %vm1143, %v1239, %v1240
      %v1242 = vrot.slane %v1107, 5
      %v1243 = vrot.slane %v1242, 4
      %v1244 = vrot.slane %v274, 5
      %v1245 = vsel %vm1143, %v1243, %v1244
      %v1246 = vrot.slane %v1244, 4
      %v1247 = vrot.slane %v292, 5
      %v1248 = vsel %vm1143, %v1246, %v1247
      %v1249 = vrot.slane %v1108, 5
      %v1250 = vrot.slane %v1249, 4
      %v1251 = vrot.slane %v276, 5
      %v1252 = vsel %vm1143, %v1250, %v1251
      %v1253 = vrot.slane %v1251, 4
      %v1254 = vrot.slane %v293, 5
      %v1255 = vsel %vm1143, %v1253, %v1254
      %s1256 = scalar_lea.vmem %s223, 4
      %v1257 = vld [vmem:[%s1256] sm:$0x3]
      %v1258 = vunpack.c.l.b16 %v1147
      %v1259 = vunpack.c.l.b16 %v1150
      %v1260 = vunpack.c.l.b16 %v1154
      %v1261 = vunpack.c.l.b16 %v1157
      %v1262 = vunpack.c.l.b16 %v1161
      %v1263 = vunpack.c.l.b16 %v1164
      %v1264 = vunpack.c.l.b16 %v1168
      %v1265 = vunpack.c.l.b16 %v1171
      %v1266 = vunpack.c.l.b16 %v1175
      %v1267 = vunpack.c.l.b16 %v1178
      %v1268 = vunpack.c.l.b16 %v1182
      %v1269 = vunpack.c.l.b16 %v1185
      %v1270 = vunpack.c.l.b16 %v1189
      %v1271 = vunpack.c.l.b16 %v1192
      %v1272 = vunpack.c.l.b16 %v1196
      %v1273 = vunpack.c.l.b16 %v1199
      %v1274 = vunpack.c.l.b16 %v1203
      %v1275 = vunpack.c.l.b16 %v1206
      %v1276 = vunpack.c.l.b16 %v1210
      %v1277 = vunpack.c.l.b16 %v1213
      %v1278 = vunpack.c.l.b16 %v1217
      %v1279 = vunpack.c.l.b16 %v1220
      %v1280 = vunpack.c.l.b16 %v1224
      %v1281 = vunpack.c.l.b16 %v1227
      %v1282 = vunpack.c.l.b16 %v1231
      %v1283 = vunpack.c.l.b16 %v1234
      %v1284 = vunpack.c.l.b16 %v1238
      %v1285 = vunpack.c.l.b16 %v1241
      %v1286 = vunpack.c.l.b16 %v1245
      %v1287 = vunpack.c.l.b16 %v1248
      %v1288 = vunpack.c.l.b16 %v1252
      %v1289 = vunpack.c.l.b16 %v1255
      %v1290 = vpack.c.b16 %v1259, %v1258
      %v1291 = vpack.c.b16 %v1261, %v1260
      %v1292 = vpack.c.b16 %v1263, %v1262
      %v1293 = vpack.c.b16 %v1265, %v1264
      %v1294 = vpack.c.b16 %v1267, %v1266
      %v1295 = vpack.c.b16 %v1269, %v1268
      %v1296 = vpack.c.b16 %v1271, %v1270
      %v1297 = vpack.c.b16 %v1273, %v1272
      %v1298 = vpack.c.b16 %v1275, %v1274
      %v1299 = vpack.c.b16 %v1277, %v1276
      %v1300 = vpack.c.b16 %v1279, %v1278
      %v1301 = vpack.c.b16 %v1281, %v1280
      %v1302 = vpack.c.b16 %v1283, %v1282
      %v1303 = vpack.c.b16 %v1285, %v1284
      %v1304 = vpack.c.b16 %v1287, %v1286
      %v1305 = vpack.c.b16 %v1289, %v1288
      %v1307 = vsel %vm731, %v1290, 0
      %v1310 = vsel %vm731, %v1291, 0
      %v1313 = vsel %vm731, %v1292, 0
      %v1316 = vsel %vm731, %v1293, 0
      %v1319 = vsel %vm731, %v1294, 0
      %v1322 = vsel %vm731, %v1295, 0
      %v1325 = vsel %vm731, %v1296, 0
      %v1328 = vsel %vm731, %v1297, 0
      %v1331 = vsel %vm731, %v1298, 0
      %v1334 = vsel %vm731, %v1299, 0
      %v1337 = vsel %vm731, %v1300, 0
      %v1340 = vsel %vm731, %v1301, 0
      %v1343 = vsel %vm731, %v1302, 0
      %v1346 = vsel %vm731, %v1303, 0
      %v1349 = vsel %vm731, %v1304, 0
      %v1352 = vsel %vm731, %v1305, 0
      %v1355 = vsel %vm780, %v1257, 0
      %1357 = vmatpush.bf16.msra.mxu0 0
      %1358 = vmatpush.bf16.msra.mxu0 0
      %1359 = vmatpush.bf16.msra.mxu0 0
      %1360 = vmatpush.bf16.msra.mxu0 0
      %1361 = vmatpush.bf16.msra.mxu0 0
      %1362 = vmatpush.bf16.msra.mxu0 0
      %1363 = vmatpush.bf16.msra.mxu0 0
      %1364 = vmatpush.bf16.msra.mxu0 %v1355
      %1365 = vmatmul.bf16.gmra.mxu0 %v1307
      %v1366 = vpop.f32.mrf.mxu0
      %v1367 = vadd.f32 0.0, %v1366
      %v1368 = vpop.f32.mrf.mxu0
      %v1369 = vadd.f32 0.0, %v1368
      %1370 = vmatmul.bf16.gmra.mxu0 %v1310
      %v1371 = vpop.f32.mrf.mxu0
      %v1372 = vadd.f32 0.0, %v1371
      %v1373 = vpop.f32.mrf.mxu0
      %v1374 = vadd.f32 0.0, %v1373
      %1375 = vmatmul.bf16.gmra.mxu0 %v1313
      %v1376 = vpop.f32.mrf.mxu0
      %v1377 = vadd.f32 0.0, %v1376
      %v1378 = vpop.f32.mrf.mxu0
      %v1379 = vadd.f32 0.0, %v1378
      %1380 = vmatmul.bf16.gmra.mxu0 %v1316
      %v1381 = vpop.f32.mrf.mxu0
      %v1382 = vadd.f32 0.0, %v1381
      %v1383 = vpop.f32.mrf.mxu0
      %v1384 = vadd.f32 0.0, %v1383
      %1385 = vmatmul.bf16.gmra.mxu0 %v1319
      %v1386 = vpop.f32.mrf.mxu0
      %v1387 = vadd.f32 0.0, %v1386
      %v1388 = vpop.f32.mrf.mxu0
      %v1389 = vadd.f32 0.0, %v1388
      %1390 = vmatmul.bf16.gmra.mxu0 %v1322
      %v1391 = vpop.f32.mrf.mxu0
      %v1392 = vadd.f32 0.0, %v1391
      %v1393 = vpop.f32.mrf.mxu0
      %v1394 = vadd.f32 0.0, %v1393
      %1395 = vmatmul.bf16.gmra.mxu0 %v1325
      %v1396 = vpop.f32.mrf.mxu0
      %v1397 = vadd.f32 0.0, %v1396
      %v1398 = vpop.f32.mrf.mxu0
      %v1399 = vadd.f32 0.0, %v1398
      %1400 = vmatmul.bf16.gmra.mxu0 %v1328
      %v1401 = vpop.f32.mrf.mxu0
      %v1402 = vadd.f32 0.0, %v1401
      %v1403 = vpop.f32.mrf.mxu0
      %v1404 = vadd.f32 0.0, %v1403
      %1405 = vmatmul.bf16.gmra.mxu0 %v1331
      %v1406 = vpop.f32.mrf.mxu0
      %v1407 = vadd.f32 0.0, %v1406
      %v1408 = vpop.f32.mrf.mxu0
      %v1409 = vadd.f32 0.0, %v1408
      %1410 = vmatmul.bf16.gmra.mxu0 %v1334
      %v1411 = vpop.f32.mrf.mxu0
      %v1412 = vadd.f32 0.0, %v1411
      %v1413 = vpop.f32.mrf.mxu0
      %v1414 = vadd.f32 0.0, %v1413
      %1415 = vmatmul.bf16.gmra.mxu0 %v1337
      %v1416 = vpop.f32.mrf.mxu0
      %v1417 = vadd.f32 0.0, %v1416
      %v1418 = vpop.f32.mrf.mxu0
      %v1419 = vadd.f32 0.0, %v1418
      %1420 = vmatmul.bf16.gmra.mxu0 %v1340
      %v1421 = vpop.f32.mrf.mxu0
      %v1422 = vadd.f32 0.0, %v1421
      %v1423 = vpop.f32.mrf.mxu0
      %v1424 = vadd.f32 0.0, %v1423
      %1425 = vmatmul.bf16.gmra.mxu0 %v1343
      %v1426 = vpop.f32.mrf.mxu0
      %v1427 = vadd.f32 0.0, %v1426
      %v1428 = vpop.f32.mrf.mxu0
      %v1429 = vadd.f32 0.0, %v1428
      %1430 = vmatmul.bf16.gmra.mxu0 %v1346
      %v1431 = vpop.f32.mrf.mxu0
      %v1432 = vadd.f32 0.0, %v1431
      %v1433 = vpop.f32.mrf.mxu0
      %v1434 = vadd.f32 0.0, %v1433
      %1435 = vmatmul.bf16.gmra.mxu0 %v1349
      %v1436 = vpop.f32.mrf.mxu0
      %v1437 = vadd.f32 0.0, %v1436
      %v1438 = vpop.f32.mrf.mxu0
      %v1439 = vadd.f32 0.0, %v1438
      %1440 = vmatmul.bf16.gmra.mxu0 %v1352
      %v1441 = vpop.f32.mrf.mxu0
      %v1442 = vadd.f32 0.0, %v1441
      %v1443 = vpop.f32.mrf.mxu0
      %v1444 = vadd.f32 0.0, %v1443
      %1445 = vdwg.mxu0
      %v1446 = vadd.f32 %v1014, %v1367
      %v1447 = vadd.f32 %v1016, %v1369
      %v1448 = vadd.f32 %v1019, %v1372
      %v1449 = vadd.f32 %v1021, %v1374
      %v1450 = vadd.f32 %v1024, %v1377
      %v1451 = vadd.f32 %v1026, %v1379
      %v1452 = vadd.f32 %v1029, %v1382
      %v1453 = vadd.f32 %v1031, %v1384
      %v1454 = vadd.f32 %v1034, %v1387
      %v1455 = vadd.f32 %v1036, %v1389
      %v1456 = vadd.f32 %v1039, %v1392
      %v1457 = vadd.f32 %v1041, %v1394
      %v1458 = vadd.f32 %v1044, %v1397
      %v1459 = vadd.f32 %v1046, %v1399
      %v1460 = vadd.f32 %v1049, %v1402
      %v1461 = vadd.f32 %v1051, %v1404
      %v1462 = vadd.f32 %v1054, %v1407
      %v1463 = vadd.f32 %v1056, %v1409
      %v1464 = vadd.f32 %v1059, %v1412
      %v1465 = vadd.f32 %v1061, %v1414
      %v1466 = vadd.f32 %v1064, %v1417
      %v1467 = vadd.f32 %v1066, %v1419
      %v1468 = vadd.f32 %v1069, %v1422
      %v1469 = vadd.f32 %v1071, %v1424
      %v1470 = vadd.f32 %v1074, %v1427
      %v1471 = vadd.f32 %v1076, %v1429
      %v1472 = vadd.f32 %v1079, %v1432
      %v1473 = vadd.f32 %v1081, %v1434
      %v1474 = vadd.f32 %v1084, %v1437
      %v1475 = vadd.f32 %v1086, %v1439
      %v1476 = vadd.f32 %v1089, %v1442
      %v1477 = vadd.f32 %v1091, %v1444
      %s1478 = sadd.s32 %s241, 1
      %s1479 = smul.u32 %s1478, 3
      %s1480 = smul.addr %s1479, 4
      %s1481 = scalar_lea.vmem %s219, %s1480
      %v1482 = vld [vmem:[%s1481] sm:$0xf]
      %v1483 = vld [vmem:[%s1481 + $0x4] sm:$0xf]
      %v1484 = vld [vmem:[%s1481 + $0xc] sm:$0xf]
      %v1485 = vld [vmem:[%s1481 + $0x10] sm:$0xf]
      %v1486 = vld [vmem:[%s1481 + $0x18] sm:$0xf]
      %v1487 = vld [vmem:[%s1481 + $0x1c] sm:$0xf]
      %v1488 = vld [vmem:[%s1481 + $0x24] sm:$0xf]
      %v1489 = vld [vmem:[%s1481 + $0x28] sm:$0xf]
      %v1490 = vld [vmem:[%s1481 + $0x30] sm:$0xf]
      %v1491 = vld [vmem:[%s1481 + $0x34] sm:$0xf]
      %v1492 = vld [vmem:[%s1481 + $0x3c] sm:$0xf]
      %v1493 = vld [vmem:[%s1481 + $0x40] sm:$0xf]
      %v1494 = vld [vmem:[%s1481 + $0x48] sm:$0xf]
      %v1495 = vld [vmem:[%s1481 + $0x4c] sm:$0xf]
      %v1496 = vld [vmem:[%s1481 + $0x54] sm:$0xf]
      %v1497 = vld [vmem:[%s1481 + $0x58] sm:$0xf]
      %v1498 = vld [vmem:[%s1481 + $0x60] sm:$0xf]
      %v1499 = vld [vmem:[%s1481 + $0x64] sm:$0xf]
      %v1500 = vld [vmem:[%s1481 + $0x6c] sm:$0xf]
      %v1501 = vld [vmem:[%s1481 + $0x70] sm:$0xf]
      %v1502 = vld [vmem:[%s1481 + $0x78] sm:$0xf]
      %v1503 = vld [vmem:[%s1481 + $0x7c] sm:$0xf]
      %v1504 = vld [vmem:[%s1481 + $0x84] sm:$0xf]
      %v1505 = vld [vmem:[%s1481 + $0x88] sm:$0xf]
      %v1506 = vld [vmem:[%s1481 + $0x90] sm:$0xf]
      %v1507 = vld [vmem:[%s1481 + $0x94] sm:$0xf]
      %v1508 = vld [vmem:[%s1481 + $0x9c] sm:$0xf]
      %v1509 = vld [vmem:[%s1481 + $0xa0] sm:$0xf]
      %v1510 = vld [vmem:[%s1481 + $0xa8] sm:$0xf]
      %v1511 = vld [vmem:[%s1481 + $0xac] sm:$0xf]
      %v1512 = vld [vmem:[%s1481 + $0xb4] sm:$0xf]
      %v1513 = vld [vmem:[%s1481 + $0xb8] sm:$0xf]
      %s1514 = scalar_lea.vmem %s223, 6
      %v1515 = vld [vmem:[%s1514] sm:$0x3]
      %v1548 = vunpack.c.l.b16 %v1482
      %v1549 = vunpack.c.l.b16 %v1483
      %v1550 = vunpack.c.l.b16 %v1484
      %v1551 = vunpack.c.l.b16 %v1485
      %v1552 = vunpack.c.l.b16 %v1486
      %v1553 = vunpack.c.l.b16 %v1487
      %v1554 = vunpack.c.l.b16 %v1488
      %v1555 = vunpack.c.l.b16 %v1489
      %v1556 = vunpack.c.l.b16 %v1490
      %v1557 = vunpack.c.l.b16 %v1491
      %v1558 = vunpack.c.l.b16 %v1492
      %v1559 = vunpack.c.l.b16 %v1493
      %v1560 = vunpack.c.l.b16 %v1494
      %v1561 = vunpack.c.l.b16 %v1495
      %v1562 = vunpack.c.l.b16 %v1496
      %v1563 = vunpack.c.l.b16 %v1497
      %v1564 = vunpack.c.l.b16 %v1498
      %v1565 = vunpack.c.l.b16 %v1499
      %v1566 = vunpack.c.l.b16 %v1500
      %v1567 = vunpack.c.l.b16 %v1501
      %v1568 = vunpack.c.l.b16 %v1502
      %v1569 = vunpack.c.l.b16 %v1503
      %v1570 = vunpack.c.l.b16 %v1504
      %v1571 = vunpack.c.l.b16 %v1505
      %v1572 = vunpack.c.l.b16 %v1506
      %v1573 = vunpack.c.l.b16 %v1507
      %v1574 = vunpack.c.l.b16 %v1508
      %v1575 = vunpack.c.l.b16 %v1509
      %v1576 = vunpack.c.l.b16 %v1510
      %v1577 = vunpack.c.l.b16 %v1511
      %v1578 = vunpack.c.l.b16 %v1512
      %v1579 = vunpack.c.l.b16 %v1513
      %v1580 = vpack.c.b16 %v1549, %v1548
      %v1581 = vpack.c.b16 %v1551, %v1550
      %v1582 = vpack.c.b16 %v1553, %v1552
      %v1583 = vpack.c.b16 %v1555, %v1554
      %v1584 = vpack.c.b16 %v1557, %v1556
      %v1585 = vpack.c.b16 %v1559, %v1558
      %v1586 = vpack.c.b16 %v1561, %v1560
      %v1587 = vpack.c.b16 %v1563, %v1562
      %v1588 = vpack.c.b16 %v1565, %v1564
      %v1589 = vpack.c.b16 %v1567, %v1566
      %v1590 = vpack.c.b16 %v1569, %v1568
      %v1591 = vpack.c.b16 %v1571, %v1570
      %v1592 = vpack.c.b16 %v1573, %v1572
      %v1593 = vpack.c.b16 %v1575, %v1574
      %v1594 = vpack.c.b16 %v1577, %v1576
      %v1595 = vpack.c.b16 %v1579, %v1578
      %v1597 = vsel %vm731, %v1580, 0
      %v1600 = vsel %vm731, %v1581, 0
      %v1603 = vsel %vm731, %v1582, 0
      %v1606 = vsel %vm731, %v1583, 0
      %v1609 = vsel %vm731, %v1584, 0
      %v1612 = vsel %vm731, %v1585, 0
      %v1615 = vsel %vm731, %v1586, 0
      %v1618 = vsel %vm731, %v1587, 0
      %v1621 = vsel %vm731, %v1588, 0
      %v1624 = vsel %vm731, %v1589, 0
      %v1627 = vsel %vm731, %v1590, 0
      %v1630 = vsel %vm731, %v1591, 0
      %v1633 = vsel %vm731, %v1592, 0
      %v1636 = vsel %vm731, %v1593, 0
      %v1639 = vsel %vm731, %v1594, 0
      %v1642 = vsel %vm731, %v1595, 0
      %v1645 = vsel %vm780, %v1515, 0
      %1647 = vmatpush.bf16.msra.mxu0 0
      %1648 = vmatpush.bf16.msra.mxu0 0
      %1649 = vmatpush.bf16.msra.mxu0 0
      %1650 = vmatpush.bf16.msra.mxu0 0
      %1651 = vmatpush.bf16.msra.mxu0 0
      %1652 = vmatpush.bf16.msra.mxu0 0
      %1653 = vmatpush.bf16.msra.mxu0 0
      %1654 = vmatpush.bf16.msra.mxu0 %v1645
      %1655 = vmatmul.bf16.gmra.mxu0 %v1597
      %v1656 = vpop.f32.mrf.mxu0
      %v1657 = vadd.f32 0.0, %v1656
      %v1658 = vpop.f32.mrf.mxu0
      %v1659 = vadd.f32 0.0, %v1658
      %1660 = vmatmul.bf16.gmra.mxu0 %v1600
      %v1661 = vpop.f32.mrf.mxu0
      %v1662 = vadd.f32 0.0, %v1661
      %v1663 = vpop.f32.mrf.mxu0
      %v1664 = vadd.f32 0.0, %v1663
      %1665 = vmatmul.bf16.gmra.mxu0 %v1603
      %v1666 = vpop.f32.mrf.mxu0
      %v1667 = vadd.f32 0.0, %v1666
      %v1668 = vpop.f32.mrf.mxu0
      %v1669 = vadd.f32 0.0, %v1668
      %1670 = vmatmul.bf16.gmra.mxu0 %v1606
      %v1671 = vpop.f32.mrf.mxu0
      %v1672 = vadd.f32 0.0, %v1671
      %v1673 = vpop.f32.mrf.mxu0
      %v1674 = vadd.f32 0.0, %v1673
      %1675 = vmatmul.bf16.gmra.mxu0 %v1609
      %v1676 = vpop.f32.mrf.mxu0
      %v1677 = vadd.f32 0.0, %v1676
      %v1678 = vpop.f32.mrf.mxu0
      %v1679 = vadd.f32 0.0, %v1678
      %1680 = vmatmul.bf16.gmra.mxu0 %v1612
      %v1681 = vpop.f32.mrf.mxu0
      %v1682 = vadd.f32 0.0, %v1681
      %v1683 = vpop.f32.mrf.mxu0
      %v1684 = vadd.f32 0.0, %v1683
      %1685 = vmatmul.bf16.gmra.mxu0 %v1615
      %v1686 = vpop.f32.mrf.mxu0
      %v1687 = vadd.f32 0.0, %v1686
      %v1688 = vpop.f32.mrf.mxu0
      %v1689 = vadd.f32 0.0, %v1688
      %1690 = vmatmul.bf16.gmra.mxu0 %v1618
      %v1691 = vpop.f32.mrf.mxu0
      %v1692 = vadd.f32 0.0, %v1691
      %v1693 = vpop.f32.mrf.mxu0
      %v1694 = vadd.f32 0.0, %v1693
      %1695 = vmatmul.bf16.gmra.mxu0 %v1621
      %v1696 = vpop.f32.mrf.mxu0
      %v1697 = vadd.f32 0.0, %v1696
      %v1698 = vpop.f32.mrf.mxu0
      %v1699 = vadd.f32 0.0, %v1698
      %1700 = vmatmul.bf16.gmra.mxu0 %v1624
      %v1701 = vpop.f32.mrf.mxu0
      %v1702 = vadd.f32 0.0, %v1701
      %v1703 = vpop.f32.mrf.mxu0
      %v1704 = vadd.f32 0.0, %v1703
      %1705 = vmatmul.bf16.gmra.mxu0 %v1627
      %v1706 = vpop.f32.mrf.mxu0
      %v1707 = vadd.f32 0.0, %v1706
      %v1708 = vpop.f32.mrf.mxu0
      %v1709 = vadd.f32 0.0, %v1708
      %1710 = vmatmul.bf16.gmra.mxu0 %v1630
      %v1711 = vpop.f32.mrf.mxu0
      %v1712 = vadd.f32 0.0, %v1711
      %v1713 = vpop.f32.mrf.mxu0
      %v1714 = vadd.f32 0.0, %v1713
      %1715 = vmatmul.bf16.gmra.mxu0 %v1633
      %v1716 = vpop.f32.mrf.mxu0
      %v1717 = vadd.f32 0.0, %v1716
      %v1718 = vpop.f32.mrf.mxu0
      %v1719 = vadd.f32 0.0, %v1718
      %1720 = vmatmul.bf16.gmra.mxu0 %v1636
      %v1721 = vpop.f32.mrf.mxu0
      %v1722 = vadd.f32 0.0, %v1721
      %v1723 = vpop.f32.mrf.mxu0
      %v1724 = vadd.f32 0.0, %v1723
      %1725 = vmatmul.bf16.gmra.mxu0 %v1639
      %v1726 = vpop.f32.mrf.mxu0
      %v1727 = vadd.f32 0.0, %v1726
      %v1728 = vpop.f32.mrf.mxu0
      %v1729 = vadd.f32 0.0, %v1728
      %1730 = vmatmul.bf16.gmra.mxu0 %v1642
      %v1731 = vpop.f32.mrf.mxu0
      %v1732 = vadd.f32 0.0, %v1731
      %v1733 = vpop.f32.mrf.mxu0
      %v1734 = vadd.f32 0.0, %v1733
      %1735 = vdwg.mxu0
      %v1736 = vadd.f32 %v1446, %v1657
      %v1737 = vadd.f32 %v1447, %v1659
      %v1738 = vadd.f32 %v1448, %v1662
      %v1739 = vadd.f32 %v1449, %v1664
      %v1740 = vadd.f32 %v1450, %v1667
      %v1741 = vadd.f32 %v1451, %v1669
      %v1742 = vadd.f32 %v1452, %v1672
      %v1743 = vadd.f32 %v1453, %v1674
      %v1744 = vadd.f32 %v1454, %v1677
      %v1745 = vadd.f32 %v1455, %v1679
      %v1746 = vadd.f32 %v1456, %v1682
      %v1747 = vadd.f32 %v1457, %v1684
      %v1748 = vadd.f32 %v1458, %v1687
      %v1749 = vadd.f32 %v1459, %v1689
      %v1750 = vadd.f32 %v1460, %v1692
      %v1751 = vadd.f32 %v1461, %v1694
      %v1752 = vadd.f32 %v1462, %v1697
      %v1753 = vadd.f32 %v1463, %v1699
      %v1754 = vadd.f32 %v1464, %v1702
      %v1755 = vadd.f32 %v1465, %v1704
      %v1756 = vadd.f32 %v1466, %v1707
      %v1757 = vadd.f32 %v1467, %v1709
      %v1758 = vadd.f32 %v1468, %v1712
      %v1759 = vadd.f32 %v1469, %v1714
      %v1760 = vadd.f32 %v1470, %v1717
      %v1761 = vadd.f32 %v1471, %v1719
      %v1762 = vadd.f32 %v1472, %v1722
      %v1763 = vadd.f32 %v1473, %v1724
      %v1764 = vadd.f32 %v1474, %v1727
      %v1765 = vadd.f32 %v1475, %v1729
      %v1766 = vadd.f32 %v1476, %v1732
      %v1767 = vadd.f32 %v1477, %v1734
      %v1768 = vld [vmem:[%s1481] sm:$0xf]
      %v1769 = vld [vmem:[%s1481 + $0x4] sm:$0xf]
      %v1770 = vld [vmem:[%s1481 + $0x8] sm:$0x1]
      %v1771 = vld [vmem:[%s1481 + $0xc] sm:$0xf]
      %v1772 = vld [vmem:[%s1481 + $0x10] sm:$0xf]
      %v1773 = vld [vmem:[%s1481 + $0x14] sm:$0x1]
      %v1774 = vld [vmem:[%s1481 + $0x18] sm:$0xf]
      %v1775 = vld [vmem:[%s1481 + $0x1c] sm:$0xf]
      %v1776 = vld [vmem:[%s1481 + $0x20] sm:$0x1]
      %v1777 = vld [vmem:[%s1481 + $0x24] sm:$0xf]
      %v1778 = vld [vmem:[%s1481 + $0x28] sm:$0xf]
      %v1779 = vld [vmem:[%s1481 + $0x2c] sm:$0x1]
      %v1780 = vld [vmem:[%s1481 + $0x30] sm:$0xf]
      %v1781 = vld [vmem:[%s1481 + $0x34] sm:$0xf]
      %v1782 = vld [vmem:[%s1481 + $0x38] sm:$0x1]
      %v1783 = vld [vmem:[%s1481 + $0x3c] sm:$0xf]
      %v1784 = vld [vmem:[%s1481 + $0x40] sm:$0xf]
      %v1785 = vld [vmem:[%s1481 + $0x44] sm:$0x1]
      %v1786 = vld [vmem:[%s1481 + $0x48] sm:$0xf]
      %v1787 = vld [vmem:[%s1481 + $0x4c] sm:$0xf]
      %v1788 = vld [vmem:[%s1481 + $0x50] sm:$0x1]
      %v1789 = vld [vmem:[%s1481 + $0x54] sm:$0xf]
      %v1790 = vld [vmem:[%s1481 + $0x58] sm:$0xf]
      %v1791 = vld [vmem:[%s1481 + $0x5c] sm:$0x1]
      %v1792 = vld [vmem:[%s1481 + $0x60] sm:$0xf]
      %v1793 = vld [vmem:[%s1481 + $0x64] sm:$0xf]
      %v1794 = vld [vmem:[%s1481 + $0x68] sm:$0x1]
      %v1795 = vld [vmem:[%s1481 + $0x6c] sm:$0xf]
      %v1796 = vld [vmem:[%s1481 + $0x70] sm:$0xf]
      %v1797 = vld [vmem:[%s1481 + $0x74] sm:$0x1]
      %v1798 = vld [vmem:[%s1481 + $0x78] sm:$0xf]
      %v1799 = vld [vmem:[%s1481 + $0x7c] sm:$0xf]
      %v1800 = vld [vmem:[%s1481 + $0x80] sm:$0x1]
      %v1801 = vld [vmem:[%s1481 + $0x84] sm:$0xf]
      %v1802 = vld [vmem:[%s1481 + $0x88] sm:$0xf]
      %v1803 = vld [vmem:[%s1481 + $0x8c] sm:$0x1]
      %v1804 = vld [vmem:[%s1481 + $0x90] sm:$0xf]
      %v1805 = vld [vmem:[%s1481 + $0x94] sm:$0xf]
      %v1806 = vld [vmem:[%s1481 + $0x98] sm:$0x1]
      %v1807 = vld [vmem:[%s1481 + $0x9c] sm:$0xf]
      %v1808 = vld [vmem:[%s1481 + $0xa0] sm:$0xf]
      %v1809 = vld [vmem:[%s1481 + $0xa4] sm:$0x1]
      %v1810 = vld [vmem:[%s1481 + $0xa8] sm:$0xf]
      %v1811 = vld [vmem:[%s1481 + $0xac] sm:$0xf]
      %v1812 = vld [vmem:[%s1481 + $0xb0] sm:$0x1]
      %v1813 = vld [vmem:[%s1481 + $0xb4] sm:$0xf]
      %v1814 = vld [vmem:[%s1481 + $0xb8] sm:$0xf]
      %v1815 = vld [vmem:[%s1481 + $0xbc] sm:$0x1]
      %v1817 = vshrl.u32 %v1768, 16
      %v1819 = vrot.slane %v1817, 4
      %v1820 = vshll.u32 %v1768, 16
      %v1822 = vrot.slane %v1820, 5
      %v1823 = vor.u32 %v1819, %v1822
      %v1824 = vrot.slane %v1823, 4
      %v1826 = vshll.u32 %v1769, 16
      %v1828 = vrot.slane %v1826, 5
      %v1829 = vsel %vm296, %v1824, %v1828
      %v1830 = vshrl.u32 %v1769, 16
      %v1832 = vrot.slane %v1830, 4
      %v1833 = vor.u32 %v1832, %v1828
      %v1834 = vrot.slane %v1833, 4
      %v1836 = vshll.u32 %v1770, 16
      %v1838 = vrot.slane %v1836, 5
      %v1839 = vsel %vm296, %v1834, %v1838
      %v1841 = vshrl.u32 %v1771, 16
      %v1843 = vrot.slane %v1841, 4
      %v1844 = vshll.u32 %v1771, 16
      %v1846 = vrot.slane %v1844, 5
      %v1847 = vor.u32 %v1843, %v1846
      %v1848 = vrot.slane %v1847, 4
      %v1850 = vshll.u32 %v1772, 16
      %v1852 = vrot.slane %v1850, 5
      %v1853 = vsel %vm296, %v1848, %v1852
      %v1854 = vshrl.u32 %v1772, 16
      %v1856 = vrot.slane %v1854, 4
      %v1857 = vor.u32 %v1856, %v1852
      %v1858 = vrot.slane %v1857, 4
      %v1860 = vshll.u32 %v1773, 16
      %v1862 = vrot.slane %v1860, 5
      %v1863 = vsel %vm296, %v1858, %v1862
      %v1865 = vshrl.u32 %v1774, 16
      %v1867 = vrot.slane %v1865, 4
      %v1868 = vshll.u32 %v1774, 16
      %v1870 = vrot.slane %v1868, 5
      %v1871 = vor.u32 %v1867, %v1870
      %v1872 = vrot.slane %v1871, 4
      %v1874 = vshll.u32 %v1775, 16
      %v1876 = vrot.slane %v1874, 5
      %v1877 = vsel %vm296, %v1872, %v1876
      %v1878 = vshrl.u32 %v1775, 16
      %v1880 = vrot.slane %v1878, 4
      %v1881 = vor.u32 %v1880, %v1876
      %v1882 = vrot.slane %v1881, 4
      %v1884 = vshll.u32 %v1776, 16
      %v1886 = vrot.slane %v1884, 5
      %v1887 = vsel %vm296, %v1882, %v1886
      %v1889 = vshrl.u32 %v1777, 16
      %v1891 = vrot.slane %v1889, 4
      %v1892 = vshll.u32 %v1777, 16
      %v1894 = vrot.slane %v1892, 5
      %v1895 = vor.u32 %v1891, %v1894
      %v1896 = vrot.slane %v1895, 4
      %v1898 = vshll.u32 %v1778, 16
      %v1900 = vrot.slane %v1898, 5
      %v1901 = vsel %vm296, %v1896, %v1900
      %v1902 = vshrl.u32 %v1778, 16
      %v1904 = vrot.slane %v1902, 4
      %v1905 = vor.u32 %v1904, %v1900
      %v1906 = vrot.slane %v1905, 4
      %v1908 = vshll.u32 %v1779, 16
      %v1910 = vrot.slane %v1908, 5
      %v1911 = vsel %vm296, %v1906, %v1910
      %v1913 = vshrl.u32 %v1780, 16
      %v1915 = vrot.slane %v1913, 4
      %v1916 = vshll.u32 %v1780, 16
      %v1918 = vrot.slane %v1916, 5
      %v1919 = vor.u32 %v1915, %v1918
      %v1920 = vrot.slane %v1919, 4
      %v1922 = vshll.u32 %v1781, 16
      %v1924 = vrot.slane %v1922, 5
      %v1925 = vsel %vm296, %v1920, %v1924
      %v1926 = vshrl.u32 %v1781, 16
      %v1928 = vrot.slane %v1926, 4
      %v1929 = vor.u32 %v1928, %v1924
      %v1930 = vrot.slane %v1929, 4
      %v1932 = vshll.u32 %v1782, 16
      %v1934 = vrot.slane %v1932, 5
      %v1935 = vsel %vm296, %v1930, %v1934
      %v1937 = vshrl.u32 %v1783, 16
      %v1939 = vrot.slane %v1937, 4
      %v1940 = vshll.u32 %v1783, 16
      %v1942 = vrot.slane %v1940, 5
      %v1943 = vor.u32 %v1939, %v1942
      %v1944 = vrot.slane %v1943, 4
      %v1946 = vshll.u32 %v1784, 16
      %v1948 = vrot.slane %v1946, 5
      %v1949 = vsel %vm296, %v1944, %v1948
      %v1950 = vshrl.u32 %v1784, 16
      %v1952 = vrot.slane %v1950, 4
      %v1953 = vor.u32 %v1952, %v1948
      %v1954 = vrot.slane %v1953, 4
      %v1956 = vshll.u32 %v1785, 16
      %v1958 = vrot.slane %v1956, 5
      %v1959 = vsel %vm296, %v1954, %v1958
      %v1961 = vshrl.u32 %v1786, 16
      %v1963 = vrot.slane %v1961, 4
      %v1964 = vshll.u32 %v1786, 16
      %v1966 = vrot.slane %v1964, 5
      %v1967 = vor.u32 %v1963, %v1966
      %v1968 = vrot.slane %v1967, 4
      %v1970 = vshll.u32 %v1787, 16
      %v1972 = vrot.slane %v1970, 5
      %v1973 = vsel %vm296, %v1968, %v1972
      %v1974 = vshrl.u32 %v1787, 16
      %v1976 = vrot.slane %v1974, 4
      %v1977 = vor.u32 %v1976, %v1972
      %v1978 = vrot.slane %v1977, 4
      %v1980 = vshll.u32 %v1788, 16
      %v1982 = vrot.slane %v1980, 5
      %v1983 = vsel %vm296, %v1978, %v1982
      %v1985 = vshrl.u32 %v1789, 16
      %v1987 = vrot.slane %v1985, 4
      %v1988 = vshll.u32 %v1789, 16
      %v1990 = vrot.slane %v1988, 5
      %v1991 = vor.u32 %v1987, %v1990
      %v1992 = vrot.slane %v1991, 4
      %v1994 = vshll.u32 %v1790, 16
      %v1996 = vrot.slane %v1994, 5
      %v1997 = vsel %vm296, %v1992, %v1996
      %v1998 = vshrl.u32 %v1790, 16
      %v2000 = vrot.slane %v1998, 4
      %v2001 = vor.u32 %v2000, %v1996
      %v2002 = vrot.slane %v2001, 4
      %v2004 = vshll.u32 %v1791, 16
      %v2006 = vrot.slane %v2004, 5
      %v2007 = vsel %vm296, %v2002, %v2006
      %v2009 = vshrl.u32 %v1792, 16
      %v2011 = vrot.slane %v2009, 4
      %v2012 = vshll.u32 %v1792, 16
      %v2014 = vrot.slane %v2012, 5
      %v2015 = vor.u32 %v2011, %v2014
      %v2016 = vrot.slane %v2015, 4
      %v2018 = vshll.u32 %v1793, 16
      %v2020 = vrot.slane %v2018, 5
      %v2021 = vsel %vm296, %v2016, %v2020
      %v2022 = vshrl.u32 %v1793, 16
      %v2024 = vrot.slane %v2022, 4
      %v2025 = vor.u32 %v2024, %v2020
      %v2026 = vrot.slane %v2025, 4
      %v2028 = vshll.u32 %v1794, 16
      %v2030 = vrot.slane %v2028, 5
      %v2031 = vsel %vm296, %v2026, %v2030
      %v2033 = vshrl.u32 %v1795, 16
      %v2035 = vrot.slane %v2033, 4
      %v2036 = vshll.u32 %v1795, 16
      %v2038 = vrot.slane %v2036, 5
      %v2039 = vor.u32 %v2035, %v2038
      %v2040 = vrot.slane %v2039, 4
      %v2042 = vshll.u32 %v1796, 16
      %v2044 = vrot.slane %v2042, 5
      %v2045 = vsel %vm296, %v2040, %v2044
      %v2046 = vshrl.u32 %v1796, 16
      %v2048 = vrot.slane %v2046, 4
      %v2049 = vor.u32 %v2048, %v2044
      %v2050 = vrot.slane %v2049, 4
      %v2052 = vshll.u32 %v1797, 16
      %v2054 = vrot.slane %v2052, 5
      %v2055 = vsel %vm296, %v2050, %v2054
      %v2057 = vshrl.u32 %v1798, 16
      %v2059 = vrot.slane %v2057, 4
      %v2060 = vshll.u32 %v1798, 16
      %v2062 = vrot.slane %v2060, 5
      %v2063 = vor.u32 %v2059, %v2062
      %v2064 = vrot.slane %v2063, 4
      %v2066 = vshll.u32 %v1799, 16
      %v2068 = vrot.slane %v2066, 5
      %v2069 = vsel %vm296, %v2064, %v2068
      %v2070 = vshrl.u32 %v1799, 16
      %v2072 = vrot.slane %v2070, 4
      %v2073 = vor.u32 %v2072, %v2068
      %v2074 = vrot.slane %v2073, 4
      %v2076 = vshll.u32 %v1800, 16
      %v2078 = vrot.slane %v2076, 5
      %v2079 = vsel %vm296, %v2074, %v2078
      %v2081 = vshrl.u32 %v1801, 16
      %v2083 = vrot.slane %v2081, 4
      %v2084 = vshll.u32 %v1801, 16
      %v2086 = vrot.slane %v2084, 5
      %v2087 = vor.u32 %v2083, %v2086
      %v2088 = vrot.slane %v2087, 4
      %v2090 = vshll.u32 %v1802, 16
      %v2092 = vrot.slane %v2090, 5
      %v2093 = vsel %vm296, %v2088, %v2092
      %v2094 = vshrl.u32 %v1802, 16
      %v2096 = vrot.slane %v2094, 4
      %v2097 = vor.u32 %v2096, %v2092
      %v2098 = vrot.slane %v2097, 4
      %v2100 = vshll.u32 %v1803, 16
      %v2102 = vrot.slane %v2100, 5
      %v2103 = vsel %vm296, %v2098, %v2102
      %v2105 = vshrl.u32 %v1804, 16
      %v2107 = vrot.slane %v2105, 4
      %v2108 = vshll.u32 %v1804, 16
      %v2110 = vrot.slane %v2108, 5
      %v2111 = vor.u32 %v2107, %v2110
      %v2112 = vrot.slane %v2111, 4
      %v2114 = vshll.u32 %v1805, 16
      %v2116 = vrot.slane %v2114, 5
      %v2117 = vsel %vm296, %v2112, %v2116
      %v2118 = vshrl.u32 %v1805, 16
      %v2120 = vrot.slane %v2118, 4
      %v2121 = vor.u32 %v2120, %v2116
      %v2122 = vrot.slane %v2121, 4
      %v2124 = vshll.u32 %v1806, 16
      %v2126 = vrot.slane %v2124, 5
      %v2127 = vsel %vm296, %v2122, %v2126
      %v2129 = vshrl.u32 %v1807, 16
      %v2131 = vrot.slane %v2129, 4
      %v2132 = vshll.u32 %v1807, 16
      %v2134 = vrot.slane %v2132, 5
      %v2135 = vor.u32 %v2131, %v2134
      %v2136 = vrot.slane %v2135, 4
      %v2138 = vshll.u32 %v1808, 16
      %v2140 = vrot.slane %v2138, 5
      %v2141 = vsel %vm296, %v2136, %v2140
      %v2142 = vshrl.u32 %v1808, 16
      %v2144 = vrot.slane %v2142, 4
      %v2145 = vor.u32 %v2144, %v2140
      %v2146 = vrot.slane %v2145, 4
      %v2148 = vshll.u32 %v1809, 16
      %v2150 = vrot.slane %v2148, 5
      %v2151 = vsel %vm296, %v2146, %v2150
      %v2153 = vshrl.u32 %v1810, 16
      %v2155 = vrot.slane %v2153, 4
      %v2156 = vshll.u32 %v1810, 16
      %v2158 = vrot.slane %v2156, 5
      %v2159 = vor.u32 %v2155, %v2158
      %v2160 = vrot.slane %v2159, 4
      %v2162 = vshll.u32 %v1811, 16
      %v2164 = vrot.slane %v2162, 5
      %v2165 = vsel %vm296, %v2160, %v2164
      %v2166 = vshrl.u32 %v1811, 16
      %v2168 = vrot.slane %v2166, 4
      %v2169 = vor.u32 %v2168, %v2164
      %v2170 = vrot.slane %v2169, 4
      %v2172 = vshll.u32 %v1812, 16
      %v2174 = vrot.slane %v2172, 5
      %v2175 = vsel %vm296, %v2170, %v2174
      %v2177 = vshrl.u32 %v1813, 16
      %v2179 = vrot.slane %v2177, 4
      %v2180 = vshll.u32 %v1813, 16
      %v2182 = vrot.slane %v2180, 5
      %v2183 = vor.u32 %v2179, %v2182
      %v2184 = vrot.slane %v2183, 4
      %v2186 = vshll.u32 %v1814, 16
      %v2188 = vrot.slane %v2186, 5
      %v2189 = vsel %vm296, %v2184, %v2188
      %v2190 = vshrl.u32 %v1814, 16
      %v2192 = vrot.slane %v2190, 4
      %v2193 = vor.u32 %v2192, %v2188
      %v2194 = vrot.slane %v2193, 4
      %v2196 = vshll.u32 %v1815, 16
      %v2198 = vrot.slane %v2196, 5
      %v2199 = vsel %vm296, %v2194, %v2198
      %s2200 = scalar_lea.vmem %s223, 8
      %v2201 = vld [vmem:[%s2200] sm:$0x3]
      %v2202 = vunpack.c.l.b16 %v1829
      %v2203 = vunpack.c.l.b16 %v1839
      %v2204 = vunpack.c.l.b16 %v1853
      %v2205 = vunpack.c.l.b16 %v1863
      %v2206 = vunpack.c.l.b16 %v1877
      %v2207 = vunpack.c.l.b16 %v1887
      %v2208 = vunpack.c.l.b16 %v1901
      %v2209 = vunpack.c.l.b16 %v1911
      %v2210 = vunpack.c.l.b16 %v1925
      %v2211 = vunpack.c.l.b16 %v1935
      %v2212 = vunpack.c.l.b16 %v1949
      %v2213 = vunpack.c.l.b16 %v1959
      %v2214 = vunpack.c.l.b16 %v1973
      %v2215 = vunpack.c.l.b16 %v1983
      %v2216 = vunpack.c.l.b16 %v1997
      %v2217 = vunpack.c.l.b16 %v2007
      %v2218 = vunpack.c.l.b16 %v2021
      %v2219 = vunpack.c.l.b16 %v2031
      %v2220 = vunpack.c.l.b16 %v2045
      %v2221 = vunpack.c.l.b16 %v2055
      %v2222 = vunpack.c.l.b16 %v2069
      %v2223 = vunpack.c.l.b16 %v2079
      %v2224 = vunpack.c.l.b16 %v2093
      %v2225 = vunpack.c.l.b16 %v2103
      %v2226 = vunpack.c.l.b16 %v2117
      %v2227 = vunpack.c.l.b16 %v2127
      %v2228 = vunpack.c.l.b16 %v2141
      %v2229 = vunpack.c.l.b16 %v2151
      %v2230 = vunpack.c.l.b16 %v2165
      %v2231 = vunpack.c.l.b16 %v2175
      %v2232 = vunpack.c.l.b16 %v2189
      %v2233 = vunpack.c.l.b16 %v2199
      %v2234 = vpack.c.b16 %v2203, %v2202
      %v2235 = vpack.c.b16 %v2205, %v2204
      %v2236 = vpack.c.b16 %v2207, %v2206
      %v2237 = vpack.c.b16 %v2209, %v2208
      %v2238 = vpack.c.b16 %v2211, %v2210
      %v2239 = vpack.c.b16 %v2213, %v2212
      %v2240 = vpack.c.b16 %v2215, %v2214
      %v2241 = vpack.c.b16 %v2217, %v2216
      %v2242 = vpack.c.b16 %v2219, %v2218
      %v2243 = vpack.c.b16 %v2221, %v2220
      %v2244 = vpack.c.b16 %v2223, %v2222
      %v2245 = vpack.c.b16 %v2225, %v2224
      %v2246 = vpack.c.b16 %v2227, %v2226
      %v2247 = vpack.c.b16 %v2229, %v2228
      %v2248 = vpack.c.b16 %v2231, %v2230
      %v2249 = vpack.c.b16 %v2233, %v2232
      %v2251 = vsel %vm731, %v2234, 0
      %v2254 = vsel %vm731, %v2235, 0
      %v2257 = vsel %vm731, %v2236, 0
      %v2260 = vsel %vm731, %v2237, 0
      %v2263 = vsel %vm731, %v2238, 0
      %v2266 = vsel %vm731, %v2239, 0
      %v2269 = vsel %vm731, %v2240, 0
      %v2272 = vsel %vm731, %v2241, 0
      %v2275 = vsel %vm731, %v2242, 0
      %v2278 = vsel %vm731, %v2243, 0
      %v2281 = vsel %vm731, %v2244, 0
      %v2284 = vsel %vm731, %v2245, 0
      %v2287 = vsel %vm731, %v2246, 0
      %v2290 = vsel %vm731, %v2247, 0
      %v2293 = vsel %vm731, %v2248, 0
      %v2296 = vsel %vm731, %v2249, 0
      %v2299 = vsel %vm780, %v2201, 0
      %2301 = vmatpush.bf16.msra.mxu0 0
      %2302 = vmatpush.bf16.msra.mxu0 0
      %2303 = vmatpush.bf16.msra.mxu0 0
      %2304 = vmatpush.bf16.msra.mxu0 0
      %2305 = vmatpush.bf16.msra.mxu0 0
      %2306 = vmatpush.bf16.msra.mxu0 0
      %2307 = vmatpush.bf16.msra.mxu0 0
      %2308 = vmatpush.bf16.msra.mxu0 %v2299
      %2309 = vmatmul.bf16.gmra.mxu0 %v2251
      %v2310 = vpop.f32.mrf.mxu0
      %v2311 = vadd.f32 0.0, %v2310
      %v2312 = vpop.f32.mrf.mxu0
      %v2313 = vadd.f32 0.0, %v2312
      %2314 = vmatmul.bf16.gmra.mxu0 %v2254
      %v2315 = vpop.f32.mrf.mxu0
      %v2316 = vadd.f32 0.0, %v2315
      %v2317 = vpop.f32.mrf.mxu0
      %v2318 = vadd.f32 0.0, %v2317
      %2319 = vmatmul.bf16.gmra.mxu0 %v2257
      %v2320 = vpop.f32.mrf.mxu0
      %v2321 = vadd.f32 0.0, %v2320
      %v2322 = vpop.f32.mrf.mxu0
      %v2323 = vadd.f32 0.0, %v2322
      %2324 = vmatmul.bf16.gmra.mxu0 %v2260
      %v2325 = vpop.f32.mrf.mxu0
      %v2326 = vadd.f32 0.0, %v2325
      %v2327 = vpop.f32.mrf.mxu0
      %v2328 = vadd.f32 0.0, %v2327
      %2329 = vmatmul.bf16.gmra.mxu0 %v2263
      %v2330 = vpop.f32.mrf.mxu0
      %v2331 = vadd.f32 0.0, %v2330
      %v2332 = vpop.f32.mrf.mxu0
      %v2333 = vadd.f32 0.0, %v2332
      %2334 = vmatmul.bf16.gmra.mxu0 %v2266
      %v2335 = vpop.f32.mrf.mxu0
      %v2336 = vadd.f32 0.0, %v2335
      %v2337 = vpop.f32.mrf.mxu0
      %v2338 = vadd.f32 0.0, %v2337
      %2339 = vmatmul.bf16.gmra.mxu0 %v2269
      %v2340 = vpop.f32.mrf.mxu0
      %v2341 = vadd.f32 0.0, %v2340
      %v2342 = vpop.f32.mrf.mxu0
      %v2343 = vadd.f32 0.0, %v2342
      %2344 = vmatmul.bf16.gmra.mxu0 %v2272
      %v2345 = vpop.f32.mrf.mxu0
      %v2346 = vadd.f32 0.0, %v2345
      %v2347 = vpop.f32.mrf.mxu0
      %v2348 = vadd.f32 0.0, %v2347
      %2349 = vmatmul.bf16.gmra.mxu0 %v2275
      %v2350 = vpop.f32.mrf.mxu0
      %v2351 = vadd.f32 0.0, %v2350
      %v2352 = vpop.f32.mrf.mxu0
      %v2353 = vadd.f32 0.0, %v2352
      %2354 = vmatmul.bf16.gmra.mxu0 %v2278
      %v2355 = vpop.f32.mrf.mxu0
      %v2356 = vadd.f32 0.0, %v2355
      %v2357 = vpop.f32.mrf.mxu0
      %v2358 = vadd.f32 0.0, %v2357
      %2359 = vmatmul.bf16.gmra.mxu0 %v2281
      %v2360 = vpop.f32.mrf.mxu0
      %v2361 = vadd.f32 0.0, %v2360
      %v2362 = vpop.f32.mrf.mxu0
      %v2363 = vadd.f32 0.0, %v2362
      %2364 = vmatmul.bf16.gmra.mxu0 %v2284
      %v2365 = vpop.f32.mrf.mxu0
      %v2366 = vadd.f32 0.0, %v2365
      %v2367 = vpop.f32.mrf.mxu0
      %v2368 = vadd.f32 0.0, %v2367
      %2369 = vmatmul.bf16.gmra.mxu0 %v2287
      %v2370 = vpop.f32.mrf.mxu0
      %v2371 = vadd.f32 0.0, %v2370
      %v2372 = vpop.f32.mrf.mxu0
      %v2373 = vadd.f32 0.0, %v2372
      %2374 = vmatmul.bf16.gmra.mxu0 %v2290
      %v2375 = vpop.f32.mrf.mxu0
      %v2376 = vadd.f32 0.0, %v2375
      %v2377 = vpop.f32.mrf.mxu0
      %v2378 = vadd.f32 0.0, %v2377
      %2379 = vmatmul.bf16.gmra.mxu0 %v2293
      %v2380 = vpop.f32.mrf.mxu0
      %v2381 = vadd.f32 0.0, %v2380
      %v2382 = vpop.f32.mrf.mxu0
      %v2383 = vadd.f32 0.0, %v2382
      %2384 = vmatmul.bf16.gmra.mxu0 %v2296
      %v2385 = vpop.f32.mrf.mxu0
      %v2386 = vadd.f32 0.0, %v2385
      %v2387 = vpop.f32.mrf.mxu0
      %v2388 = vadd.f32 0.0, %v2387
      %2389 = vdwg.mxu0
      %v2390 = vadd.f32 %v1736, %v2311
      %v2391 = vadd.f32 %v1737, %v2313
      %v2392 = vadd.f32 %v1738, %v2316
      %v2393 = vadd.f32 %v1739, %v2318
      %v2394 = vadd.f32 %v1740, %v2321
      %v2395 = vadd.f32 %v1741, %v2323
      %v2396 = vadd.f32 %v1742, %v2326
      %v2397 = vadd.f32 %v1743, %v2328
      %v2398 = vadd.f32 %v1744, %v2331
      %v2399 = vadd.f32 %v1745, %v2333
      %v2400 = vadd.f32 %v1746, %v2336
      %v2401 = vadd.f32 %v1747, %v2338
      %v2402 = vadd.f32 %v1748, %v2341
      %v2403 = vadd.f32 %v1749, %v2343
      %v2404 = vadd.f32 %v1750, %v2346
      %v2405 = vadd.f32 %v1751, %v2348
      %v2406 = vadd.f32 %v1752, %v2351
      %v2407 = vadd.f32 %v1753, %v2353
      %v2408 = vadd.f32 %v1754, %v2356
      %v2409 = vadd.f32 %v1755, %v2358
      %v2410 = vadd.f32 %v1756, %v2361
      %v2411 = vadd.f32 %v1757, %v2363
      %v2412 = vadd.f32 %v1758, %v2366
      %v2413 = vadd.f32 %v1759, %v2368
      %v2414 = vadd.f32 %v1760, %v2371
      %v2415 = vadd.f32 %v1761, %v2373
      %v2416 = vadd.f32 %v1762, %v2376
      %v2417 = vadd.f32 %v1763, %v2378
      %v2418 = vadd.f32 %v1764, %v2381
      %v2419 = vadd.f32 %v1765, %v2383
      %v2420 = vadd.f32 %v1766, %v2386
      %v2421 = vadd.f32 %v1767, %v2388
      %v2422 = vld [vmem:[%s1481] sm:$0xe]
      %v2423 = vld [vmem:[%s1481 + $0xc] sm:$0xe]
      %v2424 = vld [vmem:[%s1481 + $0x18] sm:$0xe]
      %v2425 = vld [vmem:[%s1481 + $0x24] sm:$0xe]
      %v2426 = vld [vmem:[%s1481 + $0x30] sm:$0xe]
      %v2427 = vld [vmem:[%s1481 + $0x3c] sm:$0xe]
      %v2428 = vld [vmem:[%s1481 + $0x48] sm:$0xe]
      %v2429 = vld [vmem:[%s1481 + $0x54] sm:$0xe]
      %v2430 = vld [vmem:[%s1481 + $0x60] sm:$0xe]
      %v2431 = vld [vmem:[%s1481 + $0x6c] sm:$0xe]
      %v2432 = vld [vmem:[%s1481 + $0x78] sm:$0xe]
      %v2433 = vld [vmem:[%s1481 + $0x84] sm:$0xe]
      %v2434 = vld [vmem:[%s1481 + $0x90] sm:$0xe]
      %v2435 = vld [vmem:[%s1481 + $0x9c] sm:$0xe]
      %v2436 = vld [vmem:[%s1481 + $0xa8] sm:$0xe]
      %v2437 = vld [vmem:[%s1481 + $0xb4] sm:$0xe]
      %v2486 = vrot.slane %v2422, 5
      %v2487 = vrot.slane %v2486, 4
      %v2488 = vrot.slane %v1769, 5
      %v2489 = vsel %vm1143, %v2487, %v2488
      %v2490 = vrot.slane %v2488, 4
      %v2491 = vrot.slane %v1770, 5
      %v2492 = vsel %vm1143, %v2490, %v2491
      %v2493 = vrot.slane %v2423, 5
      %v2494 = vrot.slane %v2493, 4
      %v2495 = vrot.slane %v1772, 5
      %v2496 = vsel %vm1143, %v2494, %v2495
      %v2497 = vrot.slane %v2495, 4
      %v2498 = vrot.slane %v1773, 5
      %v2499 = vsel %vm1143, %v2497, %v2498
      %v2500 = vrot.slane %v2424, 5
      %v2501 = vrot.slane %v2500, 4
      %v2502 = vrot.slane %v1775, 5
      %v2503 = vsel %vm1143, %v2501, %v2502
      %v2504 = vrot.slane %v2502, 4
      %v2505 = vrot.slane %v1776, 5
      %v2506 = vsel %vm1143, %v2504, %v2505
      %v2507 = vrot.slane %v2425, 5
      %v2508 = vrot.slane %v2507, 4
      %v2509 = vrot.slane %v1778, 5
      %v2510 = vsel %vm1143, %v2508, %v2509
      %v2511 = vrot.slane %v2509, 4
      %v2512 = vrot.slane %v1779, 5
      %v2513 = vsel %vm1143, %v2511, %v2512
      %v2514 = vrot.slane %v2426, 5
      %v2515 = vrot.slane %v2514, 4
      %v2516 = vrot.slane %v1781, 5
      %v2517 = vsel %vm1143, %v2515, %v2516
      %v2518 = vrot.slane %v2516, 4
      %v2519 = vrot.slane %v1782, 5
      %v2520 = vsel %vm1143, %v2518, %v2519
      %v2521 = vrot.slane %v2427, 5
      %v2522 = vrot.slane %v2521, 4
      %v2523 = vrot.slane %v1784, 5
      %v2524 = vsel %vm1143, %v2522, %v2523
      %v2525 = vrot.slane %v2523, 4
      %v2526 = vrot.slane %v1785, 5
      %v2527 = vsel %vm1143, %v2525, %v2526
      %v2528 = vrot.slane %v2428, 5
      %v2529 = vrot.slane %v2528, 4
      %v2530 = vrot.slane %v1787, 5
      %v2531 = vsel %vm1143, %v2529, %v2530
      %v2532 = vrot.slane %v2530, 4
      %v2533 = vrot.slane %v1788, 5
      %v2534 = vsel %vm1143, %v2532, %v2533
      %v2535 = vrot.slane %v2429, 5
      %v2536 = vrot.slane %v2535, 4
      %v2537 = vrot.slane %v1790, 5
      %v2538 = vsel %vm1143, %v2536, %v2537
      %v2539 = vrot.slane %v2537, 4
      %v2540 = vrot.slane %v1791, 5
      %v2541 = vsel %vm1143, %v2539, %v2540
      %v2542 = vrot.slane %v2430, 5
      %v2543 = vrot.slane %v2542, 4
      %v2544 = vrot.slane %v1793, 5
      %v2545 = vsel %vm1143, %v2543, %v2544
      %v2546 = vrot.slane %v2544, 4
      %v2547 = vrot.slane %v1794, 5
      %v2548 = vsel %vm1143, %v2546, %v2547
      %v2549 = vrot.slane %v2431, 5
      %v2550 = vrot.slane %v2549, 4
      %v2551 = vrot.slane %v1796, 5
      %v2552 = vsel %vm1143, %v2550, %v2551
      %v2553 = vrot.slane %v2551, 4
      %v2554 = vrot.slane %v1797, 5
      %v2555 = vsel %vm1143, %v2553, %v2554
      %v2556 = vrot.slane %v2432, 5
      %v2557 = vrot.slane %v2556, 4
      %v2558 = vrot.slane %v1799, 5
      %v2559 = vsel %vm1143, %v2557, %v2558
      %v2560 = vrot.slane %v2558, 4
      %v2561 = vrot.slane %v1800, 5
      %v2562 = vsel %vm1143, %v2560, %v2561
      %v2563 = vrot.slane %v2433, 5
      %v2564 = vrot.slane %v2563, 4
      %v2565 = vrot.slane %v1802, 5
      %v2566 = vsel %vm1143, %v2564, %v2565
      %v2567 = vrot.slane %v2565, 4
      %v2568 = vrot.slane %v1803, 5
      %v2569 = vsel %vm1143, %v2567, %v2568
      %v2570 = vrot.slane %v2434, 5
      %v2571 = vrot.slane %v2570, 4
      %v2572 = vrot.slane %v1805, 5
      %v2573 = vsel %vm1143, %v2571, %v2572
      %v2574 = vrot.slane %v2572, 4
      %v2575 = vrot.slane %v1806, 5
      %v2576 = vsel %vm1143, %v2574, %v2575
      %v2577 = vrot.slane %v2435, 5
      %v2578 = vrot.slane %v2577, 4
      %v2579 = vrot.slane %v1808, 5
      %v2580 = vsel %vm1143, %v2578, %v2579
      %v2581 = vrot.slane %v2579, 4
      %v2582 = vrot.slane %v1809, 5
      %v2583 = vsel %vm1143, %v2581, %v2582
      %v2584 = vrot.slane %v2436, 5
      %v2585 = vrot.slane %v2584, 4
      %v2586 = vrot.slane %v1811, 5
      %v2587 = vsel %vm1143, %v2585, %v2586
      %v2588 = vrot.slane %v2586, 4
      %v2589 = vrot.slane %v1812, 5
      %v2590 = vsel %vm1143, %v2588, %v2589
      %v2591 = vrot.slane %v2437, 5
      %v2592 = vrot.slane %v2591, 4
      %v2593 = vrot.slane %v1814, 5
      %v2594 = vsel %vm1143, %v2592, %v2593
      %v2595 = vrot.slane %v2593, 4
      %v2596 = vrot.slane %v1815, 5
      %v2597 = vsel %vm1143, %v2595, %v2596
      %s2598 = scalar_lea.vmem %s223, 10
      %v2599 = vld [vmem:[%s2598] sm:$0x3]
      %v2600 = vunpack.c.l.b16 %v2489
      %v2601 = vunpack.c.l.b16 %v2492
      %v2602 = vunpack.c.l.b16 %v2496
      %v2603 = vunpack.c.l.b16 %v2499
      %v2604 = vunpack.c.l.b16 %v2503
      %v2605 = vunpack.c.l.b16 %v2506
      %v2606 = vunpack.c.l.b16 %v2510
      %v2607 = vunpack.c.l.b16 %v2513
      %v2608 = vunpack.c.l.b16 %v2517
      %v2609 = vunpack.c.l.b16 %v2520
      %v2610 = vunpack.c.l.b16 %v2524
      %v2611 = vunpack.c.l.b16 %v2527
      %v2612 = vunpack.c.l.b16 %v2531
      %v2613 = vunpack.c.l.b16 %v2534
      %v2614 = vunpack.c.l.b16 %v2538
      %v2615 = vunpack.c.l.b16 %v2541
      %v2616 = vunpack.c.l.b16 %v2545
      %v2617 = vunpack.c.l.b16 %v2548
      %v2618 = vunpack.c.l.b16 %v2552
      %v2619 = vunpack.c.l.b16 %v2555
      %v2620 = vunpack.c.l.b16 %v2559
      %v2621 = vunpack.c.l.b16 %v2562
      %v2622 = vunpack.c.l.b16 %v2566
      %v2623 = vunpack.c.l.b16 %v2569
      %v2624 = vunpack.c.l.b16 %v2573
      %v2625 = vunpack.c.l.b16 %v2576
      %v2626 = vunpack.c.l.b16 %v2580
      %v2627 = vunpack.c.l.b16 %v2583
      %v2628 = vunpack.c.l.b16 %v2587
      %v2629 = vunpack.c.l.b16 %v2590
      %v2630 = vunpack.c.l.b16 %v2594
      %v2631 = vunpack.c.l.b16 %v2597
      %v2632 = vpack.c.b16 %v2601, %v2600
      %v2633 = vpack.c.b16 %v2603, %v2602
      %v2634 = vpack.c.b16 %v2605, %v2604
      %v2635 = vpack.c.b16 %v2607, %v2606
      %v2636 = vpack.c.b16 %v2609, %v2608
      %v2637 = vpack.c.b16 %v2611, %v2610
      %v2638 = vpack.c.b16 %v2613, %v2612
      %v2639 = vpack.c.b16 %v2615, %v2614
      %v2640 = vpack.c.b16 %v2617, %v2616
      %v2641 = vpack.c.b16 %v2619, %v2618
      %v2642 = vpack.c.b16 %v2621, %v2620
      %v2643 = vpack.c.b16 %v2623, %v2622
      %v2644 = vpack.c.b16 %v2625, %v2624
      %v2645 = vpack.c.b16 %v2627, %v2626
      %v2646 = vpack.c.b16 %v2629, %v2628
      %v2647 = vpack.c.b16 %v2631, %v2630
      %v2649 = vsel %vm731, %v2632, 0
      %v2652 = vsel %vm731, %v2633, 0
      %v2655 = vsel %vm731, %v2634, 0
      %v2658 = vsel %vm731, %v2635, 0
      %v2661 = vsel %vm731, %v2636, 0
      %v2664 = vsel %vm731, %v2637, 0
      %v2667 = vsel %vm731, %v2638, 0
      %v2670 = vsel %vm731, %v2639, 0
      %v2673 = vsel %vm731, %v2640, 0
      %v2676 = vsel %vm731, %v2641, 0
      %v2679 = vsel %vm731, %v2642, 0
      %v2682 = vsel %vm731, %v2643, 0
      %v2685 = vsel %vm731, %v2644, 0
      %v2688 = vsel %vm731, %v2645, 0
      %v2691 = vsel %vm731, %v2646, 0
      %v2694 = vsel %vm731, %v2647, 0
      %v2697 = vsel %vm780, %v2599, 0
      %2699 = vmatpush.bf16.msra.mxu0 0
      %2700 = vmatpush.bf16.msra.mxu0 0
      %2701 = vmatpush.bf16.msra.mxu0 0
      %2702 = vmatpush.bf16.msra.mxu0 0
      %2703 = vmatpush.bf16.msra.mxu0 0
      %2704 = vmatpush.bf16.msra.mxu0 0
      %2705 = vmatpush.bf16.msra.mxu0 0
      %2706 = vmatpush.bf16.msra.mxu0 %v2697
      %2707 = vmatmul.bf16.gmra.mxu0 %v2649
      %v2708 = vpop.f32.mrf.mxu0
      %v2709 = vadd.f32 0.0, %v2708
      %v2710 = vpop.f32.mrf.mxu0
      %v2711 = vadd.f32 0.0, %v2710
      %2712 = vmatmul.bf16.gmra.mxu0 %v2652
      %v2713 = vpop.f32.mrf.mxu0
      %v2714 = vadd.f32 0.0, %v2713
      %v2715 = vpop.f32.mrf.mxu0
      %v2716 = vadd.f32 0.0, %v2715
      %2717 = vmatmul.bf16.gmra.mxu0 %v2655
      %v2718 = vpop.f32.mrf.mxu0
      %v2719 = vadd.f32 0.0, %v2718
      %v2720 = vpop.f32.mrf.mxu0
      %v2721 = vadd.f32 0.0, %v2720
      %2722 = vmatmul.bf16.gmra.mxu0 %v2658
      %v2723 = vpop.f32.mrf.mxu0
      %v2724 = vadd.f32 0.0, %v2723
      %v2725 = vpop.f32.mrf.mxu0
      %v2726 = vadd.f32 0.0, %v2725
      %2727 = vmatmul.bf16.gmra.mxu0 %v2661
      %v2728 = vpop.f32.mrf.mxu0
      %v2729 = vadd.f32 0.0, %v2728
      %v2730 = vpop.f32.mrf.mxu0
      %v2731 = vadd.f32 0.0, %v2730
      %2732 = vmatmul.bf16.gmra.mxu0 %v2664
      %v2733 = vpop.f32.mrf.mxu0
      %v2734 = vadd.f32 0.0, %v2733
      %v2735 = vpop.f32.mrf.mxu0
      %v2736 = vadd.f32 0.0, %v2735
      %2737 = vmatmul.bf16.gmra.mxu0 %v2667
      %v2738 = vpop.f32.mrf.mxu0
      %v2739 = vadd.f32 0.0, %v2738
      %v2740 = vpop.f32.mrf.mxu0
      %v2741 = vadd.f32 0.0, %v2740
      %2742 = vmatmul.bf16.gmra.mxu0 %v2670
      %v2743 = vpop.f32.mrf.mxu0
      %v2744 = vadd.f32 0.0, %v2743
      %v2745 = vpop.f32.mrf.mxu0
      %v2746 = vadd.f32 0.0, %v2745
      %2747 = vmatmul.bf16.gmra.mxu0 %v2673
      %v2748 = vpop.f32.mrf.mxu0
      %v2749 = vadd.f32 0.0, %v2748
      %v2750 = vpop.f32.mrf.mxu0
      %v2751 = vadd.f32 0.0, %v2750
      %2752 = vmatmul.bf16.gmra.mxu0 %v2676
      %v2753 = vpop.f32.mrf.mxu0
      %v2754 = vadd.f32 0.0, %v2753
      %v2755 = vpop.f32.mrf.mxu0
      %v2756 = vadd.f32 0.0, %v2755
      %2757 = vmatmul.bf16.gmra.mxu0 %v2679
      %v2758 = vpop.f32.mrf.mxu0
      %v2759 = vadd.f32 0.0, %v2758
      %v2760 = vpop.f32.mrf.mxu0
      %v2761 = vadd.f32 0.0, %v2760
      %2762 = vmatmul.bf16.gmra.mxu0 %v2682
      %v2763 = vpop.f32.mrf.mxu0
      %v2764 = vadd.f32 0.0, %v2763
      %v2765 = vpop.f32.mrf.mxu0
      %v2766 = vadd.f32 0.0, %v2765
      %2767 = vmatmul.bf16.gmra.mxu0 %v2685
      %v2768 = vpop.f32.mrf.mxu0
      %v2769 = vadd.f32 0.0, %v2768
      %v2770 = vpop.f32.mrf.mxu0
      %v2771 = vadd.f32 0.0, %v2770
      %2772 = vmatmul.bf16.gmra.mxu0 %v2688
      %v2773 = vpop.f32.mrf.mxu0
      %v2774 = vadd.f32 0.0, %v2773
      %v2775 = vpop.f32.mrf.mxu0
      %v2776 = vadd.f32 0.0, %v2775
      %2777 = vmatmul.bf16.gmra.mxu0 %v2691
      %v2778 = vpop.f32.mrf.mxu0
      %v2779 = vadd.f32 0.0, %v2778
      %v2780 = vpop.f32.mrf.mxu0
      %v2781 = vadd.f32 0.0, %v2780
      %2782 = vmatmul.bf16.gmra.mxu0 %v2694
      %v2783 = vpop.f32.mrf.mxu0
      %v2784 = vadd.f32 0.0, %v2783
      %v2785 = vpop.f32.mrf.mxu0
      %v2786 = vadd.f32 0.0, %v2785
      %2787 = vdwg.mxu0
      %v2788 = vadd.f32 %v2390, %v2709
      %v2789 = vadd.f32 %v2391, %v2711
      %v2790 = vadd.f32 %v2392, %v2714
      %v2791 = vadd.f32 %v2393, %v2716
      %v2792 = vadd.f32 %v2394, %v2719
      %v2793 = vadd.f32 %v2395, %v2721
      %v2794 = vadd.f32 %v2396, %v2724
      %v2795 = vadd.f32 %v2397, %v2726
      %v2796 = vadd.f32 %v2398, %v2729
      %v2797 = vadd.f32 %v2399, %v2731
      %v2798 = vadd.f32 %v2400, %v2734
      %v2799 = vadd.f32 %v2401, %v2736
      %v2800 = vadd.f32 %v2402, %v2739
      %v2801 = vadd.f32 %v2403, %v2741
      %v2802 = vadd.f32 %v2404, %v2744
      %v2803 = vadd.f32 %v2405, %v2746
      %v2804 = vadd.f32 %v2406, %v2749
      %v2805 = vadd.f32 %v2407, %v2751
      %v2806 = vadd.f32 %v2408, %v2754
      %v2807 = vadd.f32 %v2409, %v2756
      %v2808 = vadd.f32 %v2410, %v2759
      %v2809 = vadd.f32 %v2411, %v2761
      %v2810 = vadd.f32 %v2412, %v2764
      %v2811 = vadd.f32 %v2413, %v2766
      %v2812 = vadd.f32 %v2414, %v2769
      %v2813 = vadd.f32 %v2415, %v2771
      %v2814 = vadd.f32 %v2416, %v2774
      %v2815 = vadd.f32 %v2417, %v2776
      %v2816 = vadd.f32 %v2418, %v2779
      %v2817 = vadd.f32 %v2419, %v2781
      %v2818 = vadd.f32 %v2420, %v2784
      %v2819 = vadd.f32 %v2421, %v2786
      %s2820 = sadd.s32 %s241, 2
      %s2821 = smul.u32 %s2820, 3
      %s2822 = smul.addr %s2821, 4
      %s2823 = scalar_lea.vmem %s219, %s2822
      %v2824 = vld [vmem:[%s2823] sm:$0xf]
      %v2825 = vld [vmem:[%s2823 + $0x4] sm:$0xf]
      %v2826 = vld [vmem:[%s2823 + $0xc] sm:$0xf]
      %v2827 = vld [vmem:[%s2823 + $0x10] sm:$0xf]
      %v2828 = vld [vmem:[%s2823 + $0x18] sm:$0xf]
      %v2829 = vld [vmem:[%s2823 + $0x1c] sm:$0xf]
      %v2830 = vld [vmem:[%s2823 + $0x24] sm:$0xf]
      %v2831 = vld [vmem:[%s2823 + $0x28] sm:$0xf]
      %v2832 = vld [vmem:[%s2823 + $0x30] sm:$0xf]
      %v2833 = vld [vmem:[%s2823 + $0x34] sm:$0xf]
      %v2834 = vld [vmem:[%s2823 + $0x3c] sm:$0xf]
      %v2835 = vld [vmem:[%s2823 + $0x40] sm:$0xf]
      %v2836 = vld [vmem:[%s2823 + $0x48] sm:$0xf]
      %v2837 = vld [vmem:[%s2823 + $0x4c] sm:$0xf]
      %v2838 = vld [vmem:[%s2823 + $0x54] sm:$0xf]
      %v2839 = vld [vmem:[%s2823 + $0x58] sm:$0xf]
      %v2840 = vld [vmem:[%s2823 + $0x60] sm:$0xf]
      %v2841 = vld [vmem:[%s2823 + $0x64] sm:$0xf]
      %v2842 = vld [vmem:[%s2823 + $0x6c] sm:$0xf]
      %v2843 = vld [vmem:[%s2823 + $0x70] sm:$0xf]
      %v2844 = vld [vmem:[%s2823 + $0x78] sm:$0xf]
      %v2845 = vld [vmem:[%s2823 + $0x7c] sm:$0xf]
      %v2846 = vld [vmem:[%s2823 + $0x84] sm:$0xf]
      %v2847 = vld [vmem:[%s2823 + $0x88] sm:$0xf]
      %v2848 = vld [vmem:[%s2823 + $0x90] sm:$0xf]
      %v2849 = vld [vmem:[%s2823 + $0x94] sm:$0xf]
      %v2850 = vld [vmem:[%s2823 + $0x9c] sm:$0xf]
      %v2851 = vld [vmem:[%s2823 + $0xa0] sm:$0xf]
      %v2852 = vld [vmem:[%s2823 + $0xa8] sm:$0xf]
      %v2853 = vld [vmem:[%s2823 + $0xac] sm:$0xf]
      %v2854 = vld [vmem:[%s2823 + $0xb4] sm:$0xf]
      %v2855 = vld [vmem:[%s2823 + $0xb8] sm:$0xf]
      %s2856 = scalar_lea.vmem %s223, 12
      %v2857 = vld [vmem:[%s2856] sm:$0x3]
      %v2890 = vunpack.c.l.b16 %v2824
      %v2891 = vunpack.c.l.b16 %v2825
      %v2892 = vunpack.c.l.b16 %v2826
      %v2893 = vunpack.c.l.b16 %v2827
      %v2894 = vunpack.c.l.b16 %v2828
      %v2895 = vunpack.c.l.b16 %v2829
      %v2896 = vunpack.c.l.b16 %v2830
      %v2897 = vunpack.c.l.b16 %v2831
      %v2898 = vunpack.c.l.b16 %v2832
      %v2899 = vunpack.c.l.b16 %v2833
      %v2900 = vunpack.c.l.b16 %v2834
      %v2901 = vunpack.c.l.b16 %v2835
      %v2902 = vunpack.c.l.b16 %v2836
      %v2903 = vunpack.c.l.b16 %v2837
      %v2904 = vunpack.c.l.b16 %v2838
      %v2905 = vunpack.c.l.b16 %v2839
      %v2906 = vunpack.c.l.b16 %v2840
      %v2907 = vunpack.c.l.b16 %v2841
      %v2908 = vunpack.c.l.b16 %v2842
      %v2909 = vunpack.c.l.b16 %v2843
      %v2910 = vunpack.c.l.b16 %v2844
      %v2911 = vunpack.c.l.b16 %v2845
      %v2912 = vunpack.c.l.b16 %v2846
      %v2913 = vunpack.c.l.b16 %v2847
      %v2914 = vunpack.c.l.b16 %v2848
      %v2915 = vunpack.c.l.b16 %v2849
      %v2916 = vunpack.c.l.b16 %v2850
      %v2917 = vunpack.c.l.b16 %v2851
      %v2918 = vunpack.c.l.b16 %v2852
      %v2919 = vunpack.c.l.b16 %v2853
      %v2920 = vunpack.c.l.b16 %v2854
      %v2921 = vunpack.c.l.b16 %v2855
      %v2922 = vpack.c.b16 %v2891, %v2890
      %v2923 = vpack.c.b16 %v2893, %v2892
      %v2924 = vpack.c.b16 %v2895, %v2894
      %v2925 = vpack.c.b16 %v2897, %v2896
      %v2926 = vpack.c.b16 %v2899, %v2898
      %v2927 = vpack.c.b16 %v2901, %v2900
      %v2928 = vpack.c.b16 %v2903, %v2902
      %v2929 = vpack.c.b16 %v2905, %v2904
      %v2930 = vpack.c.b16 %v2907, %v2906
      %v2931 = vpack.c.b16 %v2909, %v2908
      %v2932 = vpack.c.b16 %v2911, %v2910
      %v2933 = vpack.c.b16 %v2913, %v2912
      %v2934 = vpack.c.b16 %v2915, %v2914
      %v2935 = vpack.c.b16 %v2917, %v2916
      %v2936 = vpack.c.b16 %v2919, %v2918
      %v2937 = vpack.c.b16 %v2921, %v2920
      %v2939 = vsel %vm731, %v2922, 0
      %v2942 = vsel %vm731, %v2923, 0
      %v2945 = vsel %vm731, %v2924, 0
      %v2948 = vsel %vm731, %v2925, 0
      %v2951 = vsel %vm731, %v2926, 0
      %v2954 = vsel %vm731, %v2927, 0
      %v2957 = vsel %vm731, %v2928, 0
      %v2960 = vsel %vm731, %v2929, 0
      %v2963 = vsel %vm731, %v2930, 0
      %v2966 = vsel %vm731, %v2931, 0
      %v2969 = vsel %vm731, %v2932, 0
      %v2972 = vsel %vm731, %v2933, 0
      %v2975 = vsel %vm731, %v2934, 0
      %v2978 = vsel %vm731, %v2935, 0
      %v2981 = vsel %vm731, %v2936, 0
      %v2984 = vsel %vm731, %v2937, 0
      %v2987 = vsel %vm780, %v2857, 0
      %2989 = vmatpush.bf16.msra.mxu0 0
      %2990 = vmatpush.bf16.msra.mxu0 0
      %2991 = vmatpush.bf16.msra.mxu0 0
      %2992 = vmatpush.bf16.msra.mxu0 0
      %2993 = vmatpush.bf16.msra.mxu0 0
      %2994 = vmatpush.bf16.msra.mxu0 0
      %2995 = vmatpush.bf16.msra.mxu0 0
      %2996 = vmatpush.bf16.msra.mxu0 %v2987
      %2997 = vmatmul.bf16.gmra.mxu0 %v2939
      %v2998 = vpop.f32.mrf.mxu0
      %v2999 = vadd.f32 0.0, %v2998
      %v3000 = vpop.f32.mrf.mxu0
      %v3001 = vadd.f32 0.0, %v3000
      %3002 = vmatmul.bf16.gmra.mxu0 %v2942
      %v3003 = vpop.f32.mrf.mxu0
      %v3004 = vadd.f32 0.0, %v3003
      %v3005 = vpop.f32.mrf.mxu0
      %v3006 = vadd.f32 0.0, %v3005
      %3007 = vmatmul.bf16.gmra.mxu0 %v2945
      %v3008 = vpop.f32.mrf.mxu0
      %v3009 = vadd.f32 0.0, %v3008
      %v3010 = vpop.f32.mrf.mxu0
      %v3011 = vadd.f32 0.0, %v3010
      %3012 = vmatmul.bf16.gmra.mxu0 %v2948
      %v3013 = vpop.f32.mrf.mxu0
      %v3014 = vadd.f32 0.0, %v3013
      %v3015 = vpop.f32.mrf.mxu0
      %v3016 = vadd.f32 0.0, %v3015
      %3017 = vmatmul.bf16.gmra.mxu0 %v2951
      %v3018 = vpop.f32.mrf.mxu0
      %v3019 = vadd.f32 0.0, %v3018
      %v3020 = vpop.f32.mrf.mxu0
      %v3021 = vadd.f32 0.0, %v3020
      %3022 = vmatmul.bf16.gmra.mxu0 %v2954
      %v3023 = vpop.f32.mrf.mxu0
      %v3024 = vadd.f32 0.0, %v3023
      %v3025 = vpop.f32.mrf.mxu0
      %v3026 = vadd.f32 0.0, %v3025
      %3027 = vmatmul.bf16.gmra.mxu0 %v2957
      %v3028 = vpop.f32.mrf.mxu0
      %v3029 = vadd.f32 0.0, %v3028
      %v3030 = vpop.f32.mrf.mxu0
      %v3031 = vadd.f32 0.0, %v3030
      %3032 = vmatmul.bf16.gmra.mxu0 %v2960
      %v3033 = vpop.f32.mrf.mxu0
      %v3034 = vadd.f32 0.0, %v3033
      %v3035 = vpop.f32.mrf.mxu0
      %v3036 = vadd.f32 0.0, %v3035
      %3037 = vmatmul.bf16.gmra.mxu0 %v2963
      %v3038 = vpop.f32.mrf.mxu0
      %v3039 = vadd.f32 0.0, %v3038
      %v3040 = vpop.f32.mrf.mxu0
      %v3041 = vadd.f32 0.0, %v3040
      %3042 = vmatmul.bf16.gmra.mxu0 %v2966
      %v3043 = vpop.f32.mrf.mxu0
      %v3044 = vadd.f32 0.0, %v3043
      %v3045 = vpop.f32.mrf.mxu0
      %v3046 = vadd.f32 0.0, %v3045
      %3047 = vmatmul.bf16.gmra.mxu0 %v2969
      %v3048 = vpop.f32.mrf.mxu0
      %v3049 = vadd.f32 0.0, %v3048
      %v3050 = vpop.f32.mrf.mxu0
      %v3051 = vadd.f32 0.0, %v3050
      %3052 = vmatmul.bf16.gmra.mxu0 %v2972
      %v3053 = vpop.f32.mrf.mxu0
      %v3054 = vadd.f32 0.0, %v3053
      %v3055 = vpop.f32.mrf.mxu0
      %v3056 = vadd.f32 0.0, %v3055
      %3057 = vmatmul.bf16.gmra.mxu0 %v2975
      %v3058 = vpop.f32.mrf.mxu0
      %v3059 = vadd.f32 0.0, %v3058
      %v3060 = vpop.f32.mrf.mxu0
      %v3061 = vadd.f32 0.0, %v3060
      %3062 = vmatmul.bf16.gmra.mxu0 %v2978
      %v3063 = vpop.f32.mrf.mxu0
      %v3064 = vadd.f32 0.0, %v3063
      %v3065 = vpop.f32.mrf.mxu0
      %v3066 = vadd.f32 0.0, %v3065
      %3067 = vmatmul.bf16.gmra.mxu0 %v2981
      %v3068 = vpop.f32.mrf.mxu0
      %v3069 = vadd.f32 0.0, %v3068
      %v3070 = vpop.f32.mrf.mxu0
      %v3071 = vadd.f32 0.0, %v3070
      %3072 = vmatmul.bf16.gmra.mxu0 %v2984
      %v3073 = vpop.f32.mrf.mxu0
      %v3074 = vadd.f32 0.0, %v3073
      %v3075 = vpop.f32.mrf.mxu0
      %v3076 = vadd.f32 0.0, %v3075
      %3077 = vdwg.mxu0
      %v3078 = vadd.f32 %v2788, %v2999
      %v3079 = vadd.f32 %v2789, %v3001
      %v3080 = vadd.f32 %v2790, %v3004
      %v3081 = vadd.f32 %v2791, %v3006
      %v3082 = vadd.f32 %v2792, %v3009
      %v3083 = vadd.f32 %v2793, %v3011
      %v3084 = vadd.f32 %v2794, %v3014
      %v3085 = vadd.f32 %v2795, %v3016
      %v3086 = vadd.f32 %v2796, %v3019
      %v3087 = vadd.f32 %v2797, %v3021
      %v3088 = vadd.f32 %v2798, %v3024
      %v3089 = vadd.f32 %v2799, %v3026
      %v3090 = vadd.f32 %v2800, %v3029
      %v3091 = vadd.f32 %v2801, %v3031
      %v3092 = vadd.f32 %v2802, %v3034
      %v3093 = vadd.f32 %v2803, %v3036
      %v3094 = vadd.f32 %v2804, %v3039
      %v3095 = vadd.f32 %v2805, %v3041
      %v3096 = vadd.f32 %v2806, %v3044
      %v3097 = vadd.f32 %v2807, %v3046
      %v3098 = vadd.f32 %v2808, %v3049
      %v3099 = vadd.f32 %v2809, %v3051
      %v3100 = vadd.f32 %v2810, %v3054
      %v3101 = vadd.f32 %v2811, %v3056
      %v3102 = vadd.f32 %v2812, %v3059
      %v3103 = vadd.f32 %v2813, %v3061
      %v3104 = vadd.f32 %v2814, %v3064
      %v3105 = vadd.f32 %v2815, %v3066
      %v3106 = vadd.f32 %v2816, %v3069
      %v3107 = vadd.f32 %v2817, %v3071
      %v3108 = vadd.f32 %v2818, %v3074
      %v3109 = vadd.f32 %v2819, %v3076
      %v3110 = vld [vmem:[%s2823] sm:$0xf]
      %v3111 = vld [vmem:[%s2823 + $0x4] sm:$0xf]
      %v3112 = vld [vmem:[%s2823 + $0x8] sm:$0x1]
      %v3113 = vld [vmem:[%s2823 + $0xc] sm:$0xf]
      %v3114 = vld [vmem:[%s2823 + $0x10] sm:$0xf]
      %v3115 = vld [vmem:[%s2823 + $0x14] sm:$0x1]
      %v3116 = vld [vmem:[%s2823 + $0x18] sm:$0xf]
      %v3117 = vld [vmem:[%s2823 + $0x1c] sm:$0xf]
      %v3118 = vld [vmem:[%s2823 + $0x20] sm:$0x1]
      %v3119 = vld [vmem:[%s2823 + $0x24] sm:$0xf]
      %v3120 = vld [vmem:[%s2823 + $0x28] sm:$0xf]
      %v3121 = vld [vmem:[%s2823 + $0x2c] sm:$0x1]
      %v3122 = vld [vmem:[%s2823 + $0x30] sm:$0xf]
      %v3123 = vld [vmem:[%s2823 + $0x34] sm:$0xf]
      %v3124 = vld [vmem:[%s2823 + $0x38] sm:$0x1]
      %v3125 = vld [vmem:[%s2823 + $0x3c] sm:$0xf]
      %v3126 = vld [vmem:[%s2823 + $0x40] sm:$0xf]
      %v3127 = vld [vmem:[%s2823 + $0x44] sm:$0x1]
      %v3128 = vld [vmem:[%s2823 + $0x48] sm:$0xf]
      %v3129 = vld [vmem:[%s2823 + $0x4c] sm:$0xf]
      %v3130 = vld [vmem:[%s2823 + $0x50] sm:$0x1]
      %v3131 = vld [vmem:[%s2823 + $0x54] sm:$0xf]
      %v3132 = vld [vmem:[%s2823 + $0x58] sm:$0xf]
      %v3133 = vld [vmem:[%s2823 + $0x5c] sm:$0x1]
      %v3134 = vld [vmem:[%s2823 + $0x60] sm:$0xf]
      %v3135 = vld [vmem:[%s2823 + $0x64] sm:$0xf]
      %v3136 = vld [vmem:[%s2823 + $0x68] sm:$0x1]
      %v3137 = vld [vmem:[%s2823 + $0x6c] sm:$0xf]
      %v3138 = vld [vmem:[%s2823 + $0x70] sm:$0xf]
      %v3139 = vld [vmem:[%s2823 + $0x74] sm:$0x1]
      %v3140 = vld [vmem:[%s2823 + $0x78] sm:$0xf]
      %v3141 = vld [vmem:[%s2823 + $0x7c] sm:$0xf]
      %v3142 = vld [vmem:[%s2823 + $0x80] sm:$0x1]
      %v3143 = vld [vmem:[%s2823 + $0x84] sm:$0xf]
      %v3144 = vld [vmem:[%s2823 + $0x88] sm:$0xf]
      %v3145 = vld [vmem:[%s2823 + $0x8c] sm:$0x1]
      %v3146 = vld [vmem:[%s2823 + $0x90] sm:$0xf]
      %v3147 = vld [vmem:[%s2823 + $0x94] sm:$0xf]
      %v3148 = vld [vmem:[%s2823 + $0x98] sm:$0x1]
      %v3149 = vld [vmem:[%s2823 + $0x9c] sm:$0xf]
      %v3150 = vld [vmem:[%s2823 + $0xa0] sm:$0xf]
      %v3151 = vld [vmem:[%s2823 + $0xa4] sm:$0x1]
      %v3152 = vld [vmem:[%s2823 + $0xa8] sm:$0xf]
      %v3153 = vld [vmem:[%s2823 + $0xac] sm:$0xf]
      %v3154 = vld [vmem:[%s2823 + $0xb0] sm:$0x1]
      %v3155 = vld [vmem:[%s2823 + $0xb4] sm:$0xf]
      %v3156 = vld [vmem:[%s2823 + $0xb8] sm:$0xf]
      %v3157 = vld [vmem:[%s2823 + $0xbc] sm:$0x1]
      %v3159 = vshrl.u32 %v3110, 16
      %v3161 = vrot.slane %v3159, 4
      %v3162 = vshll.u32 %v3110, 16
      %v3164 = vrot.slane %v3162, 5
      %v3165 = vor.u32 %v3161, %v3164
      %v3166 = vrot.slane %v3165, 4
      %v3168 = vshll.u32 %v3111, 16
      %v3170 = vrot.slane %v3168, 5
      %v3171 = vsel %vm296, %v3166, %v3170
      %v3172 = vshrl.u32 %v3111, 16
      %v3174 = vrot.slane %v3172, 4
      %v3175 = vor.u32 %v3174, %v3170
      %v3176 = vrot.slane %v3175, 4
      %v3178 = vshll.u32 %v3112, 16
      %v3180 = vrot.slane %v3178, 5
      %v3181 = vsel %vm296, %v3176, %v3180
      %v3183 = vshrl.u32 %v3113, 16
      %v3185 = vrot.slane %v3183, 4
      %v3186 = vshll.u32 %v3113, 16
      %v3188 = vrot.slane %v3186, 5
      %v3189 = vor.u32 %v3185, %v3188
      %v3190 = vrot.slane %v3189, 4
      %v3192 = vshll.u32 %v3114, 16
      %v3194 = vrot.slane %v3192, 5
      %v3195 = vsel %vm296, %v3190, %v3194
      %v3196 = vshrl.u32 %v3114, 16
      %v3198 = vrot.slane %v3196, 4
      %v3199 = vor.u32 %v3198, %v3194
      %v3200 = vrot.slane %v3199, 4
      %v3202 = vshll.u32 %v3115, 16
      %v3204 = vrot.slane %v3202, 5
      %v3205 = vsel %vm296, %v3200, %v3204
      %v3207 = vshrl.u32 %v3116, 16
      %v3209 = vrot.slane %v3207, 4
      %v3210 = vshll.u32 %v3116, 16
      %v3212 = vrot.slane %v3210, 5
      %v3213 = vor.u32 %v3209, %v3212
      %v3214 = vrot.slane %v3213, 4
      %v3216 = vshll.u32 %v3117, 16
      %v3218 = vrot.slane %v3216, 5
      %v3219 = vsel %vm296, %v3214, %v3218
      %v3220 = vshrl.u32 %v3117, 16
      %v3222 = vrot.slane %v3220, 4
      %v3223 = vor.u32 %v3222, %v3218
      %v3224 = vrot.slane %v3223, 4
      %v3226 = vshll.u32 %v3118, 16
      %v3228 = vrot.slane %v3226, 5
      %v3229 = vsel %vm296, %v3224, %v3228
      %v3231 = vshrl.u32 %v3119, 16
      %v3233 = vrot.slane %v3231, 4
      %v3234 = vshll.u32 %v3119, 16
      %v3236 = vrot.slane %v3234, 5
      %v3237 = vor.u32 %v3233, %v3236
      %v3238 = vrot.slane %v3237, 4
      %v3240 = vshll.u32 %v3120, 16
      %v3242 = vrot.slane %v3240, 5
      %v3243 = vsel %vm296, %v3238, %v3242
      %v3244 = vshrl.u32 %v3120, 16
      %v3246 = vrot.slane %v3244, 4
      %v3247 = vor.u32 %v3246, %v3242
      %v3248 = vrot.slane %v3247, 4
      %v3250 = vshll.u32 %v3121, 16
      %v3252 = vrot.slane %v3250, 5
      %v3253 = vsel %vm296, %v3248, %v3252
      %v3255 = vshrl.u32 %v3122, 16
      %v3257 = vrot.slane %v3255, 4
      %v3258 = vshll.u32 %v3122, 16
      %v3260 = vrot.slane %v3258, 5
      %v3261 = vor.u32 %v3257, %v3260
      %v3262 = vrot.slane %v3261, 4
      %v3264 = vshll.u32 %v3123, 16
      %v3266 = vrot.slane %v3264, 5
      %v3267 = vsel %vm296, %v3262, %v3266
      %v3268 = vshrl.u32 %v3123, 16
      %v3270 = vrot.slane %v3268, 4
      %v3271 = vor.u32 %v3270, %v3266
      %v3272 = vrot.slane %v3271, 4
      %v3274 = vshll.u32 %v3124, 16
      %v3276 = vrot.slane %v3274, 5
      %v3277 = vsel %vm296, %v3272, %v3276
      %v3279 = vshrl.u32 %v3125, 16
      %v3281 = vrot.slane %v3279, 4
      %v3282 = vshll.u32 %v3125, 16
      %v3284 = vrot.slane %v3282, 5
      %v3285 = vor.u32 %v3281, %v3284
      %v3286 = vrot.slane %v3285, 4
      %v3288 = vshll.u32 %v3126, 16
      %v3290 = vrot.slane %v3288, 5
      %v3291 = vsel %vm296, %v3286, %v3290
      %v3292 = vshrl.u32 %v3126, 16
      %v3294 = vrot.slane %v3292, 4
      %v3295 = vor.u32 %v3294, %v3290
      %v3296 = vrot.slane %v3295, 4
      %v3298 = vshll.u32 %v3127, 16
      %v3300 = vrot.slane %v3298, 5
      %v3301 = vsel %vm296, %v3296, %v3300
      %v3303 = vshrl.u32 %v3128, 16
      %v3305 = vrot.slane %v3303, 4
      %v3306 = vshll.u32 %v3128, 16
      %v3308 = vrot.slane %v3306, 5
      %v3309 = vor.u32 %v3305, %v3308
      %v3310 = vrot.slane %v3309, 4
      %v3312 = vshll.u32 %v3129, 16
      %v3314 = vrot.slane %v3312, 5
      %v3315 = vsel %vm296, %v3310, %v3314
      %v3316 = vshrl.u32 %v3129, 16
      %v3318 = vrot.slane %v3316, 4
      %v3319 = vor.u32 %v3318, %v3314
      %v3320 = vrot.slane %v3319, 4
      %v3322 = vshll.u32 %v3130, 16
      %v3324 = vrot.slane %v3322, 5
      %v3325 = vsel %vm296, %v3320, %v3324
      %v3327 = vshrl.u32 %v3131, 16
      %v3329 = vrot.slane %v3327, 4
      %v3330 = vshll.u32 %v3131, 16
      %v3332 = vrot.slane %v3330, 5
      %v3333 = vor.u32 %v3329, %v3332
      %v3334 = vrot.slane %v3333, 4
      %v3336 = vshll.u32 %v3132, 16
      %v3338 = vrot.slane %v3336, 5
      %v3339 = vsel %vm296, %v3334, %v3338
      %v3340 = vshrl.u32 %v3132, 16
      %v3342 = vrot.slane %v3340, 4
      %v3343 = vor.u32 %v3342, %v3338
      %v3344 = vrot.slane %v3343, 4
      %v3346 = vshll.u32 %v3133, 16
      %v3348 = vrot.slane %v3346, 5
      %v3349 = vsel %vm296, %v3344, %v3348
      %v3351 = vshrl.u32 %v3134, 16
      %v3353 = vrot.slane %v3351, 4
      %v3354 = vshll.u32 %v3134, 16
      %v3356 = vrot.slane %v3354, 5
      %v3357 = vor.u32 %v3353, %v3356
      %v3358 = vrot.slane %v3357, 4
      %v3360 = vshll.u32 %v3135, 16
      %v3362 = vrot.slane %v3360, 5
      %v3363 = vsel %vm296, %v3358, %v3362
      %v3364 = vshrl.u32 %v3135, 16
      %v3366 = vrot.slane %v3364, 4
      %v3367 = vor.u32 %v3366, %v3362
      %v3368 = vrot.slane %v3367, 4
      %v3370 = vshll.u32 %v3136, 16
      %v3372 = vrot.slane %v3370, 5
      %v3373 = vsel %vm296, %v3368, %v3372
      %v3375 = vshrl.u32 %v3137, 16
      %v3377 = vrot.slane %v3375, 4
      %v3378 = vshll.u32 %v3137, 16
      %v3380 = vrot.slane %v3378, 5
      %v3381 = vor.u32 %v3377, %v3380
      %v3382 = vrot.slane %v3381, 4
      %v3384 = vshll.u32 %v3138, 16
      %v3386 = vrot.slane %v3384, 5
      %v3387 = vsel %vm296, %v3382, %v3386
      %v3388 = vshrl.u32 %v3138, 16
      %v3390 = vrot.slane %v3388, 4
      %v3391 = vor.u32 %v3390, %v3386
      %v3392 = vrot.slane %v3391, 4
      %v3394 = vshll.u32 %v3139, 16
      %v3396 = vrot.slane %v3394, 5
      %v3397 = vsel %vm296, %v3392, %v3396
      %v3399 = vshrl.u32 %v3140, 16
      %v3401 = vrot.slane %v3399, 4
      %v3402 = vshll.u32 %v3140, 16
      %v3404 = vrot.slane %v3402, 5
      %v3405 = vor.u32 %v3401, %v3404
      %v3406 = vrot.slane %v3405, 4
      %v3408 = vshll.u32 %v3141, 16
      %v3410 = vrot.slane %v3408, 5
      %v3411 = vsel %vm296, %v3406, %v3410
      %v3412 = vshrl.u32 %v3141, 16
      %v3414 = vrot.slane %v3412, 4
      %v3415 = vor.u32 %v3414, %v3410
      %v3416 = vrot.slane %v3415, 4
      %v3418 = vshll.u32 %v3142, 16
      %v3420 = vrot.slane %v3418, 5
      %v3421 = vsel %vm296, %v3416, %v3420
      %v3423 = vshrl.u32 %v3143, 16
      %v3425 = vrot.slane %v3423, 4
      %v3426 = vshll.u32 %v3143, 16
      %v3428 = vrot.slane %v3426, 5
      %v3429 = vor.u32 %v3425, %v3428
      %v3430 = vrot.slane %v3429, 4
      %v3432 = vshll.u32 %v3144, 16
      %v3434 = vrot.slane %v3432, 5
      %v3435 = vsel %vm296, %v3430, %v3434
      %v3436 = vshrl.u32 %v3144, 16
      %v3438 = vrot.slane %v3436, 4
      %v3439 = vor.u32 %v3438, %v3434
      %v3440 = vrot.slane %v3439, 4
      %v3442 = vshll.u32 %v3145, 16
      %v3444 = vrot.slane %v3442, 5
      %v3445 = vsel %vm296, %v3440, %v3444
      %v3447 = vshrl.u32 %v3146, 16
      %v3449 = vrot.slane %v3447, 4
      %v3450 = vshll.u32 %v3146, 16
      %v3452 = vrot.slane %v3450, 5
      %v3453 = vor.u32 %v3449, %v3452
      %v3454 = vrot.slane %v3453, 4
      %v3456 = vshll.u32 %v3147, 16
      %v3458 = vrot.slane %v3456, 5
      %v3459 = vsel %vm296, %v3454, %v3458
      %v3460 = vshrl.u32 %v3147, 16
      %v3462 = vrot.slane %v3460, 4
      %v3463 = vor.u32 %v3462, %v3458
      %v3464 = vrot.slane %v3463, 4
      %v3466 = vshll.u32 %v3148, 16
      %v3468 = vrot.slane %v3466, 5
      %v3469 = vsel %vm296, %v3464, %v3468
      %v3471 = vshrl.u32 %v3149, 16
      %v3473 = vrot.slane %v3471, 4
      %v3474 = vshll.u32 %v3149, 16
      %v3476 = vrot.slane %v3474, 5
      %v3477 = vor.u32 %v3473, %v3476
      %v3478 = vrot.slane %v3477, 4
      %v3480 = vshll.u32 %v3150, 16
      %v3482 = vrot.slane %v3480, 5
      %v3483 = vsel %vm296, %v3478, %v3482
      %v3484 = vshrl.u32 %v3150, 16
      %v3486 = vrot.slane %v3484, 4
      %v3487 = vor.u32 %v3486, %v3482
      %v3488 = vrot.slane %v3487, 4
      %v3490 = vshll.u32 %v3151, 16
      %v3492 = vrot.slane %v3490, 5
      %v3493 = vsel %vm296, %v3488, %v3492
      %v3495 = vshrl.u32 %v3152, 16
      %v3497 = vrot.slane %v3495, 4
      %v3498 = vshll.u32 %v3152, 16
      %v3500 = vrot.slane %v3498, 5
      %v3501 = vor.u32 %v3497, %v3500
      %v3502 = vrot.slane %v3501, 4
      %v3504 = vshll.u32 %v3153, 16
      %v3506 = vrot.slane %v3504, 5
      %v3507 = vsel %vm296, %v3502, %v3506
      %v3508 = vshrl.u32 %v3153, 16
      %v3510 = vrot.slane %v3508, 4
      %v3511 = vor.u32 %v3510, %v3506
      %v3512 = vrot.slane %v3511, 4
      %v3514 = vshll.u32 %v3154, 16
      %v3516 = vrot.slane %v3514, 5
      %v3517 = vsel %vm296, %v3512, %v3516
      %v3519 = vshrl.u32 %v3155, 16
      %v3521 = vrot.slane %v3519, 4
      %v3522 = vshll.u32 %v3155, 16
      %v3524 = vrot.slane %v3522, 5
      %v3525 = vor.u32 %v3521, %v3524
      %v3526 = vrot.slane %v3525, 4
      %v3528 = vshll.u32 %v3156, 16
      %v3530 = vrot.slane %v3528, 5
      %v3531 = vsel %vm296, %v3526, %v3530
      %v3532 = vshrl.u32 %v3156, 16
      %v3534 = vrot.slane %v3532, 4
      %v3535 = vor.u32 %v3534, %v3530
      %v3536 = vrot.slane %v3535, 4
      %v3538 = vshll.u32 %v3157, 16
      %v3540 = vrot.slane %v3538, 5
      %v3541 = vsel %vm296, %v3536, %v3540
      %s3542 = scalar_lea.vmem %s223, 14
      %v3543 = vld [vmem:[%s3542] sm:$0x3]
      %v3544 = vunpack.c.l.b16 %v3171
      %v3545 = vunpack.c.l.b16 %v3181
      %v3546 = vunpack.c.l.b16 %v3195
      %v3547 = vunpack.c.l.b16 %v3205
      %v3548 = vunpack.c.l.b16 %v3219
      %v3549 = vunpack.c.l.b16 %v3229
      %v3550 = vunpack.c.l.b16 %v3243
      %v3551 = vunpack.c.l.b16 %v3253
      %v3552 = vunpack.c.l.b16 %v3267
      %v3553 = vunpack.c.l.b16 %v3277
      %v3554 = vunpack.c.l.b16 %v3291
      %v3555 = vunpack.c.l.b16 %v3301
      %v3556 = vunpack.c.l.b16 %v3315
      %v3557 = vunpack.c.l.b16 %v3325
      %v3558 = vunpack.c.l.b16 %v3339
      %v3559 = vunpack.c.l.b16 %v3349
      %v3560 = vunpack.c.l.b16 %v3363
      %v3561 = vunpack.c.l.b16 %v3373
      %v3562 = vunpack.c.l.b16 %v3387
      %v3563 = vunpack.c.l.b16 %v3397
      %v3564 = vunpack.c.l.b16 %v3411
      %v3565 = vunpack.c.l.b16 %v3421
      %v3566 = vunpack.c.l.b16 %v3435
      %v3567 = vunpack.c.l.b16 %v3445
      %v3568 = vunpack.c.l.b16 %v3459
      %v3569 = vunpack.c.l.b16 %v3469
      %v3570 = vunpack.c.l.b16 %v3483
      %v3571 = vunpack.c.l.b16 %v3493
      %v3572 = vunpack.c.l.b16 %v3507
      %v3573 = vunpack.c.l.b16 %v3517
      %v3574 = vunpack.c.l.b16 %v3531
      %v3575 = vunpack.c.l.b16 %v3541
      %v3576 = vpack.c.b16 %v3545, %v3544
      %v3577 = vpack.c.b16 %v3547, %v3546
      %v3578 = vpack.c.b16 %v3549, %v3548
      %v3579 = vpack.c.b16 %v3551, %v3550
      %v3580 = vpack.c.b16 %v3553, %v3552
      %v3581 = vpack.c.b16 %v3555, %v3554
      %v3582 = vpack.c.b16 %v3557, %v3556
      %v3583 = vpack.c.b16 %v3559, %v3558
      %v3584 = vpack.c.b16 %v3561, %v3560
      %v3585 = vpack.c.b16 %v3563, %v3562
      %v3586 = vpack.c.b16 %v3565, %v3564
      %v3587 = vpack.c.b16 %v3567, %v3566
      %v3588 = vpack.c.b16 %v3569, %v3568
      %v3589 = vpack.c.b16 %v3571, %v3570
      %v3590 = vpack.c.b16 %v3573, %v3572
      %v3591 = vpack.c.b16 %v3575, %v3574
      %v3593 = vsel %vm731, %v3576, 0
      %v3596 = vsel %vm731, %v3577, 0
      %v3599 = vsel %vm731, %v3578, 0
      %v3602 = vsel %vm731, %v3579, 0
      %v3605 = vsel %vm731, %v3580, 0
      %v3608 = vsel %vm731, %v3581, 0
      %v3611 = vsel %vm731, %v3582, 0
      %v3614 = vsel %vm731, %v3583, 0
      %v3617 = vsel %vm731, %v3584, 0
      %v3620 = vsel %vm731, %v3585, 0
      %v3623 = vsel %vm731, %v3586, 0
      %v3626 = vsel %vm731, %v3587, 0
      %v3629 = vsel %vm731, %v3588, 0
      %v3632 = vsel %vm731, %v3589, 0
      %v3635 = vsel %vm731, %v3590, 0
      %v3638 = vsel %vm731, %v3591, 0
      %v3641 = vsel %vm780, %v3543, 0
      %3643 = vmatpush.bf16.msra.mxu0 0
      %3644 = vmatpush.bf16.msra.mxu0 0
      %3645 = vmatpush.bf16.msra.mxu0 0
      %3646 = vmatpush.bf16.msra.mxu0 0
      %3647 = vmatpush.bf16.msra.mxu0 0
      %3648 = vmatpush.bf16.msra.mxu0 0
      %3649 = vmatpush.bf16.msra.mxu0 0
      %3650 = vmatpush.bf16.msra.mxu0 %v3641
      %3651 = vmatmul.bf16.gmra.mxu0 %v3593
      %v3652 = vpop.f32.mrf.mxu0
      %v3653 = vadd.f32 0.0, %v3652
      %v3654 = vpop.f32.mrf.mxu0
      %v3655 = vadd.f32 0.0, %v3654
      %3656 = vmatmul.bf16.gmra.mxu0 %v3596
      %v3657 = vpop.f32.mrf.mxu0
      %v3658 = vadd.f32 0.0, %v3657
      %v3659 = vpop.f32.mrf.mxu0
      %v3660 = vadd.f32 0.0, %v3659
      %3661 = vmatmul.bf16.gmra.mxu0 %v3599
      %v3662 = vpop.f32.mrf.mxu0
      %v3663 = vadd.f32 0.0, %v3662
      %v3664 = vpop.f32.mrf.mxu0
      %v3665 = vadd.f32 0.0, %v3664
      %3666 = vmatmul.bf16.gmra.mxu0 %v3602
      %v3667 = vpop.f32.mrf.mxu0
      %v3668 = vadd.f32 0.0, %v3667
      %v3669 = vpop.f32.mrf.mxu0
      %v3670 = vadd.f32 0.0, %v3669
      %3671 = vmatmul.bf16.gmra.mxu0 %v3605
      %v3672 = vpop.f32.mrf.mxu0
      %v3673 = vadd.f32 0.0, %v3672
      %v3674 = vpop.f32.mrf.mxu0
      %v3675 = vadd.f32 0.0, %v3674
      %3676 = vmatmul.bf16.gmra.mxu0 %v3608
      %v3677 = vpop.f32.mrf.mxu0
      %v3678 = vadd.f32 0.0, %v3677
      %v3679 = vpop.f32.mrf.mxu0
      %v3680 = vadd.f32 0.0, %v3679
      %3681 = vmatmul.bf16.gmra.mxu0 %v3611
      %v3682 = vpop.f32.mrf.mxu0
      %v3683 = vadd.f32 0.0, %v3682
      %v3684 = vpop.f32.mrf.mxu0
      %v3685 = vadd.f32 0.0, %v3684
      %3686 = vmatmul.bf16.gmra.mxu0 %v3614
      %v3687 = vpop.f32.mrf.mxu0
      %v3688 = vadd.f32 0.0, %v3687
      %v3689 = vpop.f32.mrf.mxu0
      %v3690 = vadd.f32 0.0, %v3689
      %3691 = vmatmul.bf16.gmra.mxu0 %v3617
      %v3692 = vpop.f32.mrf.mxu0
      %v3693 = vadd.f32 0.0, %v3692
      %v3694 = vpop.f32.mrf.mxu0
      %v3695 = vadd.f32 0.0, %v3694
      %3696 = vmatmul.bf16.gmra.mxu0 %v3620
      %v3697 = vpop.f32.mrf.mxu0
      %v3698 = vadd.f32 0.0, %v3697
      %v3699 = vpop.f32.mrf.mxu0
      %v3700 = vadd.f32 0.0, %v3699
      %3701 = vmatmul.bf16.gmra.mxu0 %v3623
      %v3702 = vpop.f32.mrf.mxu0
      %v3703 = vadd.f32 0.0, %v3702
      %v3704 = vpop.f32.mrf.mxu0
      %v3705 = vadd.f32 0.0, %v3704
      %3706 = vmatmul.bf16.gmra.mxu0 %v3626
      %v3707 = vpop.f32.mrf.mxu0
      %v3708 = vadd.f32 0.0, %v3707
      %v3709 = vpop.f32.mrf.mxu0
      %v3710 = vadd.f32 0.0, %v3709
      %3711 = vmatmul.bf16.gmra.mxu0 %v3629
      %v3712 = vpop.f32.mrf.mxu0
      %v3713 = vadd.f32 0.0, %v3712
      %v3714 = vpop.f32.mrf.mxu0
      %v3715 = vadd.f32 0.0, %v3714
      %3716 = vmatmul.bf16.gmra.mxu0 %v3632
      %v3717 = vpop.f32.mrf.mxu0
      %v3718 = vadd.f32 0.0, %v3717
      %v3719 = vpop.f32.mrf.mxu0
      %v3720 = vadd.f32 0.0, %v3719
      %3721 = vmatmul.bf16.gmra.mxu0 %v3635
      %v3722 = vpop.f32.mrf.mxu0
      %v3723 = vadd.f32 0.0, %v3722
      %v3724 = vpop.f32.mrf.mxu0
      %v3725 = vadd.f32 0.0, %v3724
      %3726 = vmatmul.bf16.gmra.mxu0 %v3638
      %v3727 = vpop.f32.mrf.mxu0
      %v3728 = vadd.f32 0.0, %v3727
      %v3729 = vpop.f32.mrf.mxu0
      %v3730 = vadd.f32 0.0, %v3729
      %3731 = vdwg.mxu0
      %v3732 = vadd.f32 %v3078, %v3653
      %v3733 = vadd.f32 %v3079, %v3655
      %v3734 = vadd.f32 %v3080, %v3658
      %v3735 = vadd.f32 %v3081, %v3660
      %v3736 = vadd.f32 %v3082, %v3663
      %v3737 = vadd.f32 %v3083, %v3665
      %v3738 = vadd.f32 %v3084, %v3668
      %v3739 = vadd.f32 %v3085, %v3670
      %v3740 = vadd.f32 %v3086, %v3673
      %v3741 = vadd.f32 %v3087, %v3675
      %v3742 = vadd.f32 %v3088, %v3678
      %v3743 = vadd.f32 %v3089, %v3680
      %v3744 = vadd.f32 %v3090, %v3683
      %v3745 = vadd.f32 %v3091, %v3685
      %v3746 = vadd.f32 %v3092, %v3688
      %v3747 = vadd.f32 %v3093, %v3690
      %v3748 = vadd.f32 %v3094, %v3693
      %v3749 = vadd.f32 %v3095, %v3695
      %v3750 = vadd.f32 %v3096, %v3698
      %v3751 = vadd.f32 %v3097, %v3700
      %v3752 = vadd.f32 %v3098, %v3703
      %v3753 = vadd.f32 %v3099, %v3705
      %v3754 = vadd.f32 %v3100, %v3708
      %v3755 = vadd.f32 %v3101, %v3710
      %v3756 = vadd.f32 %v3102, %v3713
      %v3757 = vadd.f32 %v3103, %v3715
      %v3758 = vadd.f32 %v3104, %v3718
      %v3759 = vadd.f32 %v3105, %v3720
      %v3760 = vadd.f32 %v3106, %v3723
      %v3761 = vadd.f32 %v3107, %v3725
      %v3762 = vadd.f32 %v3108, %v3728
      %v3763 = vadd.f32 %v3109, %v3730
      %v3764 = vld [vmem:[%s2823] sm:$0xe]
      %v3765 = vld [vmem:[%s2823 + $0xc] sm:$0xe]
      %v3766 = vld [vmem:[%s2823 + $0x18] sm:$0xe]
      %v3767 = vld [vmem:[%s2823 + $0x24] sm:$0xe]
      %v3768 = vld [vmem:[%s2823 + $0x30] sm:$0xe]
      %v3769 = vld [vmem:[%s2823 + $0x3c] sm:$0xe]
      %v3770 = vld [vmem:[%s2823 + $0x48] sm:$0xe]
      %v3771 = vld [vmem:[%s2823 + $0x54] sm:$0xe]
      %v3772 = vld [vmem:[%s2823 + $0x60] sm:$0xe]
      %v3773 = vld [vmem:[%s2823 + $0x6c] sm:$0xe]
      %v3774 = vld [vmem:[%s2823 + $0x78] sm:$0xe]
      %v3775 = vld [vmem:[%s2823 + $0x84] sm:$0xe]
      %v3776 = vld [vmem:[%s2823 + $0x90] sm:$0xe]
      %v3777 = vld [vmem:[%s2823 + $0x9c] sm:$0xe]
      %v3778 = vld [vmem:[%s2823 + $0xa8] sm:$0xe]
      %v3779 = vld [vmem:[%s2823 + $0xb4] sm:$0xe]
      %v3828 = vrot.slane %v3764, 5
      %v3829 = vrot.slane %v3828, 4
      %v3830 = vrot.slane %v3111, 5
      %v3831 = vsel %vm1143, %v3829, %v3830
      %v3832 = vrot.slane %v3830, 4
      %v3833 = vrot.slane %v3112, 5
      %v3834 = vsel %vm1143, %v3832, %v3833
      %v3835 = vrot.slane %v3765, 5
      %v3836 = vrot.slane %v3835, 4
      %v3837 = vrot.slane %v3114, 5
      %v3838 = vsel %vm1143, %v3836, %v3837
      %v3839 = vrot.slane %v3837, 4
      %v3840 = vrot.slane %v3115, 5
      %v3841 = vsel %vm1143, %v3839, %v3840
      %v3842 = vrot.slane %v3766, 5
      %v3843 = vrot.slane %v3842, 4
      %v3844 = vrot.slane %v3117, 5
      %v3845 = vsel %vm1143, %v3843, %v3844
      %v3846 = vrot.slane %v3844, 4
      %v3847 = vrot.slane %v3118, 5
      %v3848 = vsel %vm1143, %v3846, %v3847
      %v3849 = vrot.slane %v3767, 5
      %v3850 = vrot.slane %v3849, 4
      %v3851 = vrot.slane %v3120, 5
      %v3852 = vsel %vm1143, %v3850, %v3851
      %v3853 = vrot.slane %v3851, 4
      %v3854 = vrot.slane %v3121, 5
      %v3855 = vsel %vm1143, %v3853, %v3854
      %v3856 = vrot.slane %v3768, 5
      %v3857 = vrot.slane %v3856, 4
      %v3858 = vrot.slane %v3123, 5
      %v3859 = vsel %vm1143, %v3857, %v3858
      %v3860 = vrot.slane %v3858, 4
      %v3861 = vrot.slane %v3124, 5
      %v3862 = vsel %vm1143, %v3860, %v3861
      %v3863 = vrot.slane %v3769, 5
      %v3864 = vrot.slane %v3863, 4
      %v3865 = vrot.slane %v3126, 5
      %v3866 = vsel %vm1143, %v3864, %v3865
      %v3867 = vrot.slane %v3865, 4
      %v3868 = vrot.slane %v3127, 5
      %v3869 = vsel %vm1143, %v3867, %v3868
      %v3870 = vrot.slane %v3770, 5
      %v3871 = vrot.slane %v3870, 4
      %v3872 = vrot.slane %v3129, 5
      %v3873 = vsel %vm1143, %v3871, %v3872
      %v3874 = vrot.slane %v3872, 4
      %v3875 = vrot.slane %v3130, 5
      %v3876 = vsel %vm1143, %v3874, %v3875
      %v3877 = vrot.slane %v3771, 5
      %v3878 = vrot.slane %v3877, 4
      %v3879 = vrot.slane %v3132, 5
      %v3880 = vsel %vm1143, %v3878, %v3879
      %v3881 = vrot.slane %v3879, 4
      %v3882 = vrot.slane %v3133, 5
      %v3883 = vsel %vm1143, %v3881, %v3882
      %v3884 = vrot.slane %v3772, 5
      %v3885 = vrot.slane %v3884, 4
      %v3886 = vrot.slane %v3135, 5
      %v3887 = vsel %vm1143, %v3885, %v3886
      %v3888 = vrot.slane %v3886, 4
      %v3889 = vrot.slane %v3136, 5
      %v3890 = vsel %vm1143, %v3888, %v3889
      %v3891 = vrot.slane %v3773, 5
      %v3892 = vrot.slane %v3891, 4
      %v3893 = vrot.slane %v3138, 5
      %v3894 = vsel %vm1143, %v3892, %v3893
      %v3895 = vrot.slane %v3893, 4
      %v3896 = vrot.slane %v3139, 5
      %v3897 = vsel %vm1143, %v3895, %v3896
      %v3898 = vrot.slane %v3774, 5
      %v3899 = vrot.slane %v3898, 4
      %v3900 = vrot.slane %v3141, 5
      %v3901 = vsel %vm1143, %v3899, %v3900
      %v3902 = vrot.slane %v3900, 4
      %v3903 = vrot.slane %v3142, 5
      %v3904 = vsel %vm1143, %v3902, %v3903
      %v3905 = vrot.slane %v3775, 5
      %v3906 = vrot.slane %v3905, 4
      %v3907 = vrot.slane %v3144, 5
      %v3908 = vsel %vm1143, %v3906, %v3907
      %v3909 = vrot.slane %v3907, 4
      %v3910 = vrot.slane %v3145, 5
      %v3911 = vsel %vm1143, %v3909, %v3910
      %v3912 = vrot.slane %v3776, 5
      %v3913 = vrot.slane %v3912, 4
      %v3914 = vrot.slane %v3147, 5
      %v3915 = vsel %vm1143, %v3913, %v3914
      %v3916 = vrot.slane %v3914, 4
      %v3917 = vrot.slane %v3148, 5
      %v3918 = vsel %vm1143, %v3916, %v3917
      %v3919 = vrot.slane %v3777, 5
      %v3920 = vrot.slane %v3919, 4
      %v3921 = vrot.slane %v3150, 5
      %v3922 = vsel %vm1143, %v3920, %v3921
      %v3923 = vrot.slane %v3921, 4
      %v3924 = vrot.slane %v3151, 5
      %v3925 = vsel %vm1143, %v3923, %v3924
      %v3926 = vrot.slane %v3778, 5
      %v3927 = vrot.slane %v3926, 4
      %v3928 = vrot.slane %v3153, 5
      %v3929 = vsel %vm1143, %v3927, %v3928
      %v3930 = vrot.slane %v3928, 4
      %v3931 = vrot.slane %v3154, 5
      %v3932 = vsel %vm1143, %v3930, %v3931
      %v3933 = vrot.slane %v3779, 5
      %v3934 = vrot.slane %v3933, 4
      %v3935 = vrot.slane %v3156, 5
      %v3936 = vsel %vm1143, %v3934, %v3935
      %v3937 = vrot.slane %v3935, 4
      %v3938 = vrot.slane %v3157, 5
      %v3939 = vsel %vm1143, %v3937, %v3938
      %s3940 = scalar_lea.vmem %s223, 16
      %v3941 = vld [vmem:[%s3940] sm:$0x3]
      %v3942 = vunpack.c.l.b16 %v3831
      %v3943 = vunpack.c.l.b16 %v3834
      %v3944 = vunpack.c.l.b16 %v3838
      %v3945 = vunpack.c.l.b16 %v3841
      %v3946 = vunpack.c.l.b16 %v3845
      %v3947 = vunpack.c.l.b16 %v3848
      %v3948 = vunpack.c.l.b16 %v3852
      %v3949 = vunpack.c.l.b16 %v3855
      %v3950 = vunpack.c.l.b16 %v3859
      %v3951 = vunpack.c.l.b16 %v3862
      %v3952 = vunpack.c.l.b16 %v3866
      %v3953 = vunpack.c.l.b16 %v3869
      %v3954 = vunpack.c.l.b16 %v3873
      %v3955 = vunpack.c.l.b16 %v3876
      %v3956 = vunpack.c.l.b16 %v3880
      %v3957 = vunpack.c.l.b16 %v3883
      %v3958 = vunpack.c.l.b16 %v3887
      %v3959 = vunpack.c.l.b16 %v3890
      %v3960 = vunpack.c.l.b16 %v3894
      %v3961 = vunpack.c.l.b16 %v3897
      %v3962 = vunpack.c.l.b16 %v3901
      %v3963 = vunpack.c.l.b16 %v3904
      %v3964 = vunpack.c.l.b16 %v3908
      %v3965 = vunpack.c.l.b16 %v3911
      %v3966 = vunpack.c.l.b16 %v3915
      %v3967 = vunpack.c.l.b16 %v3918
      %v3968 = vunpack.c.l.b16 %v3922
      %v3969 = vunpack.c.l.b16 %v3925
      %v3970 = vunpack.c.l.b16 %v3929
      %v3971 = vunpack.c.l.b16 %v3932
      %v3972 = vunpack.c.l.b16 %v3936
      %v3973 = vunpack.c.l.b16 %v3939
      %v3974 = vpack.c.b16 %v3943, %v3942
      %v3975 = vpack.c.b16 %v3945, %v3944
      %v3976 = vpack.c.b16 %v3947, %v3946
      %v3977 = vpack.c.b16 %v3949, %v3948
      %v3978 = vpack.c.b16 %v3951, %v3950
      %v3979 = vpack.c.b16 %v3953, %v3952
      %v3980 = vpack.c.b16 %v3955, %v3954
      %v3981 = vpack.c.b16 %v3957, %v3956
      %v3982 = vpack.c.b16 %v3959, %v3958
      %v3983 = vpack.c.b16 %v3961, %v3960
      %v3984 = vpack.c.b16 %v3963, %v3962
      %v3985 = vpack.c.b16 %v3965, %v3964
      %v3986 = vpack.c.b16 %v3967, %v3966
      %v3987 = vpack.c.b16 %v3969, %v3968
      %v3988 = vpack.c.b16 %v3971, %v3970
      %v3989 = vpack.c.b16 %v3973, %v3972
      %v3991 = vsel %vm731, %v3974, 0
      %v3994 = vsel %vm731, %v3975, 0
      %v3997 = vsel %vm731, %v3976, 0
      %v4000 = vsel %vm731, %v3977, 0
      %v4003 = vsel %vm731, %v3978, 0
      %v4006 = vsel %vm731, %v3979, 0
      %v4009 = vsel %vm731, %v3980, 0
      %v4012 = vsel %vm731, %v3981, 0
      %v4015 = vsel %vm731, %v3982, 0
      %v4018 = vsel %vm731, %v3983, 0
      %v4021 = vsel %vm731, %v3984, 0
      %v4024 = vsel %vm731, %v3985, 0
      %v4027 = vsel %vm731, %v3986, 0
      %v4030 = vsel %vm731, %v3987, 0
      %v4033 = vsel %vm731, %v3988, 0
      %v4036 = vsel %vm731, %v3989, 0
      %v4039 = vsel %vm780, %v3941, 0
      %4041 = vmatpush.bf16.msra.mxu0 0
      %4042 = vmatpush.bf16.msra.mxu0 0
      %4043 = vmatpush.bf16.msra.mxu0 0
      %4044 = vmatpush.bf16.msra.mxu0 0
      %4045 = vmatpush.bf16.msra.mxu0 0
      %4046 = vmatpush.bf16.msra.mxu0 0
      %4047 = vmatpush.bf16.msra.mxu0 0
      %4048 = vmatpush.bf16.msra.mxu0 %v4039
      %4049 = vmatmul.bf16.gmra.mxu0 %v3991
      %v4050 = vpop.f32.mrf.mxu0
      %v4051 = vadd.f32 0.0, %v4050
      %v4052 = vpop.f32.mrf.mxu0
      %v4053 = vadd.f32 0.0, %v4052
      %4054 = vmatmul.bf16.gmra.mxu0 %v3994
      %v4055 = vpop.f32.mrf.mxu0
      %v4056 = vadd.f32 0.0, %v4055
      %v4057 = vpop.f32.mrf.mxu0
      %v4058 = vadd.f32 0.0, %v4057
      %4059 = vmatmul.bf16.gmra.mxu0 %v3997
      %v4060 = vpop.f32.mrf.mxu0
      %v4061 = vadd.f32 0.0, %v4060
      %v4062 = vpop.f32.mrf.mxu0
      %v4063 = vadd.f32 0.0, %v4062
      %4064 = vmatmul.bf16.gmra.mxu0 %v4000
      %v4065 = vpop.f32.mrf.mxu0
      %v4066 = vadd.f32 0.0, %v4065
      %v4067 = vpop.f32.mrf.mxu0
      %v4068 = vadd.f32 0.0, %v4067
      %4069 = vmatmul.bf16.gmra.mxu0 %v4003
      %v4070 = vpop.f32.mrf.mxu0
      %v4071 = vadd.f32 0.0, %v4070
      %v4072 = vpop.f32.mrf.mxu0
      %v4073 = vadd.f32 0.0, %v4072
      %4074 = vmatmul.bf16.gmra.mxu0 %v4006
      %v4075 = vpop.f32.mrf.mxu0
      %v4076 = vadd.f32 0.0, %v4075
      %v4077 = vpop.f32.mrf.mxu0
      %v4078 = vadd.f32 0.0, %v4077
      %4079 = vmatmul.bf16.gmra.mxu0 %v4009
      %v4080 = vpop.f32.mrf.mxu0
      %v4081 = vadd.f32 0.0, %v4080
      %v4082 = vpop.f32.mrf.mxu0
      %v4083 = vadd.f32 0.0, %v4082
      %4084 = vmatmul.bf16.gmra.mxu0 %v4012
      %v4085 = vpop.f32.mrf.mxu0
      %v4086 = vadd.f32 0.0, %v4085
      %v4087 = vpop.f32.mrf.mxu0
      %v4088 = vadd.f32 0.0, %v4087
      %4089 = vmatmul.bf16.gmra.mxu0 %v4015
      %v4090 = vpop.f32.mrf.mxu0
      %v4091 = vadd.f32 0.0, %v4090
      %v4092 = vpop.f32.mrf.mxu0
      %v4093 = vadd.f32 0.0, %v4092
      %4094 = vmatmul.bf16.gmra.mxu0 %v4018
      %v4095 = vpop.f32.mrf.mxu0
      %v4096 = vadd.f32 0.0, %v4095
      %v4097 = vpop.f32.mrf.mxu0
      %v4098 = vadd.f32 0.0, %v4097
      %4099 = vmatmul.bf16.gmra.mxu0 %v4021
      %v4100 = vpop.f32.mrf.mxu0
      %v4101 = vadd.f32 0.0, %v4100
      %v4102 = vpop.f32.mrf.mxu0
      %v4103 = vadd.f32 0.0, %v4102
      %4104 = vmatmul.bf16.gmra.mxu0 %v4024
      %v4105 = vpop.f32.mrf.mxu0
      %v4106 = vadd.f32 0.0, %v4105
      %v4107 = vpop.f32.mrf.mxu0
      %v4108 = vadd.f32 0.0, %v4107
      %4109 = vmatmul.bf16.gmra.mxu0 %v4027
      %v4110 = vpop.f32.mrf.mxu0
      %v4111 = vadd.f32 0.0, %v4110
      %v4112 = vpop.f32.mrf.mxu0
      %v4113 = vadd.f32 0.0, %v4112
      %4114 = vmatmul.bf16.gmra.mxu0 %v4030
      %v4115 = vpop.f32.mrf.mxu0
      %v4116 = vadd.f32 0.0, %v4115
      %v4117 = vpop.f32.mrf.mxu0
      %v4118 = vadd.f32 0.0, %v4117
      %4119 = vmatmul.bf16.gmra.mxu0 %v4033
      %v4120 = vpop.f32.mrf.mxu0
      %v4121 = vadd.f32 0.0, %v4120
      %v4122 = vpop.f32.mrf.mxu0
      %v4123 = vadd.f32 0.0, %v4122
      %4124 = vmatmul.bf16.gmra.mxu0 %v4036
      %v4125 = vpop.f32.mrf.mxu0
      %v4126 = vadd.f32 0.0, %v4125
      %v4127 = vpop.f32.mrf.mxu0
      %v4128 = vadd.f32 0.0, %v4127
      %4129 = vdwg.mxu0
      %v4130 = vadd.f32 %v3732, %v4051
      %v4131 = vadd.f32 %v3733, %v4053
      %v4132 = vadd.f32 %v3734, %v4056
      %v4133 = vadd.f32 %v3735, %v4058
      %v4134 = vadd.f32 %v3736, %v4061
      %v4135 = vadd.f32 %v3737, %v4063
      %v4136 = vadd.f32 %v3738, %v4066
      %v4137 = vadd.f32 %v3739, %v4068
      %v4138 = vadd.f32 %v3740, %v4071
      %v4139 = vadd.f32 %v3741, %v4073
      %v4140 = vadd.f32 %v3742, %v4076
      %v4141 = vadd.f32 %v3743, %v4078
      %v4142 = vadd.f32 %v3744, %v4081
      %v4143 = vadd.f32 %v3745, %v4083
      %v4144 = vadd.f32 %v3746, %v4086
      %v4145 = vadd.f32 %v3747, %v4088
      %v4146 = vadd.f32 %v3748, %v4091
      %v4147 = vadd.f32 %v3749, %v4093
      %v4148 = vadd.f32 %v3750, %v4096
      %v4149 = vadd.f32 %v3751, %v4098
      %v4150 = vadd.f32 %v3752, %v4101
      %v4151 = vadd.f32 %v3753, %v4103
      %v4152 = vadd.f32 %v3754, %v4106
      %v4153 = vadd.f32 %v3755, %v4108
      %v4154 = vadd.f32 %v3756, %v4111
      %v4155 = vadd.f32 %v3757, %v4113
      %v4156 = vadd.f32 %v3758, %v4116
      %v4157 = vadd.f32 %v3759, %v4118
      %v4158 = vadd.f32 %v3760, %v4121
      %v4159 = vadd.f32 %v3761, %v4123
      %v4160 = vadd.f32 %v3762, %v4126
      %v4161 = vadd.f32 %v3763, %v4128
      %v4162 = vld [vmem:[%s226] sm:$0x1]
      %v4164 = vperm.slane %v4162, 0
      %v4166 = vadd.f32 %v4130, %v4164
      %v4167 = vadd.f32 %v4131, %v4164
      %v4168 = vadd.f32 %v4132, %v4164
      %v4169 = vadd.f32 %v4133, %v4164
      %v4170 = vadd.f32 %v4134, %v4164
      %v4171 = vadd.f32 %v4135, %v4164
      %v4172 = vadd.f32 %v4136, %v4164
      %v4173 = vadd.f32 %v4137, %v4164
      %v4174 = vadd.f32 %v4138, %v4164
      %v4175 = vadd.f32 %v4139, %v4164
      %v4176 = vadd.f32 %v4140, %v4164
      %v4177 = vadd.f32 %v4141, %v4164
      %v4178 = vadd.f32 %v4142, %v4164
      %v4179 = vadd.f32 %v4143, %v4164
      %v4180 = vadd.f32 %v4144, %v4164
      %v4181 = vadd.f32 %v4145, %v4164
      %v4182 = vadd.f32 %v4146, %v4164
      %v4183 = vadd.f32 %v4147, %v4164
      %v4184 = vadd.f32 %v4148, %v4164
      %v4185 = vadd.f32 %v4149, %v4164
      %v4186 = vadd.f32 %v4150, %v4164
      %v4187 = vadd.f32 %v4151, %v4164
      %v4188 = vadd.f32 %v4152, %v4164
      %v4189 = vadd.f32 %v4153, %v4164
      %v4190 = vadd.f32 %v4154, %v4164
      %v4191 = vadd.f32 %v4155, %v4164
      %v4192 = vadd.f32 %v4156, %v4164
      %v4193 = vadd.f32 %v4157, %v4164
      %v4194 = vadd.f32 %v4158, %v4164
      %v4195 = vadd.f32 %v4159, %v4164
      %v4196 = vadd.f32 %v4160, %v4164
      %v4197 = vadd.f32 %v4161, %v4164
      %4198 = vst [vmem:[%s238] sm:$0xff] %v4166
      %4199 = vst [vmem:[%s238 + $0x8] sm:$0xff] %v4167
      %4200 = vst [vmem:[%s238 + $0x10] sm:$0xff] %v4168
      %4201 = vst [vmem:[%s238 + $0x18] sm:$0xff] %v4169
      %4202 = vst [vmem:[%s238 + $0x20] sm:$0xff] %v4170
      %4203 = vst [vmem:[%s238 + $0x28] sm:$0xff] %v4171
      %4204 = vst [vmem:[%s238 + $0x30] sm:$0xff] %v4172
      %4205 = vst [vmem:[%s238 + $0x38] sm:$0xff] %v4173
      %4206 = vst [vmem:[%s238 + $0x40] sm:$0xff] %v4174
      %4207 = vst [vmem:[%s238 + $0x48] sm:$0xff] %v4175
      %4208 = vst [vmem:[%s238 + $0x50] sm:$0xff] %v4176
      %4209 = vst [vmem:[%s238 + $0x58] sm:$0xff] %v4177
      %4210 = vst [vmem:[%s238 + $0x60] sm:$0xff] %v4178
      %4211 = vst [vmem:[%s238 + $0x68] sm:$0xff] %v4179
      %4212 = vst [vmem:[%s238 + $0x70] sm:$0xff] %v4180
      %4213 = vst [vmem:[%s238 + $0x78] sm:$0xff] %v4181
      %4214 = vst [vmem:[%s238 + $0x80] sm:$0xff] %v4182
      %4215 = vst [vmem:[%s238 + $0x88] sm:$0xff] %v4183
      %4216 = vst [vmem:[%s238 + $0x90] sm:$0xff] %v4184
      %4217 = vst [vmem:[%s238 + $0x98] sm:$0xff] %v4185
      %4218 = vst [vmem:[%s238 + $0xa0] sm:$0xff] %v4186
      %4219 = vst [vmem:[%s238 + $0xa8] sm:$0xff] %v4187
      %4220 = vst [vmem:[%s238 + $0xb0] sm:$0xff] %v4188
      %4221 = vst [vmem:[%s238 + $0xb8] sm:$0xff] %v4189
      %4222 = vst [vmem:[%s238 + $0xc0] sm:$0xff] %v4190
      %4223 = vst [vmem:[%s238 + $0xc8] sm:$0xff] %v4191
      %4224 = vst [vmem:[%s238 + $0xd0] sm:$0xff] %v4192
      %4225 = vst [vmem:[%s238 + $0xd8] sm:$0xff] %v4193
      %4226 = vst [vmem:[%s238 + $0xe0] sm:$0xff] %v4194
      %4227 = vst [vmem:[%s238 + $0xe8] sm:$0xff] %v4195
      %4228 = vst [vmem:[%s238 + $0xf0] sm:$0xff] %v4196
      %4229 = vst [vmem:[%s238 + $0xf8] sm:$0xff] %v4197
      %s4230 = smul.u32 32, %s20
      %p4231 = scmp.lt.s32.totalorder %s19, 1
      %s4232 = scalar_select %p4231, %s19, 1
      %p4233 = scmp.lt.s32.totalorder %s4230, 31
      %s4234 = scalar_select %p4233, %s4230, 31
      %p4235 = scmp.lt.s32.totalorder %s21, 0
      %s4236 = scalar_select %p4235, %s21, 0
      %s4237 = sadd.s32 %s4236, %s4234
      %s4238 = smul.addr %s4232, 32
      %s4239 = sadd.s32 %s4237, %s4238
      %s4240 = smul.addr %s4239, 8
      %s4241 = scalar_lea.vmem %s3, %s4240
      // Predicated region
      $region33: #{conv2d_pallas.1} parent=31 // pred_check
        %p4242 = pneg %p133
      $region34: #{conv2d_pallas.1} parent=31 // pred_check_branch
        %4244 = sbr.rel (%p4242) target = $region36
      $region35: #{conv2d_pallas.1} parent=31 // pred_region
        %s4245 = smul.u32 32, %s20
      $region36: #{conv2d_pallas.1} parent=31 // pred_fallthru
        _
    $region32: #{conv2d_pallas.1} parent=5 // pred_fallthru
      _
    %p4246 = scmp.le.s32.totalorder 2, %s9
    // Predicated region
    $region37: #{conv2d_pallas.1} parent=5 // pred_check
      %p4247 = pneg %p4246
    $region38: #{conv2d_pallas.1} parent=5 // pred_check_branch
      %4249 = sbr.rel (%p4247) target = $region40
    $region39: #{conv2d_pallas.1} parent=5 // pred_region
      %s4250 = ssub.s32 %s9, 2
      // Predicated region
      $region41: #{conv2d_pallas.1} parent=39 // pred_check
        %p4251 = pneg %p139
      $region42: #{conv2d_pallas.1} parent=39 // pred_check_branch
        %4253 = sbr.rel (%p4251) target = $region44
      $region43: #{conv2d_pallas.1} parent=39 // pred_region
        %s4254 = smul.u32 32, %s23
        %p4255 = scmp.lt.s32.totalorder %s22, 1
        %s4256 = scalar_select %p4255, %s22, 1
        %p4257 = scmp.lt.s32.totalorder %s4254, 31
        %s4258 = scalar_select %p4257, %s4254, 31
        %p4259 = scmp.lt.s32.totalorder %s24, 0
        %s4260 = scalar_select %p4259, %s24, 0
        %s4261 = sadd.s32 %s4260, %s4258
        %s4262 = smul.addr %s4256, 32
        %s4263 = sadd.s32 %s4261, %s4262
        %s4264 = smul.addr %s4263, 8
        %s4265 = scalar_lea.vmem %s3, %s4264
      $region44: #{conv2d_pallas.1} parent=39 // pred_fallthru
        _
    $region40: #{conv2d_pallas.1} parent=5 // pred_fallthru
      _
  $region6: #{conv2d_pallas.1} parent=0 // loop_footer
    %s13 = sadd.s32 1, %s9
  $region7: #{conv2d_pallas.1} parent=0 // loop_footer_branch
    %8 = sbr.rel target = $region3
  $region8: #{conv2d_pallas.1} parent=0 // loop_exit
    _

</llo_original>
